<compile_context>
chip_gen: v7x
topology: tpu7x:2x2x1
jax: 0.10.0
libtpu: 0.0.40
codegen_flags: <defaults>
</compile_context>

<pallas_src>
import jax
import jax.numpy as jnp
from jax.experimental import pallas as pl
from jax.experimental.pallas import tpu as pltpu

BN_EPS = 1e-5


def _fused_kernel(x322_ref, w102_ref, b102_ref, x319_ref,
                  w103_ref, x313_ref, gamma_ref, beta_ref, out_ref):
    # --- conv2d102 (1x1 conv on 1x1 spatial == matvec) + sigmoid gate -------
    # Recomputed every grid step (cheap) so the Cout grid axis can be
    # "parallel" without any cross-step scratch dependence.
    gate_lin = jnp.dot(w102_ref[...], x322_ref[...],
                       preferred_element_type=jnp.float32) + b102_ref[...]   # [C, 1] f32
    gate = jax.nn.sigmoid(gate_lin).astype(jnp.bfloat16)                     # [C, 1] bf16

    # --- gated activations, native bf16 broadcast multiply over the HW lanes -
    y = x319_ref[...] * gate                                                 # [C, HW] bf16

    # --- conv2d103 tile (1x1 conv == channel matmul on the MXU) --------------
    # w103 tile in native [out, in] layout: [tc, C] @ [C, HW] -> [tc, HW] f32.
    z = jnp.dot(w103_ref[...], y, preferred_element_type=jnp.float32)        # [tc, HW] f32

    # --- BatchNorm2d (training mode, biased batch stats), fused while z is hot
    inv_hw = 1.0 / z.shape[1]
    mean = jnp.sum(z, axis=1, keepdims=True) * inv_hw                        # [tc, 1]
    mean_sq = jnp.sum(z * z, axis=1, keepdims=True) * inv_hw                 # [tc, 1]
    var = jnp.maximum(mean_sq - mean * mean, 0.0)   # clamp: E[z^2]-mean^2 cancellation
    scale = gamma_ref[...] * jax.lax.rsqrt(var + BN_EPS)                     # [tc, 1]
    shift = beta_ref[...] - mean * scale                                     # [tc, 1]

    # --- residual add + store (bf16 output by default) -----------------------
    out_ref[...] = (x313_ref[...].astype(jnp.float32)
                    + z * scale + shift).astype(out_ref.dtype)


def model_forward(x322, x319, x313, w102, b102, w103, gamma, beta,
                  *, block_c=144, out_dtype=jnp.bfloat16):
    """Args are NCHW / PyTorch-shaped; returns NCHW output in `out_dtype`.

    Large operands (x319, x313, w102, w103) are streamed as bf16 (HBM-bound op);
    the MXU accumulates in f32 and the BN / residual epilogue runs in f32.
    """
    N, Cin, _, _ = x322.shape
    _, C, H, W = x319.shape
    assert N == 1, "kernel assumes batch size 1 (as in the reference module)"
    HW = H * W
    assert C % block_c == 0 and block_c % 8 == 0
    grid_c = C // block_c

    # Channel-major (C, H*W) views: transpose-free reshapes of contiguous NCHW.
    x322_m = x322.reshape(Cin, 1).astype(jnp.bfloat16)     # column vector for MXU matvec
    x319_m = x319.reshape(C, HW).astype(jnp.bfloat16)
    x313_m = x313.reshape(C, HW).astype(jnp.bfloat16)
    # Weights in native [out, in] layout (no transpose needed).
    w102_m = w102.reshape(C, Cin).astype(jnp.bfloat16)
    b102_m = b102.reshape(C, 1).astype(jnp.float32)
    w103_m = w103.reshape(C, C).astype(jnp.bfloat16)
    gamma_m = gamma.reshape(C, 1).astype(jnp.float32)
    beta_m = beta.reshape(C, 1).astype(jnp.float32)

    in_specs = [
        pl.BlockSpec((Cin, 1),      lambda i: (0, 0)),     # x322 (whole, loaded once)
        pl.BlockSpec((C, Cin),      lambda i: (0, 0)),     # w102 (whole, loaded once)
        pl.BlockSpec((C, 1),        lambda i: (0, 0)),     # b102
        pl.BlockSpec((C, HW),       lambda i: (0, 0)),     # x319 (whole, loaded once)
        pl.BlockSpec((block_c, C),  lambda i: (i, 0)),     # w103 row tile (pipelined)
        pl.BlockSpec((block_c, HW), lambda i: (i, 0)),     # x313 row tile (pipelined)
        pl.BlockSpec((block_c, 1),  lambda i: (i, 0)),     # gamma tile
        pl.BlockSpec((block_c, 1),  lambda i: (i, 0)),     # beta tile
    ]
    out_specs = pl.BlockSpec((block_c, HW), lambda i: (i, 0))

    out_bytes = C * HW * jnp.dtype(out_dtype).itemsize
    flops = (2 * C * C * HW                                # conv2d103 matmul
             + grid_c * (2 * C * Cin + C * HW)             # gate matvec + gating (per step)
             + 8 * C * HW)                                 # BN stats + scale/shift + residual
    transcendentals = grid_c * C + C                       # sigmoid per step + rsqrt
    bytes_accessed = (2 * (x319_m.size + x313_m.size + w103_m.size
                           + w102_m.size + x322_m.size)    # bf16 operands
                      + 4 * (b102_m.size + gamma_m.size + beta_m.size)
                      + out_bytes)

    out = pl.pallas_call(
        _fused_kernel,
        out_shape=jax.ShapeDtypeStruct((C, HW), out_dtype),
        grid=(grid_c,),
        in_specs=in_specs,
        out_specs=out_specs,
        compiler_params=pltpu.CompilerParams(
            dimension_semantics=("parallel",)),            # v7x: shard Cout blocks over TCs
        cost_estimate=pl.CostEstimate(flops=flops,
                                      transcendentals=transcendentals,
                                      bytes_accessed=bytes_accessed),
    )(x322_m, w102_m, b102_m, x319_m, w103_m, x313_m, gamma_m, beta_m)

    # Transpose-free reshape back to NCHW.
    return out.reshape(N, C, H, W)


def _reference(x322, x319, x313, w102, b102, w103, gamma, beta):
    # Pure-JAX f32 reference (same math as the PyTorch module) for a sanity check.
    N, Cin, _, _ = x322.shape
    _, C, H, W = x319.shape
    gate = jax.nn.sigmoid(
        jnp.einsum('ni,oi->no', x322.reshape(N, Cin), w102.reshape(C, Cin)) + b102)
    y = x319 * gate.reshape(N, C, 1, 1)
    z = jnp.einsum('nchw,oc->nohw', y, w103.reshape(C, C))
    mean = jnp.mean(z, axis=(0, 2, 3), keepdims=True)
    var = jnp.mean((z - mean) ** 2, axis=(0, 2, 3), keepdims=True)
    zn = (z - mean) * jax.lax.rsqrt(var + BN_EPS)
    zn = zn * gamma.reshape(1, C, 1, 1) + beta.reshape(1, C, 1, 1)
    return x313 + zn


if __name__ == "__main__":
    key = jax.random.PRNGKey(0)
    k = jax.random.split(key, 8)

    N, C_IN, C, H, W = 1, 144, 576, 14, 14

    # Inputs (matching the module's forward signature shapes).
    x322 = jax.random.normal(k[0], (N, C_IN, 1, 1), jnp.float32)
    x319 = jax.random.normal(k[1], (N, C, H, W), jnp.float32)
    x313 = jax.random.normal(k[2], (N, C, H, W), jnp.float32)

    # Deterministic synthetic parameters (shapes from __init__).
    w102 = jax.random.normal(k[3], (C, C_IN, 1, 1), jnp.float32) * 0.05
    b102 = jax.random.normal(k[4], (C,), jnp.float32) * 0.05
    w103 = jax.random.normal(k[5], (C, C, 1, 1), jnp.float32) * 0.05
    gamma = 1.0 + 0.1 * jax.random.normal(k[6], (C,), jnp.float32)
    beta = 0.1 * jax.random.normal(k[7], (C,), jnp.float32)

    out = model_forward(x322, x319, x313, w102, b102, w103, gamma, beta)
    out = jax.block_until_ready(out)
    assert out.shape == (N, C, H, W)

    # Correctness check at the kernel's operating precision: feed the f32
    # reference the same bf16-demoted operands the kernel streams, so the
    # comparison measures kernel arithmetic (f32 accumulation, fused BN,
    # bf16 output rounding) rather than the intentional input demotion.
    def _demote(a):
        return a.astype(jnp.bfloat16).astype(jnp.float32)

    ref = _reference(_demote(x322), _demote(x319), _demote(x313),
                     _demote(w102), b102, _demote(w103), gamma, beta)
    assert jnp.allclose(out.astype(jnp.float32), ref, rtol=3e-2, atol=3e-2), \
        "mismatch vs reference"

    print("KERNEL_OK")
</pallas_src>

<mosaic_0001>
module attributes {stable_mosaic.version = 11 : i64} {
  func.func @_fused_kernel(%arg0: i32, %arg1: memref<144x1xbf16, #tpu.memory_space<vmem>>, %arg2: memref<576x144xbf16, #tpu.memory_space<vmem>>, %arg3: memref<576x1xf32, #tpu.memory_space<vmem>>, %arg4: memref<576x196xbf16, #tpu.memory_space<vmem>>, %arg5: memref<144x576xbf16, #tpu.memory_space<vmem>>, %arg6: memref<144x196xbf16, #tpu.memory_space<vmem>>, %arg7: memref<144x1xf32, #tpu.memory_space<vmem>>, %arg8: memref<144x1xf32, #tpu.memory_space<vmem>>, %arg9: memref<144x196xbf16, #tpu.memory_space<vmem>>) attributes {dimension_semantics = [#tpu.dimension_semantics<parallel>], iteration_bounds = array<i64: 4>, scalar_prefetch = 0 : i64, scratch_operands = 0 : i64, tpu.core_type = #tpu.core_type<tc>, window_params = [{pipeline_mode = #tpu.pipeline_mode<synchronous>, transform_indices = @transform_0, window_bounds = array<i64: 144, 1>}, {pipeline_mode = #tpu.pipeline_mode<synchronous>, transform_indices = @transform_1, window_bounds = array<i64: 576, 144>}, {pipeline_mode = #tpu.pipeline_mode<synchronous>, transform_indices = @transform_2, window_bounds = array<i64: 576, 1>}, {pipeline_mode = #tpu.pipeline_mode<synchronous>, transform_indices = @transform_3, window_bounds = array<i64: 576, 196>}, {transform_indices = @transform_4, window_bounds = array<i64: 144, 576>}, {transform_indices = @transform_5, window_bounds = array<i64: 144, 196>}, {transform_indices = @transform_6, window_bounds = array<i64: 144, 1>}, {transform_indices = @transform_7, window_bounds = array<i64: 144, 1>}, {transform_indices = @transform_8, window_bounds = array<i64: 144, 196>}]} {
    %c0 = arith.constant 0 : index
    %c0_0 = arith.constant 0 : index
    %0 = vector.load %arg2[%c0, %c0_0] : memref<576x144xbf16, #tpu.memory_space<vmem>>, vector<576x144xbf16>
    %c0_1 = arith.constant 0 : index
    %c0_2 = arith.constant 0 : index
    %1 = vector.load %arg1[%c0_1, %c0_2] : memref<144x1xbf16, #tpu.memory_space<vmem>>, vector<144x1xbf16>
    %cst = arith.constant dense<0.000000e+00> : vector<576x1xf32>
    %2 = tpu.matmul %0, %1, %cst {dimension_numbers = #tpu.dot_dimension_numbers<[1], [0], [0], [1], [0, 0, 1, 1], [], []>} : vector<576x144xbf16>, vector<144x1xbf16>, vector<576x1xf32> -> vector<576x1xf32>
    %c0_3 = arith.constant 0 : index
    %c0_4 = arith.constant 0 : index
    %3 = vector.load %arg3[%c0_3, %c0_4] : memref<576x1xf32, #tpu.memory_space<vmem>>, vector<576x1xf32>
    %4 = arith.addf %2, %3 : vector<576x1xf32>
    %5 = arith.negf %4 : vector<576x1xf32>
    %6 = math.exp %5 : vector<576x1xf32>
    %cst_5 = arith.constant 1.000000e+00 : f32
    %7 = vector.broadcast %cst_5 : f32 to vector<576x1xf32>
    %8 = arith.addf %7, %6 : vector<576x1xf32>
    %9 = arith.divf %7, %8 : vector<576x1xf32>
    %10 = arith.truncf %9 : vector<576x1xf32> to vector<576x1xbf16>
    %c0_6 = arith.constant 0 : index
    %c0_7 = arith.constant 0 : index
    %11 = vector.load %arg4[%c0_6, %c0_7] : memref<576x196xbf16, #tpu.memory_space<vmem>>, vector<576x196xbf16>
    %12 = vector.broadcast %10 : vector<576x1xbf16> to vector<576x196xbf16>
    %13 = arith.mulf %11, %12 : vector<576x196xbf16>
    %c0_8 = arith.constant 0 : index
    %c0_9 = arith.constant 0 : index
    %14 = vector.load %arg5[%c0_8, %c0_9] : memref<144x576xbf16, #tpu.memory_space<vmem>>, vector<144x576xbf16>
    %cst_10 = arith.constant dense<0.000000e+00> : vector<144x196xf32>
    %15 = tpu.matmul %14, %13, %cst_10 {dimension_numbers = #tpu.dot_dimension_numbers<[1], [0], [0], [1], [0, 0, 1, 1], [], []>} : vector<144x576xbf16>, vector<576x196xbf16>, vector<144x196xf32> -> vector<144x196xf32>
    %cst_11 = arith.constant dense<0.000000e+00> : vector<144xf32>
    %16 = vector.multi_reduction <add>, %15, %cst_11 [1] : vector<144x196xf32> to vector<144xf32>
    %17 = vector.shape_cast %16 : vector<144xf32> to vector<144x1xf32>
    %cst_12 = arith.constant 0.00510204071 : f32
    %18 = vector.broadcast %cst_12 : f32 to vector<144x1xf32>
    %19 = arith.mulf %17, %18 : vector<144x1xf32>
    %20 = arith.mulf %15, %15 : vector<144x196xf32>
    %cst_13 = arith.constant dense<0.000000e+00> : vector<144xf32>
    %21 = vector.multi_reduction <add>, %20, %cst_13 [1] : vector<144x196xf32> to vector<144xf32>
    %22 = vector.shape_cast %21 : vector<144xf32> to vector<144x1xf32>
    %cst_14 = arith.constant 0.00510204071 : f32
    %23 = vector.broadcast %cst_14 : f32 to vector<144x1xf32>
    %24 = arith.mulf %22, %23 : vector<144x1xf32>
    %25 = arith.mulf %19, %19 : vector<144x1xf32>
    %26 = arith.subf %24, %25 : vector<144x1xf32>
    %cst_15 = arith.constant 0.000000e+00 : f32
    %27 = vector.broadcast %cst_15 : f32 to vector<144x1xf32>
    %28 = arith.maximumf %26, %27 : vector<144x1xf32>
    %c0_16 = arith.constant 0 : index
    %c0_17 = arith.constant 0 : index
    %29 = vector.load %arg7[%c0_16, %c0_17] : memref<144x1xf32, #tpu.memory_space<vmem>>, vector<144x1xf32>
    %cst_18 = arith.constant 9.99999974E-6 : f32
    %30 = vector.broadcast %cst_18 : f32 to vector<144x1xf32>
    %31 = arith.addf %28, %30 : vector<144x1xf32>
    %32 = math.rsqrt %31 : vector<144x1xf32>
    %33 = arith.mulf %29, %32 : vector<144x1xf32>
    %c0_19 = arith.constant 0 : index
    %c0_20 = arith.constant 0 : index
    %34 = vector.load %arg8[%c0_19, %c0_20] : memref<144x1xf32, #tpu.memory_space<vmem>>, vector<144x1xf32>
    %35 = arith.mulf %19, %33 : vector<144x1xf32>
    %36 = arith.subf %34, %35 : vector<144x1xf32>
    %c0_21 = arith.constant 0 : index
    %c0_22 = arith.constant 0 : index
    %37 = vector.load %arg6[%c0_21, %c0_22] : memref<144x196xbf16, #tpu.memory_space<vmem>>, vector<144x196xbf16>
    %38 = arith.extf %37 : vector<144x196xbf16> to vector<144x196xf32>
    %39 = vector.broadcast %33 : vector<144x1xf32> to vector<144x196xf32>
    %40 = arith.mulf %15, %39 : vector<144x196xf32>
    %41 = arith.addf %38, %40 : vector<144x196xf32>
    %42 = vector.broadcast %36 : vector<144x1xf32> to vector<144x196xf32>
    %43 = arith.addf %41, %42 : vector<144x196xf32>
    %44 = arith.truncf %43 : vector<144x196xf32> to vector<144x196xbf16>
    %c0_23 = arith.constant 0 : index
    %c0_24 = arith.constant 0 : index
    %45 = vector.load %arg9[%c0_23, %c0_24] : memref<144x196xbf16, #tpu.memory_space<vmem>>, vector<144x196xbf16>
    tpu.vector_store %arg9[%c0_23, %c0_24], %44 {strides = array<i32>} : memref<144x196xbf16, #tpu.memory_space<vmem>>, vector<144x196xbf16>,
    return
  }
  func.func @transform_0(%arg0: i32) -> (i32, i32) {
    %c0_i32 = arith.constant 0 : i32
    %c0_i32_0 = arith.constant 0 : i32
    %c0_i32_1 = arith.constant 0 : i32
    return %c0_i32, %c0_i32_0 : i32, i32
  }
  func.func @transform_1(%arg0: i32) -> (i32, i32) {
    %c0_i32 = arith.constant 0 : i32
    %c0_i32_0 = arith.constant 0 : i32
    %c0_i32_1 = arith.constant 0 : i32
    return %c0_i32, %c0_i32_0 : i32, i32
  }
  func.func @transform_2(%arg0: i32) -> (i32, i32) {
    %c0_i32 = arith.constant 0 : i32
    %c0_i32_0 = arith.constant 0 : i32
    %c0_i32_1 = arith.constant 0 : i32
    return %c0_i32, %c0_i32_0 : i32, i32
  }
  func.func @transform_3(%arg0: i32) -> (i32, i32) {
    %c0_i32 = arith.constant 0 : i32
    %c0_i32_0 = arith.constant 0 : i32
    %c0_i32_1 = arith.constant 0 : i32
    return %c0_i32, %c0_i32_0 : i32, i32
  }
  func.func @transform_4(%arg0: i32) -> (i32, i32) {
    %c0_i32 = arith.constant 0 : i32
    %c0_i32_0 = arith.constant 0 : i32
    return %arg0, %c0_i32 : i32, i32
  }
  func.func @transform_5(%arg0: i32) -> (i32, i32) {
    %c0_i32 = arith.constant 0 : i32
    %c0_i32_0 = arith.constant 0 : i32
    return %arg0, %c0_i32 : i32, i32
  }
  func.func @transform_6(%arg0: i32) -> (i32, i32) {
    %c0_i32 = arith.constant 0 : i32
    %c0_i32_0 = arith.constant 0 : i32
    return %arg0, %c0_i32 : i32, i32
  }
  func.func @transform_7(%arg0: i32) -> (i32, i32) {
    %c0_i32 = arith.constant 0 : i32
    %c0_i32_0 = arith.constant 0 : i32
    return %arg0, %c0_i32 : i32, i32
  }
  func.func @transform_8(%arg0: i32) -> (i32, i32) {
    %c0_i32 = arith.constant 0 : i32
    %c0_i32_0 = arith.constant 0 : i32
    return %arg0, %c0_i32 : i32, i32
  }
}

</mosaic_0001>

<llo_original>
// kernel: tpu_custom_call.1
$region0: #{tpu_custom_call.1}
  #allocation0 [shape = 'u32[]', space=smem, size = 0x4, offset = 0x4, fixed_abs, tag = 'smem constant byte address 0x4 - core index']
  #allocation1 [shape = 'u32[144,128]{1,0:T(1,128)}', space=vmem, size = 0x12000, scoped, tag = 'internal scratch']
  %s0 = inlined_call_operand.vmem [shape: bf16[144,1], index: 0, kind: input, shape index: {}]
  %s1 = inlined_call_operand.vmem [shape: bf16[576,144], index: 1, kind: input, shape index: {}]
  %s2 = inlined_call_operand.vmem [shape: f32[576,1], index: 2, kind: input, shape index: {}]
  %s3 = inlined_call_operand.vmem [shape: bf16[576,196], index: 3, kind: input, shape index: {}]
  %s4 = inlined_call_operand.vmem [shape: bf16[576,576], index: 4, kind: input, shape index: {}]
  %s5 = inlined_call_operand.vmem [shape: bf16[576,196], index: 5, kind: input, shape index: {}]
  %s6 = inlined_call_operand.vmem [shape: f32[576,1], index: 6, kind: input, shape index: {}]
  %s7 = inlined_call_operand.vmem [shape: f32[576,1], index: 7, kind: input, shape index: {}]
  %s8 = inlined_call_operand.vmem [shape: bf16[576,196], index: 8, kind: output, shape index: {}]
  %s9 = sld [smem:[#allocation0]]
  $region65: #{tpu_custom_call.1} parent=0
    _
  %s11 = ssub.s32 1, %s9
  %s12 = scalar_select 0, %s11, %s9
  loop: start=0, step=1, limit=6
  $region2: #{tpu_custom_call.1} parent=0 // loop_pre_header
    _
  $region3: #{tpu_custom_call.1} parent=0 // loop_header
    %s14 = sphi 0, %s18
    %p15 = scmp.ge.s32.totalorder %s14, 6
    %s22 = sphi 0, %s22
    %s24 = sphi 0, %s22
    %s25 = sphi 0, %s24
    %s39 = sphi 0, %s25
    %s43 = sphi 0, %s43
    %s45 = sphi 0, %s43
    %s46 = sphi 0, %s45
    %s60 = sphi 0, %s46
    %s64 = sphi 0, %s64
    %s66 = sphi 0, %s64
    %s67 = sphi 0, %s66
    %s81 = sphi 0, %s67
    %s85 = sphi 0, %s85
    %s87 = sphi 0, %s85
    %s88 = sphi 0, %s87
    %s102 = sphi 0, %s88
    %s108 = sphi 0, %s110
    %s111 = sphi 0, %s108
    %s112 = sphi 0, %s111
    %s128 = sphi 0, %s112
    %s134 = sphi 0, %s136
    %s137 = sphi 0, %s134
    %s138 = sphi 0, %s137
    %s154 = sphi 0, %s138
    %s160 = sphi 0, %s162
    %s163 = sphi 0, %s160
    %s164 = sphi 0, %s163
    %s180 = sphi 0, %s164
    %s186 = sphi 0, %s188
    %s189 = sphi 0, %s186
    %s190 = sphi 0, %s189
    %s206 = sphi 0, %s190
    %s212 = sphi 0, %s214
    %s215 = sphi 0, %s212
    %s216 = sphi 0, %s215
    %s232 = sphi 0, %s216
  $region4: #{tpu_custom_call.1} parent=0 // loop_header_branch
    %17 = sbr.rel (%p15) target = $region8
  $region5: #{tpu_custom_call.1} parent=0 // loop_body
    %s19 = ssub.s32 %s14, 1
    %s20 = ssub.s32 %s14, 2
    %s21 = sadd.s32 %s14, 1
    %s23 = sadd.s32 %s22, 1
    %p26 = scmp.eq.s32.totalorder %s14, 3
    %p27 = scmp.ne.s32.totalorder %s22, %s24
    %p28 = scmp.eq.s32.totalorder %s14, 0
    %p29 = por %p27, %p28
    %p30 = scmp.ne.s32.totalorder %s22, %s24
    %p31 = scmp.eq.s32.totalorder %s19, 3
    %p32 = por %p30, %p31
    %p33 = scmp.ne.s32.totalorder %s24, %s25
    %p34 = scmp.eq.s32.totalorder %s19, 0
    %p35 = por %p33, %p34
    %p36 = scmp.ne.s32.totalorder %s24, %s25
    %p37 = scmp.eq.s32.totalorder %s20, 3
    %p38 = por %p36, %p37
    %p40 = scmp.ne.s32.totalorder %s25, %s39
    %p41 = scmp.eq.s32.totalorder %s20, 0
    %p42 = por %p40, %p41
    %s44 = sadd.s32 %s43, 1
    %p47 = scmp.eq.s32.totalorder %s14, 3
    %p48 = scmp.ne.s32.totalorder %s43, %s45
    %p49 = scmp.eq.s32.totalorder %s14, 0
    %p50 = por %p48, %p49
    %p51 = scmp.ne.s32.totalorder %s43, %s45
    %p52 = scmp.eq.s32.totalorder %s19, 3
    %p53 = por %p51, %p52
    %p54 = scmp.ne.s32.totalorder %s45, %s46
    %p55 = scmp.eq.s32.totalorder %s19, 0
    %p56 = por %p54, %p55
    %p57 = scmp.ne.s32.totalorder %s45, %s46
    %p58 = scmp.eq.s32.totalorder %s20, 3
    %p59 = por %p57, %p58
    %p61 = scmp.ne.s32.totalorder %s46, %s60
    %p62 = scmp.eq.s32.totalorder %s20, 0
    %p63 = por %p61, %p62
    %s65 = sadd.s32 %s64, 1
    %p68 = scmp.eq.s32.totalorder %s14, 3
    %p69 = scmp.ne.s32.totalorder %s64, %s66
    %p70 = scmp.eq.s32.totalorder %s14, 0
    %p71 = por %p69, %p70
    %p72 = scmp.ne.s32.totalorder %s64, %s66
    %p73 = scmp.eq.s32.totalorder %s19, 3
    %p74 = por %p72, %p73
    %p75 = scmp.ne.s32.totalorder %s66, %s67
    %p76 = scmp.eq.s32.totalorder %s19, 0
    %p77 = por %p75, %p76
    %p78 = scmp.ne.s32.totalorder %s66, %s67
    %p79 = scmp.eq.s32.totalorder %s20, 3
    %p80 = por %p78, %p79
    %p82 = scmp.ne.s32.totalorder %s67, %s81
    %p83 = scmp.eq.s32.totalorder %s20, 0
    %p84 = por %p82, %p83
    %s86 = sadd.s32 %s85, 1
    %p89 = scmp.eq.s32.totalorder %s14, 3
    %p90 = scmp.ne.s32.totalorder %s85, %s87
    %p91 = scmp.eq.s32.totalorder %s14, 0
    %p92 = por %p90, %p91
    %p93 = scmp.ne.s32.totalorder %s85, %s87
    %p94 = scmp.eq.s32.totalorder %s19, 3
    %p95 = por %p93, %p94
    %p96 = scmp.ne.s32.totalorder %s87, %s88
    %p97 = scmp.eq.s32.totalorder %s19, 0
    %p98 = por %p96, %p97
    %p99 = scmp.ne.s32.totalorder %s87, %s88
    %p100 = scmp.eq.s32.totalorder %s20, 3
    %p101 = por %p99, %p100
    %p103 = scmp.ne.s32.totalorder %s88, %s102
    %p104 = scmp.eq.s32.totalorder %s20, 0
    %p105 = por %p103, %p104
    %s106 = ssub.s32 %s14, %s21
    %p107 = scmp.eq.s32.totalorder %s106, 0
    %s109 = sadd.s32 %s108, 1
    %s110 = scalar_select %p107, %s108, %s109
    %p113 = pneg %p107
    %p114 = scmp.eq.s32.totalorder %s14, 3
    %p115 = por %p113, %p114
    %p116 = scmp.ne.s32.totalorder %s108, %s111
    %p117 = scmp.eq.s32.totalorder %s14, 0
    %p118 = por %p116, %p117
    %p119 = scmp.ne.s32.totalorder %s108, %s111
    %p120 = scmp.eq.s32.totalorder %s19, 3
    %p121 = por %p119, %p120
    %p122 = scmp.ne.s32.totalorder %s111, %s112
    %p123 = scmp.eq.s32.totalorder %s19, 0
    %p124 = por %p122, %p123
    %p125 = scmp.ne.s32.totalorder %s111, %s112
    %p126 = scmp.eq.s32.totalorder %s20, 3
    %p127 = por %p125, %p126
    %p129 = scmp.ne.s32.totalorder %s112, %s128
    %p130 = scmp.eq.s32.totalorder %s20, 0
    %p131 = por %p129, %p130
    %s132 = ssub.s32 %s14, %s21
    %p133 = scmp.eq.s32.totalorder %s132, 0
    %s135 = sadd.s32 %s134, 1
    %s136 = scalar_select %p133, %s134, %s135
    %p139 = pneg %p133
    %p140 = scmp.eq.s32.totalorder %s14, 3
    %p141 = por %p139, %p140
    %p142 = scmp.ne.s32.totalorder %s134, %s137
    %p143 = scmp.eq.s32.totalorder %s14, 0
    %p144 = por %p142, %p143
    %p145 = scmp.ne.s32.totalorder %s134, %s137
    %p146 = scmp.eq.s32.totalorder %s19, 3
    %p147 = por %p145, %p146
    %p148 = scmp.ne.s32.totalorder %s137, %s138
    %p149 = scmp.eq.s32.totalorder %s19, 0
    %p150 = por %p148, %p149
    %p151 = scmp.ne.s32.totalorder %s137, %s138
    %p152 = scmp.eq.s32.totalorder %s20, 3
    %p153 = por %p151, %p152
    %p155 = scmp.ne.s32.totalorder %s138, %s154
    %p156 = scmp.eq.s32.totalorder %s20, 0
    %p157 = por %p155, %p156
    %s158 = ssub.s32 %s14, %s21
    %p159 = scmp.eq.s32.totalorder %s158, 0
    %s161 = sadd.s32 %s160, 1
    %s162 = scalar_select %p159, %s160, %s161
    %p165 = pneg %p159
    %p166 = scmp.eq.s32.totalorder %s14, 3
    %p167 = por %p165, %p166
    %p168 = scmp.ne.s32.totalorder %s160, %s163
    %p169 = scmp.eq.s32.totalorder %s14, 0
    %p170 = por %p168, %p169
    %p171 = scmp.ne.s32.totalorder %s160, %s163
    %p172 = scmp.eq.s32.totalorder %s19, 3
    %p173 = por %p171, %p172
    %p174 = scmp.ne.s32.totalorder %s163, %s164
    %p175 = scmp.eq.s32.totalorder %s19, 0
    %p176 = por %p174, %p175
    %p177 = scmp.ne.s32.totalorder %s163, %s164
    %p178 = scmp.eq.s32.totalorder %s20, 3
    %p179 = por %p177, %p178
    %p181 = scmp.ne.s32.totalorder %s164, %s180
    %p182 = scmp.eq.s32.totalorder %s20, 0
    %p183 = por %p181, %p182
    %s184 = ssub.s32 %s14, %s21
    %p185 = scmp.eq.s32.totalorder %s184, 0
    %s187 = sadd.s32 %s186, 1
    %s188 = scalar_select %p185, %s186, %s187
    %p191 = pneg %p185
    %p192 = scmp.eq.s32.totalorder %s14, 3
    %p193 = por %p191, %p192
    %p194 = scmp.ne.s32.totalorder %s186, %s189
    %p195 = scmp.eq.s32.totalorder %s14, 0
    %p196 = por %p194, %p195
    %p197 = scmp.ne.s32.totalorder %s186, %s189
    %p198 = scmp.eq.s32.totalorder %s19, 3
    %p199 = por %p197, %p198
    %p200 = scmp.ne.s32.totalorder %s189, %s190
    %p201 = scmp.eq.s32.totalorder %s19, 0
    %p202 = por %p200, %p201
    %p203 = scmp.ne.s32.totalorder %s189, %s190
    %p204 = scmp.eq.s32.totalorder %s20, 3
    %p205 = por %p203, %p204
    %p207 = scmp.ne.s32.totalorder %s190, %s206
    %p208 = scmp.eq.s32.totalorder %s20, 0
    %p209 = por %p207, %p208
    %s210 = ssub.s32 %s14, %s21
    %p211 = scmp.eq.s32.totalorder %s210, 0
    %s213 = sadd.s32 %s212, 1
    %s214 = scalar_select %p211, %s212, %s213
    %p217 = pneg %p211
    %p218 = scmp.eq.s32.totalorder %s14, 3
    %p219 = por %p217, %p218
    %p220 = scmp.ne.s32.totalorder %s212, %s215
    %p221 = scmp.eq.s32.totalorder %s14, 0
    %p222 = por %p220, %p221
    %p223 = scmp.ne.s32.totalorder %s212, %s215
    %p224 = scmp.eq.s32.totalorder %s19, 3
    %p225 = por %p223, %p224
    %p226 = scmp.ne.s32.totalorder %s215, %s216
    %p227 = scmp.eq.s32.totalorder %s19, 0
    %p228 = por %p226, %p227
    %p229 = scmp.ne.s32.totalorder %s215, %s216
    %p230 = scmp.eq.s32.totalorder %s20, 3
    %p231 = por %p229, %p230
    %p233 = scmp.ne.s32.totalorder %s216, %s232
    %p234 = scmp.eq.s32.totalorder %s20, 0
    %p235 = por %p233, %p234
    %p236 = scmp.le.s32.totalorder 1, %s14
    %p237 = scmp.lt.s32.totalorder %s14, 5
    %p238 = pnand %p236, %p237
    %p239 = pneg %p238
    // Predicated region
    $region9: #{tpu_custom_call.1} parent=5 // pred_check
      _
    $region10: #{tpu_custom_call.1} parent=5 // pred_check_branch
      %241 = sbr.rel (%p238) target = $region12
    $region11: #{tpu_custom_call.1} parent=5 // pred_region
      %s242 = ssub.s32 %s14, 1
      // Predicated region
      $region13: #{tpu_custom_call.1} parent=11 // pred_check
        %p243 = pneg %p35
      $region14: #{tpu_custom_call.1} parent=11 // pred_check_branch
        %245 = sbr.rel (%p243) target = $region16
      $region15: #{tpu_custom_call.1} parent=11 // pred_region
        _
      $region16: #{tpu_custom_call.1} parent=11 // pred_fallthru
        _
      // Predicated region
      $region17: #{tpu_custom_call.1} parent=11 // pred_check
        %p246 = pneg %p56
      $region18: #{tpu_custom_call.1} parent=11 // pred_check_branch
        %248 = sbr.rel (%p246) target = $region20
      $region19: #{tpu_custom_call.1} parent=11 // pred_region
        _
      $region20: #{tpu_custom_call.1} parent=11 // pred_fallthru
        _
      // Predicated region
      $region21: #{tpu_custom_call.1} parent=11 // pred_check
        %p249 = pneg %p77
      $region22: #{tpu_custom_call.1} parent=11 // pred_check_branch
        %251 = sbr.rel (%p249) target = $region24
      $region23: #{tpu_custom_call.1} parent=11 // pred_region
        _
      $region24: #{tpu_custom_call.1} parent=11 // pred_fallthru
        _
      // Predicated region
      $region25: #{tpu_custom_call.1} parent=11 // pred_check
        %p252 = pneg %p98
      $region26: #{tpu_custom_call.1} parent=11 // pred_check_branch
        %254 = sbr.rel (%p252) target = $region28
      $region27: #{tpu_custom_call.1} parent=11 // pred_region
        _
      $region28: #{tpu_custom_call.1} parent=11 // pred_fallthru
        _
    $region12: #{tpu_custom_call.1} parent=5 // pred_fallthru
      _
    %p255 = scmp.lt.s32.totalorder %s14, 4
    // Predicated region
    $region29: #{tpu_custom_call.1} parent=5 // pred_check
      %p256 = pneg %p255
    $region30: #{tpu_custom_call.1} parent=5 // pred_check_branch
      %258 = sbr.rel (%p256) target = $region32
    $region31: #{tpu_custom_call.1} parent=5 // pred_region
      // Predicated region
      $region33: #{tpu_custom_call.1} parent=31 // pred_check
        %p259 = pneg %p118
      $region34: #{tpu_custom_call.1} parent=31 // pred_check_branch
        %261 = sbr.rel (%p259) target = $region36
      $region35: #{tpu_custom_call.1} parent=31 // pred_region
        %s262 = smul.u32 18, %s14
        %p263 = scmp.lt.s32.totalorder %s262, 71
        %s264 = scalar_select %p263, %s262, 71
        %s265 = smul.addr %s264, 5
        %s266 = smul.addr %s265, 4
        %s267 = scalar_lea.vmem %s4, %s266
        %s268 = smul.u32 18, %s14
      $region36: #{tpu_custom_call.1} parent=31 // pred_fallthru
        _
      // Predicated region
      $region37: #{tpu_custom_call.1} parent=31 // pred_check
        %p269 = pneg %p144
      $region38: #{tpu_custom_call.1} parent=31 // pred_check_branch
        %271 = sbr.rel (%p269) target = $region40
      $region39: #{tpu_custom_call.1} parent=31 // pred_region
        %s272 = smul.u32 18, %s14
        %p273 = scmp.lt.s32.totalorder %s272, 71
        %s274 = scalar_select %p273, %s272, 71
        %s275 = smul.addr %s274, 2
        %s276 = smul.addr %s275, 4
        %s277 = scalar_lea.vmem %s5, %s276
        %s278 = smul.u32 18, %s14
      $region40: #{tpu_custom_call.1} parent=31 // pred_fallthru
        _
      // Predicated region
      $region41: #{tpu_custom_call.1} parent=31 // pred_check
        %p279 = pneg %p170
      $region42: #{tpu_custom_call.1} parent=31 // pred_check_branch
        %281 = sbr.rel (%p279) target = $region44
      $region43: #{tpu_custom_call.1} parent=31 // pred_region
        %s282 = smul.u32 18, %s14
        %p283 = scmp.lt.s32.totalorder %s282, 71
        %s284 = scalar_select %p283, %s282, 71
        %s285 = smul.addr %s284, 8
        %s286 = scalar_lea.vmem %s6, %s285
        %s287 = smul.u32 18, %s14
      $region44: #{tpu_custom_call.1} parent=31 // pred_fallthru
        _
      // Predicated region
      $region45: #{tpu_custom_call.1} parent=31 // pred_check
        %p288 = pneg %p196
      $region46: #{tpu_custom_call.1} parent=31 // pred_check_branch
        %290 = sbr.rel (%p288) target = $region48
      $region47: #{tpu_custom_call.1} parent=31 // pred_region
        %s291 = smul.u32 18, %s14
        %p292 = scmp.lt.s32.totalorder %s291, 71
        %s293 = scalar_select %p292, %s291, 71
        %s294 = smul.addr %s293, 8
        %s295 = scalar_lea.vmem %s7, %s294
        %s296 = smul.u32 18, %s14
      $region48: #{tpu_custom_call.1} parent=31 // pred_fallthru
        _
    $region32: #{tpu_custom_call.1} parent=5 // pred_fallthru
      _
    %p297 = scmp.le.s32.totalorder 1, %s14
    %p298 = scmp.lt.s32.totalorder %s14, 5
    %p299 = pnand %p297, %p298
    %p300 = pneg %p299
    // Predicated region
    $region49: #{tpu_custom_call.1} parent=5 // pred_check
      _
    $region50: #{tpu_custom_call.1} parent=5 // pred_check_branch
      %302 = sbr.rel (%p299) target = $region52
    $region51: #{tpu_custom_call.1} parent=5 // pred_region
      %s303 = ssub.s32 %s14, 1
      %p304 = pneg %p35
      %p305 = pneg %p32
      %p306 = pneg %p56
      %p307 = pneg %p53
      %p308 = pneg %p77
      %p309 = pneg %p74
      %p310 = pneg %p98
      %p311 = pneg %p95
      %s312 = smul.u32 18, %s19
      %p313 = scmp.lt.s32.totalorder %s312, 71
      %s314 = scalar_select %p313, %s312, 71
      %s315 = smul.addr %s314, 5
      %s316 = smul.addr %s315, 4
      %s317 = scalar_lea.vmem %s4, %s316
      %p318 = pneg %p124
      %p319 = pneg %p121
      %s320 = smul.u32 18, %s19
      %p321 = scmp.lt.s32.totalorder %s320, 71
      %s322 = scalar_select %p321, %s320, 71
      %s323 = smul.addr %s322, 2
      %s324 = smul.addr %s323, 4
      %s325 = scalar_lea.vmem %s5, %s324
      %p326 = pneg %p150
      %p327 = pneg %p147
      %s328 = smul.u32 18, %s19
      %p329 = scmp.lt.s32.totalorder %s328, 71
      %s330 = scalar_select %p329, %s328, 71
      %s331 = smul.addr %s330, 8
      %s332 = scalar_lea.vmem %s6, %s331
      %p333 = pneg %p176
      %p334 = pneg %p173
      %s335 = smul.u32 18, %s19
      %p336 = scmp.lt.s32.totalorder %s335, 71
      %s337 = scalar_select %p336, %s335, 71
      %s338 = smul.addr %s337, 8
      %s339 = scalar_lea.vmem %s7, %s338
      %p340 = pneg %p202
      %p341 = pneg %p199
      %p342 = pneg %p228
      %p343 = pneg %p225
      %s344 = smul.u32 18, %s19
      %p345 = scmp.lt.s32.totalorder %s344, 71
      %s346 = scalar_select %p345, %s344, 71
      %s347 = smul.addr %s346, 2
      %s348 = smul.addr %s347, 4
      %s349 = scalar_lea.vmem %s8, %s348
      %s350 = smul.u32 18, %s19
      %p351 = scmp.lt.s32.totalorder %s350, 71
      %s352 = scalar_select %p351, %s350, 71
      %s353 = smul.addr %s352, 5
      %s354 = smul.addr %s353, 4
      %s355 = scalar_lea.vmem %s4, %s354
      %s356 = smul.u32 18, %s19
      %s357 = smul.u32 18, %s19
      %p358 = scmp.lt.s32.totalorder %s357, 71
      %s359 = scalar_select %p358, %s357, 71
      %s360 = smul.addr %s359, 2
      %s361 = smul.addr %s360, 4
      %s362 = scalar_lea.vmem %s5, %s361
      %s363 = smul.u32 18, %s19
      %s364 = smul.u32 18, %s19
      %p365 = scmp.lt.s32.totalorder %s364, 71
      %s366 = scalar_select %p365, %s364, 71
      %s367 = smul.addr %s366, 8
      %s368 = scalar_lea.vmem %s6, %s367
      %s369 = smul.u32 18, %s19
      %s370 = smul.u32 18, %s19
      %p371 = scmp.lt.s32.totalorder %s370, 71
      %s372 = scalar_select %p371, %s370, 71
      %s373 = smul.addr %s372, 8
      %s374 = scalar_lea.vmem %s7, %s373
      %s375 = smul.u32 18, %s19
      %s376 = smul.u32 18, %s19
      %p377 = scmp.lt.s32.totalorder %s376, 71
      %s378 = scalar_select %p377, %s376, 71
      %s379 = smul.addr %s378, 2
      %s380 = smul.addr %s379, 4
      %s381 = scalar_lea.vmem %s8, %s380
      %s382 = smul.u32 18, %s19
      %v384 = vld [vmem:[%s1] sm:$0xff]
      %v385 = vld [vmem:[%s1 + $0x8] sm:$0xff]
      %v386 = vld [vmem:[%s1 + $0x10] sm:$0xff]
      %v387 = vld [vmem:[%s1 + $0x18] sm:$0xff]
      %v388 = vld [vmem:[%s1 + $0x20] sm:$0xff]
      %v389 = vld [vmem:[%s1 + $0x28] sm:$0xff]
      %v390 = vld [vmem:[%s1 + $0x30] sm:$0xff]
      %v391 = vld [vmem:[%s1 + $0x38] sm:$0xff]
      %v392 = vld [vmem:[%s1 + $0x40] sm:$0xff]
      %v393 = vld [vmem:[%s1 + $0x48] sm:$0xff]
      %v394 = vld [vmem:[%s1 + $0x50] sm:$0xff]
      %v395 = vld [vmem:[%s1 + $0x58] sm:$0xff]
      %v396 = vld [vmem:[%s1 + $0x60] sm:$0xff]
      %v397 = vld [vmem:[%s1 + $0x68] sm:$0xff]
      %v398 = vld [vmem:[%s1 + $0x70] sm:$0xff]
      %v399 = vld [vmem:[%s1 + $0x78] sm:$0xff]
      %v400 = vld [vmem:[%s1 + $0x80] sm:$0xff]
      %v401 = vld [vmem:[%s1 + $0x88] sm:$0xff]
      %v402 = vld [vmem:[%s1 + $0x90] sm:$0xff]
      %v403 = vld [vmem:[%s1 + $0x98] sm:$0xff]
      %v404 = vld [vmem:[%s1 + $0xa0] sm:$0xff]
      %v405 = vld [vmem:[%s1 + $0xa8] sm:$0xff]
      %v406 = vld [vmem:[%s1 + $0xb0] sm:$0xff]
      %v407 = vld [vmem:[%s1 + $0xb8] sm:$0xff]
      %v408 = vld [vmem:[%s1 + $0xc0] sm:$0xff]
      %v409 = vld [vmem:[%s1 + $0xc8] sm:$0xff]
      %v410 = vld [vmem:[%s1 + $0xd0] sm:$0xff]
      %v411 = vld [vmem:[%s1 + $0xd8] sm:$0xff]
      %v412 = vld [vmem:[%s1 + $0xe0] sm:$0xff]
      %v413 = vld [vmem:[%s1 + $0xe8] sm:$0xff]
      %v414 = vld [vmem:[%s1 + $0xf0] sm:$0xff]
      %v415 = vld [vmem:[%s1 + $0xf8] sm:$0xff]
      %v416 = vld [vmem:[%s1 + $0x100] sm:$0xff]
      %v417 = vld [vmem:[%s1 + $0x108] sm:$0xff]
      %v418 = vld [vmem:[%s1 + $0x110] sm:$0xff]
      %v419 = vld [vmem:[%s1 + $0x118] sm:$0xff]
      %v420 = vld [vmem:[%s1 + $0x120] sm:$0xff]
      %v421 = vld [vmem:[%s1 + $0x128] sm:$0xff]
      %v422 = vld [vmem:[%s1 + $0x130] sm:$0xff]
      %v423 = vld [vmem:[%s1 + $0x138] sm:$0xff]
      %v424 = vld [vmem:[%s1 + $0x140] sm:$0xff]
      %v425 = vld [vmem:[%s1 + $0x148] sm:$0xff]
      %v426 = vld [vmem:[%s1 + $0x150] sm:$0xff]
      %v427 = vld [vmem:[%s1 + $0x158] sm:$0xff]
      %v428 = vld [vmem:[%s1 + $0x160] sm:$0xff]
      %v429 = vld [vmem:[%s1 + $0x168] sm:$0xff]
      %v430 = vld [vmem:[%s1 + $0x170] sm:$0xff]
      %v431 = vld [vmem:[%s1 + $0x178] sm:$0xff]
      %v432 = vld [vmem:[%s1 + $0x180] sm:$0xff]
      %v433 = vld [vmem:[%s1 + $0x188] sm:$0xff]
      %v434 = vld [vmem:[%s1 + $0x190] sm:$0xff]
      %v435 = vld [vmem:[%s1 + $0x198] sm:$0xff]
      %v436 = vld [vmem:[%s1 + $0x1a0] sm:$0xff]
      %v437 = vld [vmem:[%s1 + $0x1a8] sm:$0xff]
      %v438 = vld [vmem:[%s1 + $0x1b0] sm:$0xff]
      %v439 = vld [vmem:[%s1 + $0x1b8] sm:$0xff]
      %v440 = vld [vmem:[%s1 + $0x1c0] sm:$0xff]
      %v441 = vld [vmem:[%s1 + $0x1c8] sm:$0xff]
      %v442 = vld [vmem:[%s1 + $0x1d0] sm:$0xff]
      %v443 = vld [vmem:[%s1 + $0x1d8] sm:$0xff]
      %v444 = vld [vmem:[%s1 + $0x1e0] sm:$0xff]
      %v445 = vld [vmem:[%s1 + $0x1e8] sm:$0xff]
      %v446 = vld [vmem:[%s1 + $0x1f0] sm:$0xff]
      %v447 = vld [vmem:[%s1 + $0x1f8] sm:$0xff]
      %v448 = vld [vmem:[%s1 + $0x200] sm:$0xff]
      %v449 = vld [vmem:[%s1 + $0x208] sm:$0xff]
      %v450 = vld [vmem:[%s1 + $0x210] sm:$0xff]
      %v451 = vld [vmem:[%s1 + $0x218] sm:$0xff]
      %v452 = vld [vmem:[%s1 + $0x220] sm:$0xff]
      %v453 = vld [vmem:[%s1 + $0x228] sm:$0xff]
      %v454 = vld [vmem:[%s1 + $0x230] sm:$0xff]
      %v455 = vld [vmem:[%s1 + $0x238] sm:$0xff]
      %v456 = vld [vmem:[%s0] sm:$0xf]
      %v457 = vld [vmem:[%s0 + $0x4] sm:$0xf]
      %v458 = vld [vmem:[%s0 + $0x8] sm:$0xf]
      %v459 = vld [vmem:[%s0 + $0xc] sm:$0xf]
      %v460 = vld [vmem:[%s0 + $0x10] sm:$0xf]
      %v461 = vld [vmem:[%s0 + $0x14] sm:$0xf]
      %v462 = vld [vmem:[%s0 + $0x18] sm:$0xf]
      %v463 = vld [vmem:[%s0 + $0x1c] sm:$0xf]
      %v464 = vld [vmem:[%s0 + $0x20] sm:$0xf]
      %v465 = vld [vmem:[%s0 + $0x24] sm:$0xf]
      %v466 = vld [vmem:[%s0 + $0x28] sm:$0xf]
      %v467 = vld [vmem:[%s0 + $0x2c] sm:$0xf]
      %v468 = vld [vmem:[%s0 + $0x30] sm:$0xf]
      %v469 = vld [vmem:[%s0 + $0x34] sm:$0xf]
      %v470 = vld [vmem:[%s0 + $0x38] sm:$0xf]
      %v471 = vld [vmem:[%s0 + $0x3c] sm:$0xf]
      %v472 = vld [vmem:[%s0 + $0x40] sm:$0xf]
      %v473 = vld [vmem:[%s0 + $0x44] sm:$0xf]
      %v474 = vld [vmem:[%s2] sm:$0xff]
      %v475 = vld [vmem:[%s2 + $0x8] sm:$0xff]
      %v476 = vld [vmem:[%s2 + $0x10] sm:$0xff]
      %v477 = vld [vmem:[%s2 + $0x18] sm:$0xff]
      %v478 = vld [vmem:[%s2 + $0x20] sm:$0xff]
      %v479 = vld [vmem:[%s2 + $0x28] sm:$0xff]
      %v480 = vld [vmem:[%s2 + $0x30] sm:$0xff]
      %v481 = vld [vmem:[%s2 + $0x38] sm:$0xff]
      %v482 = vld [vmem:[%s2 + $0x40] sm:$0xff]
      %v483 = vld [vmem:[%s2 + $0x48] sm:$0xff]
      %v484 = vld [vmem:[%s2 + $0x50] sm:$0xff]
      %v485 = vld [vmem:[%s2 + $0x58] sm:$0xff]
      %v486 = vld [vmem:[%s2 + $0x60] sm:$0xff]
      %v487 = vld [vmem:[%s2 + $0x68] sm:$0xff]
      %v488 = vld [vmem:[%s2 + $0x70] sm:$0xff]
      %v489 = vld [vmem:[%s2 + $0x78] sm:$0xff]
      %v490 = vld [vmem:[%s2 + $0x80] sm:$0xff]
      %v491 = vld [vmem:[%s2 + $0x88] sm:$0xff]
      %v492 = vld [vmem:[%s2 + $0x90] sm:$0xff]
      %v493 = vld [vmem:[%s2 + $0x98] sm:$0xff]
      %v494 = vld [vmem:[%s2 + $0xa0] sm:$0xff]
      %v495 = vld [vmem:[%s2 + $0xa8] sm:$0xff]
      %v496 = vld [vmem:[%s2 + $0xb0] sm:$0xff]
      %v497 = vld [vmem:[%s2 + $0xb8] sm:$0xff]
      %v498 = vld [vmem:[%s2 + $0xc0] sm:$0xff]
      %v499 = vld [vmem:[%s2 + $0xc8] sm:$0xff]
      %v500 = vld [vmem:[%s2 + $0xd0] sm:$0xff]
      %v501 = vld [vmem:[%s2 + $0xd8] sm:$0xff]
      %v502 = vld [vmem:[%s2 + $0xe0] sm:$0xff]
      %v503 = vld [vmem:[%s2 + $0xe8] sm:$0xff]
      %v504 = vld [vmem:[%s2 + $0xf0] sm:$0xff]
      %v505 = vld [vmem:[%s2 + $0xf8] sm:$0xff]
      %v506 = vld [vmem:[%s2 + $0x100] sm:$0xff]
      %v507 = vld [vmem:[%s2 + $0x108] sm:$0xff]
      %v508 = vld [vmem:[%s2 + $0x110] sm:$0xff]
      %v509 = vld [vmem:[%s2 + $0x118] sm:$0xff]
      %v510 = vld [vmem:[%s2 + $0x120] sm:$0xff]
      %v511 = vld [vmem:[%s2 + $0x128] sm:$0xff]
      %v512 = vld [vmem:[%s2 + $0x130] sm:$0xff]
      %v513 = vld [vmem:[%s2 + $0x138] sm:$0xff]
      %v514 = vld [vmem:[%s2 + $0x140] sm:$0xff]
      %v515 = vld [vmem:[%s2 + $0x148] sm:$0xff]
      %v516 = vld [vmem:[%s2 + $0x150] sm:$0xff]
      %v517 = vld [vmem:[%s2 + $0x158] sm:$0xff]
      %v518 = vld [vmem:[%s2 + $0x160] sm:$0xff]
      %v519 = vld [vmem:[%s2 + $0x168] sm:$0xff]
      %v520 = vld [vmem:[%s2 + $0x170] sm:$0xff]
      %v521 = vld [vmem:[%s2 + $0x178] sm:$0xff]
      %v522 = vld [vmem:[%s2 + $0x180] sm:$0xff]
      %v523 = vld [vmem:[%s2 + $0x188] sm:$0xff]
      %v524 = vld [vmem:[%s2 + $0x190] sm:$0xff]
      %v525 = vld [vmem:[%s2 + $0x198] sm:$0xff]
      %v526 = vld [vmem:[%s2 + $0x1a0] sm:$0xff]
      %v527 = vld [vmem:[%s2 + $0x1a8] sm:$0xff]
      %v528 = vld [vmem:[%s2 + $0x1b0] sm:$0xff]
      %v529 = vld [vmem:[%s2 + $0x1b8] sm:$0xff]
      %v530 = vld [vmem:[%s2 + $0x1c0] sm:$0xff]
      %v531 = vld [vmem:[%s2 + $0x1c8] sm:$0xff]
      %v532 = vld [vmem:[%s2 + $0x1d0] sm:$0xff]
      %v533 = vld [vmem:[%s2 + $0x1d8] sm:$0xff]
      %v534 = vld [vmem:[%s2 + $0x1e0] sm:$0xff]
      %v535 = vld [vmem:[%s2 + $0x1e8] sm:$0xff]
      %v536 = vld [vmem:[%s2 + $0x1f0] sm:$0xff]
      %v537 = vld [vmem:[%s2 + $0x1f8] sm:$0xff]
      %v538 = vld [vmem:[%s2 + $0x200] sm:$0xff]
      %v539 = vld [vmem:[%s2 + $0x208] sm:$0xff]
      %v540 = vld [vmem:[%s2 + $0x210] sm:$0xff]
      %v541 = vld [vmem:[%s2 + $0x218] sm:$0xff]
      %v542 = vld [vmem:[%s2 + $0x220] sm:$0xff]
      %v543 = vld [vmem:[%s2 + $0x228] sm:$0xff]
      %v544 = vld [vmem:[%s2 + $0x230] sm:$0xff]
      %v545 = vld [vmem:[%s2 + $0x238] sm:$0xff]
      %v618 = vunpack.c.l.b16 %v384
      %v619 = vunpack.c.h.b16 %v384
      %v620 = vunpack.c.l.b16 %v385
      %v621 = vunpack.c.h.b16 %v385
      %v622 = vunpack.c.l.b16 %v386
      %v623 = vunpack.c.h.b16 %v386
      %v624 = vunpack.c.l.b16 %v387
      %v625 = vunpack.c.h.b16 %v387
      %v626 = vunpack.c.l.b16 %v388
      %v627 = vunpack.c.h.b16 %v388
      %v628 = vunpack.c.l.b16 %v389
      %v629 = vunpack.c.h.b16 %v389
      %v630 = vunpack.c.l.b16 %v390
      %v631 = vunpack.c.h.b16 %v390
      %v632 = vunpack.c.l.b16 %v391
      %v633 = vunpack.c.h.b16 %v391
      %v634 = vunpack.c.l.b16 %v392
      %v635 = vunpack.c.h.b16 %v392
      %v636 = vunpack.c.l.b16 %v393
      %v637 = vunpack.c.h.b16 %v393
      %v638 = vunpack.c.l.b16 %v394
      %v639 = vunpack.c.h.b16 %v394
      %v640 = vunpack.c.l.b16 %v395
      %v641 = vunpack.c.h.b16 %v395
      %v642 = vunpack.c.l.b16 %v396
      %v643 = vunpack.c.h.b16 %v396
      %v644 = vunpack.c.l.b16 %v397
      %v645 = vunpack.c.h.b16 %v397
      %v646 = vunpack.c.l.b16 %v398
      %v647 = vunpack.c.h.b16 %v398
      %v648 = vunpack.c.l.b16 %v399
      %v649 = vunpack.c.h.b16 %v399
      %v650 = vunpack.c.l.b16 %v400
      %v651 = vunpack.c.h.b16 %v400
      %v652 = vunpack.c.l.b16 %v401
      %v653 = vunpack.c.h.b16 %v401
      %v654 = vunpack.c.l.b16 %v402
      %v655 = vunpack.c.h.b16 %v402
      %v656 = vunpack.c.l.b16 %v403
      %v657 = vunpack.c.h.b16 %v403
      %v658 = vunpack.c.l.b16 %v404
      %v659 = vunpack.c.h.b16 %v404
      %v660 = vunpack.c.l.b16 %v405
      %v661 = vunpack.c.h.b16 %v405
      %v662 = vunpack.c.l.b16 %v406
      %v663 = vunpack.c.h.b16 %v406
      %v664 = vunpack.c.l.b16 %v407
      %v665 = vunpack.c.h.b16 %v407
      %v666 = vunpack.c.l.b16 %v408
      %v667 = vunpack.c.h.b16 %v408
      %v668 = vunpack.c.l.b16 %v409
      %v669 = vunpack.c.h.b16 %v409
      %v670 = vunpack.c.l.b16 %v410
      %v671 = vunpack.c.h.b16 %v410
      %v672 = vunpack.c.l.b16 %v411
      %v673 = vunpack.c.h.b16 %v411
      %v674 = vunpack.c.l.b16 %v412
      %v675 = vunpack.c.h.b16 %v412
      %v676 = vunpack.c.l.b16 %v413
      %v677 = vunpack.c.h.b16 %v413
      %v678 = vunpack.c.l.b16 %v414
      %v679 = vunpack.c.h.b16 %v414
      %v680 = vunpack.c.l.b16 %v415
      %v681 = vunpack.c.h.b16 %v415
      %v682 = vunpack.c.l.b16 %v416
      %v683 = vunpack.c.h.b16 %v416
      %v684 = vunpack.c.l.b16 %v417
      %v685 = vunpack.c.h.b16 %v417
      %v686 = vunpack.c.l.b16 %v418
      %v687 = vunpack.c.h.b16 %v418
      %v688 = vunpack.c.l.b16 %v419
      %v689 = vunpack.c.h.b16 %v419
      %v690 = vunpack.c.l.b16 %v420
      %v691 = vunpack.c.h.b16 %v420
      %v692 = vunpack.c.l.b16 %v421
      %v693 = vunpack.c.h.b16 %v421
      %v694 = vunpack.c.l.b16 %v422
      %v695 = vunpack.c.h.b16 %v422
      %v696 = vunpack.c.l.b16 %v423
      %v697 = vunpack.c.h.b16 %v423
      %v698 = vunpack.c.l.b16 %v424
      %v699 = vunpack.c.h.b16 %v424
      %v700 = vunpack.c.l.b16 %v425
      %v701 = vunpack.c.h.b16 %v425
      %v702 = vunpack.c.l.b16 %v426
      %v703 = vunpack.c.h.b16 %v426
      %v704 = vunpack.c.l.b16 %v427
      %v705 = vunpack.c.h.b16 %v427
      %v706 = vunpack.c.l.b16 %v428
      %v707 = vunpack.c.h.b16 %v428
      %v708 = vunpack.c.l.b16 %v429
      %v709 = vunpack.c.h.b16 %v429
      %v710 = vunpack.c.l.b16 %v430
      %v711 = vunpack.c.h.b16 %v430
      %v712 = vunpack.c.l.b16 %v431
      %v713 = vunpack.c.h.b16 %v431
      %v714 = vunpack.c.l.b16 %v432
      %v715 = vunpack.c.h.b16 %v432
      %v716 = vunpack.c.l.b16 %v433
      %v717 = vunpack.c.h.b16 %v433
      %v718 = vunpack.c.l.b16 %v434
      %v719 = vunpack.c.h.b16 %v434
      %v720 = vunpack.c.l.b16 %v435
      %v721 = vunpack.c.h.b16 %v435
      %v722 = vunpack.c.l.b16 %v436
      %v723 = vunpack.c.h.b16 %v436
      %v724 = vunpack.c.l.b16 %v437
      %v725 = vunpack.c.h.b16 %v437
      %v726 = vunpack.c.l.b16 %v438
      %v727 = vunpack.c.h.b16 %v438
      %v728 = vunpack.c.l.b16 %v439
      %v729 = vunpack.c.h.b16 %v439
      %v730 = vunpack.c.l.b16 %v440
      %v731 = vunpack.c.h.b16 %v440
      %v732 = vunpack.c.l.b16 %v441
      %v733 = vunpack.c.h.b16 %v441
      %v734 = vunpack.c.l.b16 %v442
      %v735 = vunpack.c.h.b16 %v442
      %v736 = vunpack.c.l.b16 %v443
      %v737 = vunpack.c.h.b16 %v443
      %v738 = vunpack.c.l.b16 %v444
      %v739 = vunpack.c.h.b16 %v444
      %v740 = vunpack.c.l.b16 %v445
      %v741 = vunpack.c.h.b16 %v445
      %v742 = vunpack.c.l.b16 %v446
      %v743 = vunpack.c.h.b16 %v446
      %v744 = vunpack.c.l.b16 %v447
      %v745 = vunpack.c.h.b16 %v447
      %v746 = vunpack.c.l.b16 %v448
      %v747 = vunpack.c.h.b16 %v448
      %v748 = vunpack.c.l.b16 %v449
      %v749 = vunpack.c.h.b16 %v449
      %v750 = vunpack.c.l.b16 %v450
      %v751 = vunpack.c.h.b16 %v450
      %v752 = vunpack.c.l.b16 %v451
      %v753 = vunpack.c.h.b16 %v451
      %v754 = vunpack.c.l.b16 %v452
      %v755 = vunpack.c.h.b16 %v452
      %v756 = vunpack.c.l.b16 %v453
      %v757 = vunpack.c.h.b16 %v453
      %v758 = vunpack.c.l.b16 %v454
      %v759 = vunpack.c.h.b16 %v454
      %v760 = vunpack.c.l.b16 %v455
      %v761 = vunpack.c.h.b16 %v455
      %v762 = vpack.c.b16 %v620, %v618
      %v763 = vpack.c.b16 %v621, %v619
      %v764 = vpack.c.b16 %v624, %v622
      %v765 = vpack.c.b16 %v625, %v623
      %v766 = vpack.c.b16 %v628, %v626
      %v767 = vpack.c.b16 %v629, %v627
      %v768 = vpack.c.b16 %v632, %v630
      %v769 = vpack.c.b16 %v633, %v631
      %v770 = vpack.c.b16 %v636, %v634
      %v771 = vpack.c.b16 %v637, %v635
      %v772 = vpack.c.b16 %v640, %v638
      %v773 = vpack.c.b16 %v641, %v639
      %v774 = vpack.c.b16 %v644, %v642
      %v775 = vpack.c.b16 %v645, %v643
      %v776 = vpack.c.b16 %v648, %v646
      %v777 = vpack.c.b16 %v649, %v647
      %v778 = vpack.c.b16 %v652, %v650
      %v779 = vpack.c.b16 %v653, %v651
      %v780 = vpack.c.b16 %v656, %v654
      %v781 = vpack.c.b16 %v657, %v655
      %v782 = vpack.c.b16 %v660, %v658
      %v783 = vpack.c.b16 %v661, %v659
      %v784 = vpack.c.b16 %v664, %v662
      %v785 = vpack.c.b16 %v665, %v663
      %v786 = vpack.c.b16 %v668, %v666
      %v787 = vpack.c.b16 %v669, %v667
      %v788 = vpack.c.b16 %v672, %v670
      %v789 = vpack.c.b16 %v673, %v671
      %v790 = vpack.c.b16 %v676, %v674
      %v791 = vpack.c.b16 %v677, %v675
      %v792 = vpack.c.b16 %v680, %v678
      %v793 = vpack.c.b16 %v681, %v679
      %v794 = vpack.c.b16 %v684, %v682
      %v795 = vpack.c.b16 %v685, %v683
      %v796 = vpack.c.b16 %v688, %v686
      %v797 = vpack.c.b16 %v689, %v687
      %v798 = vpack.c.b16 %v692, %v690
      %v799 = vpack.c.b16 %v693, %v691
      %v800 = vpack.c.b16 %v696, %v694
      %v801 = vpack.c.b16 %v697, %v695
      %v802 = vpack.c.b16 %v700, %v698
      %v803 = vpack.c.b16 %v701, %v699
      %v804 = vpack.c.b16 %v704, %v702
      %v805 = vpack.c.b16 %v705, %v703
      %v806 = vpack.c.b16 %v708, %v706
      %v807 = vpack.c.b16 %v709, %v707
      %v808 = vpack.c.b16 %v712, %v710
      %v809 = vpack.c.b16 %v713, %v711
      %v810 = vpack.c.b16 %v716, %v714
      %v811 = vpack.c.b16 %v717, %v715
      %v812 = vpack.c.b16 %v720, %v718
      %v813 = vpack.c.b16 %v721, %v719
      %v814 = vpack.c.b16 %v724, %v722
      %v815 = vpack.c.b16 %v725, %v723
      %v816 = vpack.c.b16 %v728, %v726
      %v817 = vpack.c.b16 %v729, %v727
      %v818 = vpack.c.b16 %v732, %v730
      %v819 = vpack.c.b16 %v733, %v731
      %v820 = vpack.c.b16 %v736, %v734
      %v821 = vpack.c.b16 %v737, %v735
      %v822 = vpack.c.b16 %v740, %v738
      %v823 = vpack.c.b16 %v741, %v739
      %v824 = vpack.c.b16 %v744, %v742
      %v825 = vpack.c.b16 %v745, %v743
      %v826 = vpack.c.b16 %v748, %v746
      %v827 = vpack.c.b16 %v749, %v747
      %v828 = vpack.c.b16 %v752, %v750
      %v829 = vpack.c.b16 %v753, %v751
      %v830 = vpack.c.b16 %v756, %v754
      %v831 = vpack.c.b16 %v757, %v755
      %v832 = vpack.c.b16 %v760, %v758
      %v833 = vpack.c.b16 %v761, %v759
      %v888 = vunpack.c.l.b16 %v456
      %v889 = vunpack.c.l.b16 %v457
      %v890 = vunpack.c.l.b16 %v458
      %v891 = vunpack.c.l.b16 %v459
      %v892 = vunpack.c.l.b16 %v460
      %v893 = vunpack.c.l.b16 %v461
      %v894 = vunpack.c.l.b16 %v462
      %v895 = vunpack.c.l.b16 %v463
      %v896 = vunpack.c.l.b16 %v464
      %v897 = vunpack.c.l.b16 %v465
      %v898 = vunpack.c.l.b16 %v466
      %v899 = vunpack.c.l.b16 %v467
      %v900 = vunpack.c.l.b16 %v468
      %v901 = vunpack.c.l.b16 %v469
      %v902 = vunpack.c.l.b16 %v470
      %v903 = vunpack.c.l.b16 %v471
      %v904 = vunpack.c.l.b16 %v472
      %v905 = vunpack.c.l.b16 %v473
      %v906 = vpack.c.b16 %v889, %v888
      %v907 = vpack.c.b16 %v891, %v890
      %v908 = vpack.c.b16 %v893, %v892
      %v909 = vpack.c.b16 %v895, %v894
      %v910 = vpack.c.b16 %v897, %v896
      %v911 = vpack.c.b16 %v899, %v898
      %v912 = vpack.c.b16 %v901, %v900
      %v913 = vpack.c.b16 %v903, %v902
      %v914 = vpack.c.b16 %v905, %v904
      %vm924 = vcmask 130048
      %v926 = vsel %vm924, %v763, 0
      %v929 = vsel %vm924, %v765, 0
      %v932 = vsel %vm924, %v767, 0
      %v935 = vsel %vm924, %v769, 0
      %v938 = vsel %vm924, %v771, 0
      %v941 = vsel %vm924, %v773, 0
      %v944 = vsel %vm924, %v775, 0
      %v947 = vsel %vm924, %v777, 0
      %v950 = vsel %vm924, %v779, 0
      %v953 = vsel %vm924, %v781, 0
      %v956 = vsel %vm924, %v783, 0
      %v959 = vsel %vm924, %v785, 0
      %v962 = vsel %vm924, %v787, 0
      %v965 = vsel %vm924, %v789, 0
      %v968 = vsel %vm924, %v791, 0
      %v971 = vsel %vm924, %v793, 0
      %v974 = vsel %vm924, %v795, 0
      %v977 = vsel %vm924, %v797, 0
      %v980 = vsel %vm924, %v799, 0
      %v983 = vsel %vm924, %v801, 0
      %v986 = vsel %vm924, %v803, 0
      %v989 = vsel %vm924, %v805, 0
      %v992 = vsel %vm924, %v807, 0
      %v995 = vsel %vm924, %v809, 0
      %v998 = vsel %vm924, %v811, 0
      %v1001 = vsel %vm924, %v813, 0
      %v1004 = vsel %vm924, %v815, 0
      %v1007 = vsel %vm924, %v817, 0
      %v1010 = vsel %vm924, %v819, 0
      %v1013 = vsel %vm924, %v821, 0
      %v1016 = vsel %vm924, %v823, 0
      %v1019 = vsel %vm924, %v825, 0
      %v1022 = vsel %vm924, %v827, 0
      %v1025 = vsel %vm924, %v829, 0
      %v1028 = vsel %vm924, %v831, 0
      %v1031 = vsel %vm924, %v833, 0
      %1033 = vmatprep.subr.bf16.mxu0 0
      %1034 = vmatpush1.bf16.msra.mxu0 %v906
      %1035 = vmatprep.subr.bf16.mxu0 0
      %1036 = vmatpush1.bf16.msra.mxu0 %v907
      %1037 = vmatprep.subr.bf16.mxu0 0
      %1038 = vmatpush1.bf16.msra.mxu0 %v908
      %1039 = vmatprep.subr.bf16.mxu0 0
      %1040 = vmatpush1.bf16.msra.mxu0 %v909
      %1041 = vmatprep.subr.bf16.mxu0 0
      %1042 = vmatpush1.bf16.msra.mxu0 %v910
      %1043 = vmatprep.subr.bf16.mxu0 0
      %1044 = vmatpush1.bf16.msra.mxu0 %v911
      %1045 = vmatprep.subr.bf16.mxu0 0
      %1046 = vmatpush1.bf16.msra.mxu0 %v912
      %1047 = vmatprep.subr.bf16.mxu0 0
      %1048 = vmatpush1.bf16.msra.mxu0 %v913
      %1049 = vmatprep.subr.bf16.mxu0 0
      %1050 = vmatpush1.bf16.msra.mxu0 %v914
      %1051 = vmatprep.subr.bf16.mxu0 0
      %1052 = vmatpush1.bf16.msra.mxu0 0
      %1053 = vmatprep.subr.bf16.mxu0 0
      %1054 = vmatpush1.bf16.msra.mxu0 0
      %1055 = vmatprep.subr.bf16.mxu0 0
      %1056 = vmatpush1.bf16.msra.mxu0 0
      %1057 = vmatprep.subr.bf16.mxu0 0
      %1058 = vmatpush1.bf16.msra.mxu0 0
      %1059 = vmatprep.subr.bf16.mxu0 0
      %1060 = vmatpush1.bf16.msra.mxu0 0
      %1061 = vmatprep.subr.bf16.mxu0 0
      %1062 = vmatpush1.bf16.msra.mxu0 0
      %1063 = vmatprep.subr.bf16.mxu0 0
      %1064 = vmatpush1.bf16.msra.mxu0 0
      %1065 = vmatprep.mubr.bf16.mxu0 %v926
      %1066 = vmatmul.mubr.bf16.gmra.mrb[0].mxu0 %v762
      %v1067 = vpop.f32.mrb[0].mxu0
      %v1068 = vadd.f32 %v474, %v1067
      %v1069 = vpop.f32.mrb[0].mxu0
      %v1070 = vpop.f32.mrb[0].mxu0
      %v1071 = vadd.f32 %v475, %v1070
      %v1072 = vpop.f32.mrb[0].mxu0
      %1073 = vmatprep.mubr.bf16.mxu0 %v929
      %1074 = vmatmul.mubr.bf16.gmra.mrb[0].mxu0 %v764
      %v1075 = vpop.f32.mrb[0].mxu0
      %v1076 = vadd.f32 %v476, %v1075
      %v1077 = vpop.f32.mrb[0].mxu0
      %v1078 = vpop.f32.mrb[0].mxu0
      %v1079 = vadd.f32 %v477, %v1078
      %v1080 = vpop.f32.mrb[0].mxu0
      %1081 = vmatprep.mubr.bf16.mxu0 %v932
      %1082 = vmatmul.mubr.bf16.gmra.mrb[0].mxu0 %v766
      %v1083 = vpop.f32.mrb[0].mxu0
      %v1084 = vadd.f32 %v478, %v1083
      %v1085 = vpop.f32.mrb[0].mxu0
      %v1086 = vpop.f32.mrb[0].mxu0
      %v1087 = vadd.f32 %v479, %v1086
      %v1088 = vpop.f32.mrb[0].mxu0
      %1089 = vmatprep.mubr.bf16.mxu0 %v935
      %1090 = vmatmul.mubr.bf16.gmra.mrb[0].mxu0 %v768
      %v1091 = vpop.f32.mrb[0].mxu0
      %v1092 = vadd.f32 %v480, %v1091
      %v1093 = vpop.f32.mrb[0].mxu0
      %v1094 = vpop.f32.mrb[0].mxu0
      %v1095 = vadd.f32 %v481, %v1094
      %v1096 = vpop.f32.mrb[0].mxu0
      %1097 = vmatprep.mubr.bf16.mxu0 %v938
      %1098 = vmatmul.mubr.bf16.gmra.mrb[0].mxu0 %v770
      %v1099 = vpop.f32.mrb[0].mxu0
      %v1100 = vadd.f32 %v482, %v1099
      %v1101 = vpop.f32.mrb[0].mxu0
      %v1102 = vpop.f32.mrb[0].mxu0
      %v1103 = vadd.f32 %v483, %v1102
      %v1104 = vpop.f32.mrb[0].mxu0
      %1105 = vmatprep.mubr.bf16.mxu0 %v941
      %1106 = vmatmul.mubr.bf16.gmra.mrb[0].mxu0 %v772
      %v1107 = vpop.f32.mrb[0].mxu0
      %v1108 = vadd.f32 %v484, %v1107
      %v1109 = vpop.f32.mrb[0].mxu0
      %v1110 = vpop.f32.mrb[0].mxu0
      %v1111 = vadd.f32 %v485, %v1110
      %v1112 = vpop.f32.mrb[0].mxu0
      %1113 = vmatprep.mubr.bf16.mxu0 %v944
      %1114 = vmatmul.mubr.bf16.gmra.mrb[0].mxu0 %v774
      %v1115 = vpop.f32.mrb[0].mxu0
      %v1116 = vadd.f32 %v486, %v1115
      %v1117 = vpop.f32.mrb[0].mxu0
      %v1118 = vpop.f32.mrb[0].mxu0
      %v1119 = vadd.f32 %v487, %v1118
      %v1120 = vpop.f32.mrb[0].mxu0
      %1121 = vmatprep.mubr.bf16.mxu0 %v947
      %1122 = vmatmul.mubr.bf16.gmra.mrb[0].mxu0 %v776
      %v1123 = vpop.f32.mrb[0].mxu0
      %v1124 = vadd.f32 %v488, %v1123
      %v1125 = vpop.f32.mrb[0].mxu0
      %v1126 = vpop.f32.mrb[0].mxu0
      %v1127 = vadd.f32 %v489, %v1126
      %v1128 = vpop.f32.mrb[0].mxu0
      %1129 = vmatprep.mubr.bf16.mxu0 %v950
      %1130 = vmatmul.mubr.bf16.gmra.mrb[0].mxu0 %v778
      %v1131 = vpop.f32.mrb[0].mxu0
      %v1132 = vadd.f32 %v490, %v1131
      %v1133 = vpop.f32.mrb[0].mxu0
      %v1134 = vpop.f32.mrb[0].mxu0
      %v1135 = vadd.f32 %v491, %v1134
      %v1136 = vpop.f32.mrb[0].mxu0
      %1137 = vmatprep.mubr.bf16.mxu0 %v953
      %1138 = vmatmul.mubr.bf16.gmra.mrb[0].mxu0 %v780
      %v1139 = vpop.f32.mrb[0].mxu0
      %v1140 = vadd.f32 %v492, %v1139
      %v1141 = vpop.f32.mrb[0].mxu0
      %v1142 = vpop.f32.mrb[0].mxu0
      %v1143 = vadd.f32 %v493, %v1142
      %v1144 = vpop.f32.mrb[0].mxu0
      %1145 = vmatprep.mubr.bf16.mxu0 %v956
      %1146 = vmatmul.mubr.bf16.gmra.mrb[0].mxu0 %v782
      %v1147 = vpop.f32.mrb[0].mxu0
      %v1148 = vadd.f32 %v494, %v1147
      %v1149 = vpop.f32.mrb[0].mxu0
      %v1150 = vpop.f32.mrb[0].mxu0
      %v1151 = vadd.f32 %v495, %v1150
      %v1152 = vpop.f32.mrb[0].mxu0
      %1153 = vmatprep.mubr.bf16.mxu0 %v959
      %1154 = vmatmul.mubr.bf16.gmra.mrb[0].mxu0 %v784
      %v1155 = vpop.f32.mrb[0].mxu0
      %v1156 = vadd.f32 %v496, %v1155
      %v1157 = vpop.f32.mrb[0].mxu0
      %v1158 = vpop.f32.mrb[0].mxu0
      %v1159 = vadd.f32 %v497, %v1158
      %v1160 = vpop.f32.mrb[0].mxu0
      %1161 = vmatprep.mubr.bf16.mxu0 %v962
      %1162 = vmatmul.mubr.bf16.gmra.mrb[0].mxu0 %v786
      %v1163 = vpop.f32.mrb[0].mxu0
      %v1164 = vadd.f32 %v498, %v1163
      %v1165 = vpop.f32.mrb[0].mxu0
      %v1166 = vpop.f32.mrb[0].mxu0
      %v1167 = vadd.f32 %v499, %v1166
      %v1168 = vpop.f32.mrb[0].mxu0
      %1169 = vmatprep.mubr.bf16.mxu0 %v965
      %1170 = vmatmul.mubr.bf16.gmra.mrb[0].mxu0 %v788
      %v1171 = vpop.f32.mrb[0].mxu0
      %v1172 = vadd.f32 %v500, %v1171
      %v1173 = vpop.f32.mrb[0].mxu0
      %v1174 = vpop.f32.mrb[0].mxu0
      %v1175 = vadd.f32 %v501, %v1174
      %v1176 = vpop.f32.mrb[0].mxu0
      %1177 = vmatprep.mubr.bf16.mxu0 %v968
      %1178 = vmatmul.mubr.bf16.gmra.mrb[0].mxu0 %v790
      %v1179 = vpop.f32.mrb[0].mxu0
      %v1180 = vadd.f32 %v502, %v1179
      %v1181 = vpop.f32.mrb[0].mxu0
      %v1182 = vpop.f32.mrb[0].mxu0
      %v1183 = vadd.f32 %v503, %v1182
      %v1184 = vpop.f32.mrb[0].mxu0
      %1185 = vmatprep.mubr.bf16.mxu0 %v971
      %1186 = vmatmul.mubr.bf16.gmra.mrb[0].mxu0 %v792
      %v1187 = vpop.f32.mrb[0].mxu0
      %v1188 = vadd.f32 %v504, %v1187
      %v1189 = vpop.f32.mrb[0].mxu0
      %v1190 = vpop.f32.mrb[0].mxu0
      %v1191 = vadd.f32 %v505, %v1190
      %v1192 = vpop.f32.mrb[0].mxu0
      %1193 = vmatprep.mubr.bf16.mxu0 %v974
      %1194 = vmatmul.mubr.bf16.gmra.mrb[0].mxu0 %v794
      %v1195 = vpop.f32.mrb[0].mxu0
      %v1196 = vadd.f32 %v506, %v1195
      %v1197 = vpop.f32.mrb[0].mxu0
      %v1198 = vpop.f32.mrb[0].mxu0
      %v1199 = vadd.f32 %v507, %v1198
      %v1200 = vpop.f32.mrb[0].mxu0
      %1201 = vmatprep.mubr.bf16.mxu0 %v977
      %1202 = vmatmul.mubr.bf16.gmra.mrb[0].mxu0 %v796
      %v1203 = vpop.f32.mrb[0].mxu0
      %v1204 = vadd.f32 %v508, %v1203
      %v1205 = vpop.f32.mrb[0].mxu0
      %v1206 = vpop.f32.mrb[0].mxu0
      %v1207 = vadd.f32 %v509, %v1206
      %v1208 = vpop.f32.mrb[0].mxu0
      %1209 = vmatprep.mubr.bf16.mxu0 %v980
      %1210 = vmatmul.mubr.bf16.gmra.mrb[0].mxu0 %v798
      %v1211 = vpop.f32.mrb[0].mxu0
      %v1212 = vadd.f32 %v510, %v1211
      %v1213 = vpop.f32.mrb[0].mxu0
      %v1214 = vpop.f32.mrb[0].mxu0
      %v1215 = vadd.f32 %v511, %v1214
      %v1216 = vpop.f32.mrb[0].mxu0
      %1217 = vmatprep.mubr.bf16.mxu0 %v983
      %1218 = vmatmul.mubr.bf16.gmra.mrb[0].mxu0 %v800
      %v1219 = vpop.f32.mrb[0].mxu0
      %v1220 = vadd.f32 %v512, %v1219
      %v1221 = vpop.f32.mrb[0].mxu0
      %v1222 = vpop.f32.mrb[0].mxu0
      %v1223 = vadd.f32 %v513, %v1222
      %v1224 = vpop.f32.mrb[0].mxu0
      %1225 = vmatprep.mubr.bf16.mxu0 %v986
      %1226 = vmatmul.mubr.bf16.gmra.mrb[0].mxu0 %v802
      %v1227 = vpop.f32.mrb[0].mxu0
      %v1228 = vadd.f32 %v514, %v1227
      %v1229 = vpop.f32.mrb[0].mxu0
      %v1230 = vpop.f32.mrb[0].mxu0
      %v1231 = vadd.f32 %v515, %v1230
      %v1232 = vpop.f32.mrb[0].mxu0
      %1233 = vmatprep.mubr.bf16.mxu0 %v989
      %1234 = vmatmul.mubr.bf16.gmra.mrb[0].mxu0 %v804
      %v1235 = vpop.f32.mrb[0].mxu0
      %v1236 = vadd.f32 %v516, %v1235
      %v1237 = vpop.f32.mrb[0].mxu0
      %v1238 = vpop.f32.mrb[0].mxu0
      %v1239 = vadd.f32 %v517, %v1238
      %v1240 = vpop.f32.mrb[0].mxu0
      %1241 = vmatprep.mubr.bf16.mxu0 %v992
      %1242 = vmatmul.mubr.bf16.gmra.mrb[0].mxu0 %v806
      %v1243 = vpop.f32.mrb[0].mxu0
      %v1244 = vadd.f32 %v518, %v1243
      %v1245 = vpop.f32.mrb[0].mxu0
      %v1246 = vpop.f32.mrb[0].mxu0
      %v1247 = vadd.f32 %v519, %v1246
      %v1248 = vpop.f32.mrb[0].mxu0
      %1249 = vmatprep.mubr.bf16.mxu0 %v995
      %1250 = vmatmul.mubr.bf16.gmra.mrb[0].mxu0 %v808
      %v1251 = vpop.f32.mrb[0].mxu0
      %v1252 = vadd.f32 %v520, %v1251
      %v1253 = vpop.f32.mrb[0].mxu0
      %v1254 = vpop.f32.mrb[0].mxu0
      %v1255 = vadd.f32 %v521, %v1254
      %v1256 = vpop.f32.mrb[0].mxu0
      %1257 = vmatprep.mubr.bf16.mxu0 %v998
      %1258 = vmatmul.mubr.bf16.gmra.mrb[0].mxu0 %v810
      %v1259 = vpop.f32.mrb[0].mxu0
      %v1260 = vadd.f32 %v522, %v1259
      %v1261 = vpop.f32.mrb[0].mxu0
      %v1262 = vpop.f32.mrb[0].mxu0
      %v1263 = vadd.f32 %v523, %v1262
      %v1264 = vpop.f32.mrb[0].mxu0
      %1265 = vmatprep.mubr.bf16.mxu0 %v1001
      %1266 = vmatmul.mubr.bf16.gmra.mrb[0].mxu0 %v812
      %v1267 = vpop.f32.mrb[0].mxu0
      %v1268 = vadd.f32 %v524, %v1267
      %v1269 = vpop.f32.mrb[0].mxu0
      %v1270 = vpop.f32.mrb[0].mxu0
      %v1271 = vadd.f32 %v525, %v1270
      %v1272 = vpop.f32.mrb[0].mxu0
      %1273 = vmatprep.mubr.bf16.mxu0 %v1004
      %1274 = vmatmul.mubr.bf16.gmra.mrb[0].mxu0 %v814
      %v1275 = vpop.f32.mrb[0].mxu0
      %v1276 = vadd.f32 %v526, %v1275
      %v1277 = vpop.f32.mrb[0].mxu0
      %v1278 = vpop.f32.mrb[0].mxu0
      %v1279 = vadd.f32 %v527, %v1278
      %v1280 = vpop.f32.mrb[0].mxu0
      %1281 = vmatprep.mubr.bf16.mxu0 %v1007
      %1282 = vmatmul.mubr.bf16.gmra.mrb[0].mxu0 %v816
      %v1283 = vpop.f32.mrb[0].mxu0
      %v1284 = vadd.f32 %v528, %v1283
      %v1285 = vpop.f32.mrb[0].mxu0
      %v1286 = vpop.f32.mrb[0].mxu0
      %v1287 = vadd.f32 %v529, %v1286
      %v1288 = vpop.f32.mrb[0].mxu0
      %1289 = vmatprep.mubr.bf16.mxu0 %v1010
      %1290 = vmatmul.mubr.bf16.gmra.mrb[0].mxu0 %v818
      %v1291 = vpop.f32.mrb[0].mxu0
      %v1292 = vadd.f32 %v530, %v1291
      %v1293 = vpop.f32.mrb[0].mxu0
      %v1294 = vpop.f32.mrb[0].mxu0
      %v1295 = vadd.f32 %v531, %v1294
      %v1296 = vpop.f32.mrb[0].mxu0
      %1297 = vmatprep.mubr.bf16.mxu0 %v1013
      %1298 = vmatmul.mubr.bf16.gmra.mrb[0].mxu0 %v820
      %v1299 = vpop.f32.mrb[0].mxu0
      %v1300 = vadd.f32 %v532, %v1299
      %v1301 = vpop.f32.mrb[0].mxu0
      %v1302 = vpop.f32.mrb[0].mxu0
      %v1303 = vadd.f32 %v533, %v1302
      %v1304 = vpop.f32.mrb[0].mxu0
      %1305 = vmatprep.mubr.bf16.mxu0 %v1016
      %1306 = vmatmul.mubr.bf16.gmra.mrb[0].mxu0 %v822
      %v1307 = vpop.f32.mrb[0].mxu0
      %v1308 = vadd.f32 %v534, %v1307
      %v1309 = vpop.f32.mrb[0].mxu0
      %v1310 = vpop.f32.mrb[0].mxu0
      %v1311 = vadd.f32 %v535, %v1310
      %v1312 = vpop.f32.mrb[0].mxu0
      %1313 = vmatprep.mubr.bf16.mxu0 %v1019
      %1314 = vmatmul.mubr.bf16.gmra.mrb[0].mxu0 %v824
      %v1315 = vpop.f32.mrb[0].mxu0
      %v1316 = vadd.f32 %v536, %v1315
      %v1317 = vpop.f32.mrb[0].mxu0
      %v1318 = vpop.f32.mrb[0].mxu0
      %v1319 = vadd.f32 %v537, %v1318
      %v1320 = vpop.f32.mrb[0].mxu0
      %1321 = vmatprep.mubr.bf16.mxu0 %v1022
      %1322 = vmatmul.mubr.bf16.gmra.mrb[0].mxu0 %v826
      %v1323 = vpop.f32.mrb[0].mxu0
      %v1324 = vadd.f32 %v538, %v1323
      %v1325 = vpop.f32.mrb[0].mxu0
      %v1326 = vpop.f32.mrb[0].mxu0
      %v1327 = vadd.f32 %v539, %v1326
      %v1328 = vpop.f32.mrb[0].mxu0
      %1329 = vmatprep.mubr.bf16.mxu0 %v1025
      %1330 = vmatmul.mubr.bf16.gmra.mrb[0].mxu0 %v828
      %v1331 = vpop.f32.mrb[0].mxu0
      %v1332 = vadd.f32 %v540, %v1331
      %v1333 = vpop.f32.mrb[0].mxu0
      %v1334 = vpop.f32.mrb[0].mxu0
      %v1335 = vadd.f32 %v541, %v1334
      %v1336 = vpop.f32.mrb[0].mxu0
      %1337 = vmatprep.mubr.bf16.mxu0 %v1028
      %1338 = vmatmul.mubr.bf16.gmra.mrb[0].mxu0 %v830
      %v1339 = vpop.f32.mrb[0].mxu0
      %v1340 = vadd.f32 %v542, %v1339
      %v1341 = vpop.f32.mrb[0].mxu0
      %v1342 = vpop.f32.mrb[0].mxu0
      %v1343 = vadd.f32 %v543, %v1342
      %v1344 = vpop.f32.mrb[0].mxu0
      %1345 = vmatprep.mubr.bf16.mxu0 %v1031
      %1346 = vmatmul.mubr.bf16.gmra.mrb[0].mxu0 %v832
      %v1347 = vpop.f32.mrb[0].mxu0
      %v1348 = vadd.f32 %v544, %v1347
      %v1349 = vpop.f32.mrb[0].mxu0
      %v1350 = vpop.f32.mrb[0].mxu0
      %v1351 = vadd.f32 %v545, %v1350
      %v1352 = vpop.f32.mrb[0].mxu0
      %1353 = vdwg.mxu0
      %v1354 = vxor.u32 %v1068, 2147483648
      %v1355 = vxor.u32 %v1071, 2147483648
      %v1356 = vxor.u32 %v1076, 2147483648
      %v1357 = vxor.u32 %v1079, 2147483648
      %v1358 = vxor.u32 %v1084, 2147483648
      %v1359 = vxor.u32 %v1087, 2147483648
      %v1360 = vxor.u32 %v1092, 2147483648
      %v1361 = vxor.u32 %v1095, 2147483648
      %v1362 = vxor.u32 %v1100, 2147483648
      %v1363 = vxor.u32 %v1103, 2147483648
      %v1364 = vxor.u32 %v1108, 2147483648
      %v1365 = vxor.u32 %v1111, 2147483648
      %v1366 = vxor.u32 %v1116, 2147483648
      %v1367 = vxor.u32 %v1119, 2147483648
      %v1368 = vxor.u32 %v1124, 2147483648
      %v1369 = vxor.u32 %v1127, 2147483648
      %v1370 = vxor.u32 %v1132, 2147483648
      %v1371 = vxor.u32 %v1135, 2147483648
      %v1372 = vxor.u32 %v1140, 2147483648
      %v1373 = vxor.u32 %v1143, 2147483648
      %v1374 = vxor.u32 %v1148, 2147483648
      %v1375 = vxor.u32 %v1151, 2147483648
      %v1376 = vxor.u32 %v1156, 2147483648
      %v1377 = vxor.u32 %v1159, 2147483648
      %v1378 = vxor.u32 %v1164, 2147483648
      %v1379 = vxor.u32 %v1167, 2147483648
      %v1380 = vxor.u32 %v1172, 2147483648
      %v1381 = vxor.u32 %v1175, 2147483648
      %v1382 = vxor.u32 %v1180, 2147483648
      %v1383 = vxor.u32 %v1183, 2147483648
      %v1384 = vxor.u32 %v1188, 2147483648
      %v1385 = vxor.u32 %v1191, 2147483648
      %v1386 = vxor.u32 %v1196, 2147483648
      %v1387 = vxor.u32 %v1199, 2147483648
      %v1388 = vxor.u32 %v1204, 2147483648
      %v1389 = vxor.u32 %v1207, 2147483648
      %v1390 = vxor.u32 %v1212, 2147483648
      %v1391 = vxor.u32 %v1215, 2147483648
      %v1392 = vxor.u32 %v1220, 2147483648
      %v1393 = vxor.u32 %v1223, 2147483648
      %v1394 = vxor.u32 %v1228, 2147483648
      %v1395 = vxor.u32 %v1231, 2147483648
      %v1396 = vxor.u32 %v1236, 2147483648
      %v1397 = vxor.u32 %v1239, 2147483648
      %v1398 = vxor.u32 %v1244, 2147483648
      %v1399 = vxor.u32 %v1247, 2147483648
      %v1400 = vxor.u32 %v1252, 2147483648
      %v1401 = vxor.u32 %v1255, 2147483648
      %v1402 = vxor.u32 %v1260, 2147483648
      %v1403 = vxor.u32 %v1263, 2147483648
      %v1404 = vxor.u32 %v1268, 2147483648
      %v1405 = vxor.u32 %v1271, 2147483648
      %v1406 = vxor.u32 %v1276, 2147483648
      %v1407 = vxor.u32 %v1279, 2147483648
      %v1408 = vxor.u32 %v1284, 2147483648
      %v1409 = vxor.u32 %v1287, 2147483648
      %v1410 = vxor.u32 %v1292, 2147483648
      %v1411 = vxor.u32 %v1295, 2147483648
      %v1412 = vxor.u32 %v1300, 2147483648
      %v1413 = vxor.u32 %v1303, 2147483648
      %v1414 = vxor.u32 %v1308, 2147483648
      %v1415 = vxor.u32 %v1311, 2147483648
      %v1416 = vxor.u32 %v1316, 2147483648
      %v1417 = vxor.u32 %v1319, 2147483648
      %v1418 = vxor.u32 %v1324, 2147483648
      %v1419 = vxor.u32 %v1327, 2147483648
      %v1420 = vxor.u32 %v1332, 2147483648
      %v1421 = vxor.u32 %v1335, 2147483648
      %v1422 = vxor.u32 %v1340, 2147483648
      %v1423 = vxor.u32 %v1343, 2147483648
      %v1424 = vxor.u32 %v1348, 2147483648
      %v1425 = vxor.u32 %v1351, 2147483648
      %v1426 = vmul.f32 %v1354, 1.442695
      %v1427 = vpow.pop %v1426
      %v1428 = vmul.f32 %v1355, 1.442695
      %v1429 = vpow.pop %v1428
      %v1430 = vmul.f32 %v1356, 1.442695
      %v1431 = vpow.pop %v1430
      %v1432 = vmul.f32 %v1357, 1.442695
      %v1433 = vpow.pop %v1432
      %v1434 = vmul.f32 %v1358, 1.442695
      %v1435 = vpow.pop %v1434
      %v1436 = vmul.f32 %v1359, 1.442695
      %v1437 = vpow.pop %v1436
      %v1438 = vmul.f32 %v1360, 1.442695
      %v1439 = vpow.pop %v1438
      %v1440 = vmul.f32 %v1361, 1.442695
      %v1441 = vpow.pop %v1440
      %v1442 = vmul.f32 %v1362, 1.442695
      %v1443 = vpow.pop %v1442
      %v1444 = vmul.f32 %v1363, 1.442695
      %v1445 = vpow.pop %v1444
      %v1446 = vmul.f32 %v1364, 1.442695
      %v1447 = vpow.pop %v1446
      %v1448 = vmul.f32 %v1365, 1.442695
      %v1449 = vpow.pop %v1448
      %v1450 = vmul.f32 %v1366, 1.442695
      %v1451 = vpow.pop %v1450
      %v1452 = vmul.f32 %v1367, 1.442695
      %v1453 = vpow.pop %v1452
      %v1454 = vmul.f32 %v1368, 1.442695
      %v1455 = vpow.pop %v1454
      %v1456 = vmul.f32 %v1369, 1.442695
      %v1457 = vpow.pop %v1456
      %v1458 = vmul.f32 %v1370, 1.442695
      %v1459 = vpow.pop %v1458
      %v1460 = vmul.f32 %v1371, 1.442695
      %v1461 = vpow.pop %v1460
      %v1462 = vmul.f32 %v1372, 1.442695
      %v1463 = vpow.pop %v1462
      %v1464 = vmul.f32 %v1373, 1.442695
      %v1465 = vpow.pop %v1464
      %v1466 = vmul.f32 %v1374, 1.442695
      %v1467 = vpow.pop %v1466
      %v1468 = vmul.f32 %v1375, 1.442695
      %v1469 = vpow.pop %v1468
      %v1470 = vmul.f32 %v1376, 1.442695
      %v1471 = vpow.pop %v1470
      %v1472 = vmul.f32 %v1377, 1.442695
      %v1473 = vpow.pop %v1472
      %v1474 = vmul.f32 %v1378, 1.442695
      %v1475 = vpow.pop %v1474
      %v1476 = vmul.f32 %v1379, 1.442695
      %v1477 = vpow.pop %v1476
      %v1478 = vmul.f32 %v1380, 1.442695
      %v1479 = vpow.pop %v1478
      %v1480 = vmul.f32 %v1381, 1.442695
      %v1481 = vpow.pop %v1480
      %v1482 = vmul.f32 %v1382, 1.442695
      %v1483 = vpow.pop %v1482
      %v1484 = vmul.f32 %v1383, 1.442695
      %v1485 = vpow.pop %v1484
      %v1486 = vmul.f32 %v1384, 1.442695
      %v1487 = vpow.pop %v1486
      %v1488 = vmul.f32 %v1385, 1.442695
      %v1489 = vpow.pop %v1488
      %v1490 = vmul.f32 %v1386, 1.442695
      %v1491 = vpow.pop %v1490
      %v1492 = vmul.f32 %v1387, 1.442695
      %v1493 = vpow.pop %v1492
      %v1494 = vmul.f32 %v1388, 1.442695
      %v1495 = vpow.pop %v1494
      %v1496 = vmul.f32 %v1389, 1.442695
      %v1497 = vpow.pop %v1496
      %v1498 = vmul.f32 %v1390, 1.442695
      %v1499 = vpow.pop %v1498
      %v1500 = vmul.f32 %v1391, 1.442695
      %v1501 = vpow.pop %v1500
      %v1502 = vmul.f32 %v1392, 1.442695
      %v1503 = vpow.pop %v1502
      %v1504 = vmul.f32 %v1393, 1.442695
      %v1505 = vpow.pop %v1504
      %v1506 = vmul.f32 %v1394, 1.442695
      %v1507 = vpow.pop %v1506
      %v1508 = vmul.f32 %v1395, 1.442695
      %v1509 = vpow.pop %v1508
      %v1510 = vmul.f32 %v1396, 1.442695
      %v1511 = vpow.pop %v1510
      %v1512 = vmul.f32 %v1397, 1.442695
      %v1513 = vpow.pop %v1512
      %v1514 = vmul.f32 %v1398, 1.442695
      %v1515 = vpow.pop %v1514
      %v1516 = vmul.f32 %v1399, 1.442695
      %v1517 = vpow.pop %v1516
      %v1518 = vmul.f32 %v1400, 1.442695
      %v1519 = vpow.pop %v1518
      %v1520 = vmul.f32 %v1401, 1.442695
      %v1521 = vpow.pop %v1520
      %v1522 = vmul.f32 %v1402, 1.442695
      %v1523 = vpow.pop %v1522
      %v1524 = vmul.f32 %v1403, 1.442695
      %v1525 = vpow.pop %v1524
      %v1526 = vmul.f32 %v1404, 1.442695
      %v1527 = vpow.pop %v1526
      %v1528 = vmul.f32 %v1405, 1.442695
      %v1529 = vpow.pop %v1528
      %v1530 = vmul.f32 %v1406, 1.442695
      %v1531 = vpow.pop %v1530
      %v1532 = vmul.f32 %v1407, 1.442695
      %v1533 = vpow.pop %v1532
      %v1534 = vmul.f32 %v1408, 1.442695
      %v1535 = vpow.pop %v1534
      %v1536 = vmul.f32 %v1409, 1.442695
      %v1537 = vpow.pop %v1536
      %v1538 = vmul.f32 %v1410, 1.442695
      %v1539 = vpow.pop %v1538
      %v1540 = vmul.f32 %v1411, 1.442695
      %v1541 = vpow.pop %v1540
      %v1542 = vmul.f32 %v1412, 1.442695
      %v1543 = vpow.pop %v1542
      %v1544 = vmul.f32 %v1413, 1.442695
      %v1545 = vpow.pop %v1544
      %v1546 = vmul.f32 %v1414, 1.442695
      %v1547 = vpow.pop %v1546
      %v1548 = vmul.f32 %v1415, 1.442695
      %v1549 = vpow.pop %v1548
      %v1550 = vmul.f32 %v1416, 1.442695
      %v1551 = vpow.pop %v1550
      %v1552 = vmul.f32 %v1417, 1.442695
      %v1553 = vpow.pop %v1552
      %v1554 = vmul.f32 %v1418, 1.442695
      %v1555 = vpow.pop %v1554
      %v1556 = vmul.f32 %v1419, 1.442695
      %v1557 = vpow.pop %v1556
      %v1558 = vmul.f32 %v1420, 1.442695
      %v1559 = vpow.pop %v1558
      %v1560 = vmul.f32 %v1421, 1.442695
      %v1561 = vpow.pop %v1560
      %v1562 = vmul.f32 %v1422, 1.442695
      %v1563 = vpow.pop %v1562
      %v1564 = vmul.f32 %v1423, 1.442695
      %v1565 = vpow.pop %v1564
      %v1566 = vmul.f32 %v1424, 1.442695
      %v1567 = vpow.pop %v1566
      %v1568 = vmul.f32 %v1425, 1.442695
      %v1569 = vpow.pop %v1568
      %v1570 = vadd.f32 %v1427, 1.0
      %v1571 = vadd.f32 %v1429, 1.0
      %v1572 = vadd.f32 %v1431, 1.0
      %v1573 = vadd.f32 %v1433, 1.0
      %v1574 = vadd.f32 %v1435, 1.0
      %v1575 = vadd.f32 %v1437, 1.0
      %v1576 = vadd.f32 %v1439, 1.0
      %v1577 = vadd.f32 %v1441, 1.0
      %v1578 = vadd.f32 %v1443, 1.0
      %v1579 = vadd.f32 %v1445, 1.0
      %v1580 = vadd.f32 %v1447, 1.0
      %v1581 = vadd.f32 %v1449, 1.0
      %v1582 = vadd.f32 %v1451, 1.0
      %v1583 = vadd.f32 %v1453, 1.0
      %v1584 = vadd.f32 %v1455, 1.0
      %v1585 = vadd.f32 %v1457, 1.0
      %v1586 = vadd.f32 %v1459, 1.0
      %v1587 = vadd.f32 %v1461, 1.0
      %v1588 = vadd.f32 %v1463, 1.0
      %v1589 = vadd.f32 %v1465, 1.0
      %v1590 = vadd.f32 %v1467, 1.0
      %v1591 = vadd.f32 %v1469, 1.0
      %v1592 = vadd.f32 %v1471, 1.0
      %v1593 = vadd.f32 %v1473, 1.0
      %v1594 = vadd.f32 %v1475, 1.0
      %v1595 = vadd.f32 %v1477, 1.0
      %v1596 = vadd.f32 %v1479, 1.0
      %v1597 = vadd.f32 %v1481, 1.0
      %v1598 = vadd.f32 %v1483, 1.0
      %v1599 = vadd.f32 %v1485, 1.0
      %v1600 = vadd.f32 %v1487, 1.0
      %v1601 = vadd.f32 %v1489, 1.0
      %v1602 = vadd.f32 %v1491, 1.0
      %v1603 = vadd.f32 %v1493, 1.0
      %v1604 = vadd.f32 %v1495, 1.0
      %v1605 = vadd.f32 %v1497, 1.0
      %v1606 = vadd.f32 %v1499, 1.0
      %v1607 = vadd.f32 %v1501, 1.0
      %v1608 = vadd.f32 %v1503, 1.0
      %v1609 = vadd.f32 %v1505, 1.0
      %v1610 = vadd.f32 %v1507, 1.0
      %v1611 = vadd.f32 %v1509, 1.0
      %v1612 = vadd.f32 %v1511, 1.0
      %v1613 = vadd.f32 %v1513, 1.0
      %v1614 = vadd.f32 %v1515, 1.0
      %v1615 = vadd.f32 %v1517, 1.0
      %v1616 = vadd.f32 %v1519, 1.0
      %v1617 = vadd.f32 %v1521, 1.0
      %v1618 = vadd.f32 %v1523, 1.0
      %v1619 = vadd.f32 %v1525, 1.0
      %v1620 = vadd.f32 %v1527, 1.0
      %v1621 = vadd.f32 %v1529, 1.0
      %v1622 = vadd.f32 %v1531, 1.0
      %v1623 = vadd.f32 %v1533, 1.0
      %v1624 = vadd.f32 %v1535, 1.0
      %v1625 = vadd.f32 %v1537, 1.0
      %v1626 = vadd.f32 %v1539, 1.0
      %v1627 = vadd.f32 %v1541, 1.0
      %v1628 = vadd.f32 %v1543, 1.0
      %v1629 = vadd.f32 %v1545, 1.0
      %v1630 = vadd.f32 %v1547, 1.0
      %v1631 = vadd.f32 %v1549, 1.0
      %v1632 = vadd.f32 %v1551, 1.0
      %v1633 = vadd.f32 %v1553, 1.0
      %v1634 = vadd.f32 %v1555, 1.0
      %v1635 = vadd.f32 %v1557, 1.0
      %v1636 = vadd.f32 %v1559, 1.0
      %v1637 = vadd.f32 %v1561, 1.0
      %v1638 = vadd.f32 %v1563, 1.0
      %v1639 = vadd.f32 %v1565, 1.0
      %v1640 = vadd.f32 %v1567, 1.0
      %v1641 = vadd.f32 %v1569, 1.0
      %v1642 = vrcp.pop %v1570
      %v1643 = vmul.f32 1.0, %v1642
      %v1644 = vrcp.pop %v1571
      %v1645 = vmul.f32 1.0, %v1644
      %v1646 = vrcp.pop %v1572
      %v1647 = vmul.f32 1.0, %v1646
      %v1648 = vrcp.pop %v1573
      %v1649 = vmul.f32 1.0, %v1648
      %v1650 = vrcp.pop %v1574
      %v1651 = vmul.f32 1.0, %v1650
      %v1652 = vrcp.pop %v1575
      %v1653 = vmul.f32 1.0, %v1652
      %v1654 = vrcp.pop %v1576
      %v1655 = vmul.f32 1.0, %v1654
      %v1656 = vrcp.pop %v1577
      %v1657 = vmul.f32 1.0, %v1656
      %v1658 = vrcp.pop %v1578
      %v1659 = vmul.f32 1.0, %v1658
      %v1660 = vrcp.pop %v1579
      %v1661 = vmul.f32 1.0, %v1660
      %v1662 = vrcp.pop %v1580
      %v1663 = vmul.f32 1.0, %v1662
      %v1664 = vrcp.pop %v1581
      %v1665 = vmul.f32 1.0, %v1664
      %v1666 = vrcp.pop %v1582
      %v1667 = vmul.f32 1.0, %v1666
      %v1668 = vrcp.pop %v1583
      %v1669 = vmul.f32 1.0, %v1668
      %v1670 = vrcp.pop %v1584
      %v1671 = vmul.f32 1.0, %v1670
      %v1672 = vrcp.pop %v1585
      %v1673 = vmul.f32 1.0, %v1672
      %v1674 = vrcp.pop %v1586
      %v1675 = vmul.f32 1.0, %v1674
      %v1676 = vrcp.pop %v1587
      %v1677 = vmul.f32 1.0, %v1676
      %v1678 = vrcp.pop %v1588
      %v1679 = vmul.f32 1.0, %v1678
      %v1680 = vrcp.pop %v1589
      %v1681 = vmul.f32 1.0, %v1680
      %v1682 = vrcp.pop %v1590
      %v1683 = vmul.f32 1.0, %v1682
      %v1684 = vrcp.pop %v1591
      %v1685 = vmul.f32 1.0, %v1684
      %v1686 = vrcp.pop %v1592
      %v1687 = vmul.f32 1.0, %v1686
      %v1688 = vrcp.pop %v1593
      %v1689 = vmul.f32 1.0, %v1688
      %v1690 = vrcp.pop %v1594
      %v1691 = vmul.f32 1.0, %v1690
      %v1692 = vrcp.pop %v1595
      %v1693 = vmul.f32 1.0, %v1692
      %v1694 = vrcp.pop %v1596
      %v1695 = vmul.f32 1.0, %v1694
      %v1696 = vrcp.pop %v1597
      %v1697 = vmul.f32 1.0, %v1696
      %v1698 = vrcp.pop %v1598
      %v1699 = vmul.f32 1.0, %v1698
      %v1700 = vrcp.pop %v1599
      %v1701 = vmul.f32 1.0, %v1700
      %v1702 = vrcp.pop %v1600
      %v1703 = vmul.f32 1.0, %v1702
      %v1704 = vrcp.pop %v1601
      %v1705 = vmul.f32 1.0, %v1704
      %v1706 = vrcp.pop %v1602
      %v1707 = vmul.f32 1.0, %v1706
      %v1708 = vrcp.pop %v1603
      %v1709 = vmul.f32 1.0, %v1708
      %v1710 = vrcp.pop %v1604
      %v1711 = vmul.f32 1.0, %v1710
      %v1712 = vrcp.pop %v1605
      %v1713 = vmul.f32 1.0, %v1712
      %v1714 = vrcp.pop %v1606
      %v1715 = vmul.f32 1.0, %v1714
      %v1716 = vrcp.pop %v1607
      %v1717 = vmul.f32 1.0, %v1716
      %v1718 = vrcp.pop %v1608
      %v1719 = vmul.f32 1.0, %v1718
      %v1720 = vrcp.pop %v1609
      %v1721 = vmul.f32 1.0, %v1720
      %v1722 = vrcp.pop %v1610
      %v1723 = vmul.f32 1.0, %v1722
      %v1724 = vrcp.pop %v1611
      %v1725 = vmul.f32 1.0, %v1724
      %v1726 = vrcp.pop %v1612
      %v1727 = vmul.f32 1.0, %v1726
      %v1728 = vrcp.pop %v1613
      %v1729 = vmul.f32 1.0, %v1728
      %v1730 = vrcp.pop %v1614
      %v1731 = vmul.f32 1.0, %v1730
      %v1732 = vrcp.pop %v1615
      %v1733 = vmul.f32 1.0, %v1732
      %v1734 = vrcp.pop %v1616
      %v1735 = vmul.f32 1.0, %v1734
      %v1736 = vrcp.pop %v1617
      %v1737 = vmul.f32 1.0, %v1736
      %v1738 = vrcp.pop %v1618
      %v1739 = vmul.f32 1.0, %v1738
      %v1740 = vrcp.pop %v1619
      %v1741 = vmul.f32 1.0, %v1740
      %v1742 = vrcp.pop %v1620
      %v1743 = vmul.f32 1.0, %v1742
      %v1744 = vrcp.pop %v1621
      %v1745 = vmul.f32 1.0, %v1744
      %v1746 = vrcp.pop %v1622
      %v1747 = vmul.f32 1.0, %v1746
      %v1748 = vrcp.pop %v1623
      %v1749 = vmul.f32 1.0, %v1748
      %v1750 = vrcp.pop %v1624
      %v1751 = vmul.f32 1.0, %v1750
      %v1752 = vrcp.pop %v1625
      %v1753 = vmul.f32 1.0, %v1752
      %v1754 = vrcp.pop %v1626
      %v1755 = vmul.f32 1.0, %v1754
      %v1756 = vrcp.pop %v1627
      %v1757 = vmul.f32 1.0, %v1756
      %v1758 = vrcp.pop %v1628
      %v1759 = vmul.f32 1.0, %v1758
      %v1760 = vrcp.pop %v1629
      %v1761 = vmul.f32 1.0, %v1760
      %v1762 = vrcp.pop %v1630
      %v1763 = vmul.f32 1.0, %v1762
      %v1764 = vrcp.pop %v1631
      %v1765 = vmul.f32 1.0, %v1764
      %v1766 = vrcp.pop %v1632
      %v1767 = vmul.f32 1.0, %v1766
      %v1768 = vrcp.pop %v1633
      %v1769 = vmul.f32 1.0, %v1768
      %v1770 = vrcp.pop %v1634
      %v1771 = vmul.f32 1.0, %v1770
      %v1772 = vrcp.pop %v1635
      %v1773 = vmul.f32 1.0, %v1772
      %v1774 = vrcp.pop %v1636
      %v1775 = vmul.f32 1.0, %v1774
      %v1776 = vrcp.pop %v1637
      %v1777 = vmul.f32 1.0, %v1776
      %v1778 = vrcp.pop %v1638
      %v1779 = vmul.f32 1.0, %v1778
      %v1780 = vrcp.pop %v1639
      %v1781 = vmul.f32 1.0, %v1780
      %v1782 = vrcp.pop %v1640
      %v1783 = vmul.f32 1.0, %v1782
      %v1784 = vrcp.pop %v1641
      %v1785 = vmul.f32 1.0, %v1784
      %v1786 = vpack.c.bf16 %v1645, %v1643
      %v1787 = vpack.c.bf16 %v1649, %v1647
      %v1788 = vpack.c.bf16 %v1653, %v1651
      %v1789 = vpack.c.bf16 %v1657, %v1655
      %v1790 = vpack.c.bf16 %v1661, %v1659
      %v1791 = vpack.c.bf16 %v1665, %v1663
      %v1792 = vpack.c.bf16 %v1669, %v1667
      %v1793 = vpack.c.bf16 %v1673, %v1671
      %v1794 = vpack.c.bf16 %v1677, %v1675
      %v1795 = vpack.c.bf16 %v1681, %v1679
      %v1796 = vpack.c.bf16 %v1685, %v1683
      %v1797 = vpack.c.bf16 %v1689, %v1687
      %v1798 = vpack.c.bf16 %v1693, %v1691
      %v1799 = vpack.c.bf16 %v1697, %v1695
      %v1800 = vpack.c.bf16 %v1701, %v1699
      %v1801 = vpack.c.bf16 %v1705, %v1703
      %v1802 = vpack.c.bf16 %v1709, %v1707
      %v1803 = vpack.c.bf16 %v1713, %v1711
      %v1804 = vpack.c.bf16 %v1717, %v1715
      %v1805 = vpack.c.bf16 %v1721, %v1719
      %v1806 = vpack.c.bf16 %v1725, %v1723
      %v1807 = vpack.c.bf16 %v1729, %v1727
      %v1808 = vpack.c.bf16 %v1733, %v1731
      %v1809 = vpack.c.bf16 %v1737, %v1735
      %v1810 = vpack.c.bf16 %v1741, %v1739
      %v1811 = vpack.c.bf16 %v1745, %v1743
      %v1812 = vpack.c.bf16 %v1749, %v1747
      %v1813 = vpack.c.bf16 %v1753, %v1751
      %v1814 = vpack.c.bf16 %v1757, %v1755
      %v1815 = vpack.c.bf16 %v1761, %v1759
      %v1816 = vpack.c.bf16 %v1765, %v1763
      %v1817 = vpack.c.bf16 %v1769, %v1767
      %v1818 = vpack.c.bf16 %v1773, %v1771
      %v1819 = vpack.c.bf16 %v1777, %v1775
      %v1820 = vpack.c.bf16 %v1781, %v1779
      %v1821 = vpack.c.bf16 %v1785, %v1783
      %v1822 = vld [vmem:[%s3] sm:$0xff]
      %v1823 = vld [vmem:[%s3 + $0x8] sm:$0xff]
      %v1824 = vld [vmem:[%s3 + $0x10] sm:$0xff]
      %v1825 = vld [vmem:[%s3 + $0x18] sm:$0xff]
      %v1826 = vld [vmem:[%s3 + $0x20] sm:$0xff]
      %v1827 = vld [vmem:[%s3 + $0x28] sm:$0xff]
      %v1828 = vld [vmem:[%s3 + $0x30] sm:$0xff]
      %v1829 = vld [vmem:[%s3 + $0x38] sm:$0xff]
      %v1830 = vld [vmem:[%s3 + $0x40] sm:$0xff]
      %v1831 = vld [vmem:[%s3 + $0x48] sm:$0xff]
      %v1832 = vld [vmem:[%s3 + $0x50] sm:$0xff]
      %v1833 = vld [vmem:[%s3 + $0x58] sm:$0xff]
      %v1834 = vld [vmem:[%s3 + $0x60] sm:$0xff]
      %v1835 = vld [vmem:[%s3 + $0x68] sm:$0xff]
      %v1836 = vld [vmem:[%s3 + $0x70] sm:$0xff]
      %v1837 = vld [vmem:[%s3 + $0x78] sm:$0xff]
      %v1838 = vld [vmem:[%s3 + $0x80] sm:$0xff]
      %v1839 = vld [vmem:[%s3 + $0x88] sm:$0xff]
      %v1840 = vld [vmem:[%s3 + $0x90] sm:$0xff]
      %v1841 = vld [vmem:[%s3 + $0x98] sm:$0xff]
      %v1842 = vld [vmem:[%s3 + $0xa0] sm:$0xff]
      %v1843 = vld [vmem:[%s3 + $0xa8] sm:$0xff]
      %v1844 = vld [vmem:[%s3 + $0xb0] sm:$0xff]
      %v1845 = vld [vmem:[%s3 + $0xb8] sm:$0xff]
      %v1846 = vld [vmem:[%s3 + $0xc0] sm:$0xff]
      %v1847 = vld [vmem:[%s3 + $0xc8] sm:$0xff]
      %v1848 = vld [vmem:[%s3 + $0xd0] sm:$0xff]
      %v1849 = vld [vmem:[%s3 + $0xd8] sm:$0xff]
      %v1850 = vld [vmem:[%s3 + $0xe0] sm:$0xff]
      %v1851 = vld [vmem:[%s3 + $0xe8] sm:$0xff]
      %v1852 = vld [vmem:[%s3 + $0xf0] sm:$0xff]
      %v1853 = vld [vmem:[%s3 + $0xf8] sm:$0xff]
      %v1854 = vld [vmem:[%s3 + $0x100] sm:$0xff]
      %v1855 = vld [vmem:[%s3 + $0x108] sm:$0xff]
      %v1856 = vld [vmem:[%s3 + $0x110] sm:$0xff]
      %v1857 = vld [vmem:[%s3 + $0x118] sm:$0xff]
      %v1858 = vld [vmem:[%s3 + $0x120] sm:$0xff]
      %v1859 = vld [vmem:[%s3 + $0x128] sm:$0xff]
      %v1860 = vld [vmem:[%s3 + $0x130] sm:$0xff]
      %v1861 = vld [vmem:[%s3 + $0x138] sm:$0xff]
      %v1862 = vld [vmem:[%s3 + $0x140] sm:$0xff]
      %v1863 = vld [vmem:[%s3 + $0x148] sm:$0xff]
      %v1864 = vld [vmem:[%s3 + $0x150] sm:$0xff]
      %v1865 = vld [vmem:[%s3 + $0x158] sm:$0xff]
      %v1866 = vld [vmem:[%s3 + $0x160] sm:$0xff]
      %v1867 = vld [vmem:[%s3 + $0x168] sm:$0xff]
      %v1868 = vld [vmem:[%s3 + $0x170] sm:$0xff]
      %v1869 = vld [vmem:[%s3 + $0x178] sm:$0xff]
      %v1870 = vld [vmem:[%s3 + $0x180] sm:$0xff]
      %v1871 = vld [vmem:[%s3 + $0x188] sm:$0xff]
      %v1872 = vld [vmem:[%s3 + $0x190] sm:$0xff]
      %v1873 = vld [vmem:[%s3 + $0x198] sm:$0xff]
      %v1874 = vld [vmem:[%s3 + $0x1a0] sm:$0xff]
      %v1875 = vld [vmem:[%s3 + $0x1a8] sm:$0xff]
      %v1876 = vld [vmem:[%s3 + $0x1b0] sm:$0xff]
      %v1877 = vld [vmem:[%s3 + $0x1b8] sm:$0xff]
      %v1878 = vld [vmem:[%s3 + $0x1c0] sm:$0xff]
      %v1879 = vld [vmem:[%s3 + $0x1c8] sm:$0xff]
      %v1880 = vld [vmem:[%s3 + $0x1d0] sm:$0xff]
      %v1881 = vld [vmem:[%s3 + $0x1d8] sm:$0xff]
      %v1882 = vld [vmem:[%s3 + $0x1e0] sm:$0xff]
      %v1883 = vld [vmem:[%s3 + $0x1e8] sm:$0xff]
      %v1884 = vld [vmem:[%s3 + $0x1f0] sm:$0xff]
      %v1885 = vld [vmem:[%s3 + $0x1f8] sm:$0xff]
      %v1886 = vld [vmem:[%s3 + $0x200] sm:$0xff]
      %v1887 = vld [vmem:[%s3 + $0x208] sm:$0xff]
      %v1888 = vld [vmem:[%s3 + $0x210] sm:$0xff]
      %v1889 = vld [vmem:[%s3 + $0x218] sm:$0xff]
      %v1890 = vld [vmem:[%s3 + $0x220] sm:$0xff]
      %v1891 = vld [vmem:[%s3 + $0x228] sm:$0xff]
      %v1892 = vld [vmem:[%s3 + $0x230] sm:$0xff]
      %v1893 = vld [vmem:[%s3 + $0x238] sm:$0xff]
      %1895 = vset.pattern.permute.xlu0 0
      %1896 = vperm.xlu0 %1895, %v1786
      %v1897 = vpop.permute.xlu0 %1896
      %1899 = vset.pattern.permute.xlu0 0
      %1900 = vperm.xlu0 %1899, %v1787
      %v1901 = vpop.permute.xlu0 %1900
      %1903 = vset.pattern.permute.xlu0 0
      %1904 = vperm.xlu0 %1903, %v1788
      %v1905 = vpop.permute.xlu0 %1904
      %1907 = vset.pattern.permute.xlu0 0
      %1908 = vperm.xlu0 %1907, %v1789
      %v1909 = vpop.permute.xlu0 %1908
      %1911 = vset.pattern.permute.xlu0 0
      %1912 = vperm.xlu0 %1911, %v1790
      %v1913 = vpop.permute.xlu0 %1912
      %1915 = vset.pattern.permute.xlu0 0
      %1916 = vperm.xlu0 %1915, %v1791
      %v1917 = vpop.permute.xlu0 %1916
      %1919 = vset.pattern.permute.xlu0 0
      %1920 = vperm.xlu0 %1919, %v1792
      %v1921 = vpop.permute.xlu0 %1920
      %1923 = vset.pattern.permute.xlu0 0
      %1924 = vperm.xlu0 %1923, %v1793
      %v1925 = vpop.permute.xlu0 %1924
      %1927 = vset.pattern.permute.xlu0 0
      %1928 = vperm.xlu0 %1927, %v1794
      %v1929 = vpop.permute.xlu0 %1928
      %1931 = vset.pattern.permute.xlu0 0
      %1932 = vperm.xlu0 %1931, %v1795
      %v1933 = vpop.permute.xlu0 %1932
      %1935 = vset.pattern.permute.xlu0 0
      %1936 = vperm.xlu0 %1935, %v1796
      %v1937 = vpop.permute.xlu0 %1936
      %1939 = vset.pattern.permute.xlu0 0
      %1940 = vperm.xlu0 %1939, %v1797
      %v1941 = vpop.permute.xlu0 %1940
      %1943 = vset.pattern.permute.xlu0 0
      %1944 = vperm.xlu0 %1943, %v1798
      %v1945 = vpop.permute.xlu0 %1944
      %1947 = vset.pattern.permute.xlu0 0
      %1948 = vperm.xlu0 %1947, %v1799
      %v1949 = vpop.permute.xlu0 %1948
      %1951 = vset.pattern.permute.xlu0 0
      %1952 = vperm.xlu0 %1951, %v1800
      %v1953 = vpop.permute.xlu0 %1952
      %1955 = vset.pattern.permute.xlu0 0
      %1956 = vperm.xlu0 %1955, %v1801
      %v1957 = vpop.permute.xlu0 %1956
      %1959 = vset.pattern.permute.xlu0 0
      %1960 = vperm.xlu0 %1959, %v1802
      %v1961 = vpop.permute.xlu0 %1960
      %1963 = vset.pattern.permute.xlu0 0
      %1964 = vperm.xlu0 %1963, %v1803
      %v1965 = vpop.permute.xlu0 %1964
      %1967 = vset.pattern.permute.xlu0 0
      %1968 = vperm.xlu0 %1967, %v1804
      %v1969 = vpop.permute.xlu0 %1968
      %1971 = vset.pattern.permute.xlu0 0
      %1972 = vperm.xlu0 %1971, %v1805
      %v1973 = vpop.permute.xlu0 %1972
      %1975 = vset.pattern.permute.xlu0 0
      %1976 = vperm.xlu0 %1975, %v1806
      %v1977 = vpop.permute.xlu0 %1976
      %1979 = vset.pattern.permute.xlu0 0
      %1980 = vperm.xlu0 %1979, %v1807
      %v1981 = vpop.permute.xlu0 %1980
      %1983 = vset.pattern.permute.xlu0 0
      %1984 = vperm.xlu0 %1983, %v1808
      %v1985 = vpop.permute.xlu0 %1984
      %1987 = vset.pattern.permute.xlu0 0
      %1988 = vperm.xlu0 %1987, %v1809
      %v1989 = vpop.permute.xlu0 %1988
      %1991 = vset.pattern.permute.xlu0 0
      %1992 = vperm.xlu0 %1991, %v1810
      %v1993 = vpop.permute.xlu0 %1992
      %1995 = vset.pattern.permute.xlu0 0
      %1996 = vperm.xlu0 %1995, %v1811
      %v1997 = vpop.permute.xlu0 %1996
      %1999 = vset.pattern.permute.xlu0 0
      %2000 = vperm.xlu0 %1999, %v1812
      %v2001 = vpop.permute.xlu0 %2000
      %2003 = vset.pattern.permute.xlu0 0
      %2004 = vperm.xlu0 %2003, %v1813
      %v2005 = vpop.permute.xlu0 %2004
      %2007 = vset.pattern.permute.xlu0 0
      %2008 = vperm.xlu0 %2007, %v1814
      %v2009 = vpop.permute.xlu0 %2008
      %2011 = vset.pattern.permute.xlu0 0
      %2012 = vperm.xlu0 %2011, %v1815
      %v2013 = vpop.permute.xlu0 %2012
      %2015 = vset.pattern.permute.xlu0 0
      %2016 = vperm.xlu0 %2015, %v1816
      %v2017 = vpop.permute.xlu0 %2016
      %2019 = vset.pattern.permute.xlu0 0
      %2020 = vperm.xlu0 %2019, %v1817
      %v2021 = vpop.permute.xlu0 %2020
      %2023 = vset.pattern.permute.xlu0 0
      %2024 = vperm.xlu0 %2023, %v1818
      %v2025 = vpop.permute.xlu0 %2024
      %2027 = vset.pattern.permute.xlu0 0
      %2028 = vperm.xlu0 %2027, %v1819
      %v2029 = vpop.permute.xlu0 %2028
      %2031 = vset.pattern.permute.xlu0 0
      %2032 = vperm.xlu0 %2031, %v1820
      %v2033 = vpop.permute.xlu0 %2032
      %2035 = vset.pattern.permute.xlu0 0
      %2036 = vperm.xlu0 %2035, %v1821
      %v2037 = vpop.permute.xlu0 %2036
      %v2075 = vunpack.c.l.s4 839922192
      %v2076 = vunpack.c.0.s8 %v2075
      %v2077 = vlaneseq
      %v2078 = vshrl.u32 %v2077, 7
      %v2079 = vsub.s32 %v2076, %v2078
      %v2080 = vrot.slane %v1897, %v2079
      %v2082 = vunpack.c.l.s4 1985246804
      %v2083 = vunpack.c.0.s8 %v2082
      %v2084 = vlaneseq
      %v2085 = vshrl.u32 %v2084, 7
      %v2086 = vsub.s32 %v2083, %v2085
      %v2087 = vrot.slane %v1897, %v2086
      %v2089 = vunpack.c.l.s4 839922192
      %v2090 = vunpack.c.0.s8 %v2089
      %v2091 = vlaneseq
      %v2092 = vshrl.u32 %v2091, 7
      %v2093 = vsub.s32 %v2090, %v2092
      %v2094 = vrot.slane %v1901, %v2093
      %v2096 = vunpack.c.l.s4 1985246804
      %v2097 = vunpack.c.0.s8 %v2096
      %v2098 = vlaneseq
      %v2099 = vshrl.u32 %v2098, 7
      %v2100 = vsub.s32 %v2097, %v2099
      %v2101 = vrot.slane %v1901, %v2100
      %v2103 = vunpack.c.l.s4 839922192
      %v2104 = vunpack.c.0.s8 %v2103
      %v2105 = vlaneseq
      %v2106 = vshrl.u32 %v2105, 7
      %v2107 = vsub.s32 %v2104, %v2106
      %v2108 = vrot.slane %v1905, %v2107
      %v2110 = vunpack.c.l.s4 1985246804
      %v2111 = vunpack.c.0.s8 %v2110
      %v2112 = vlaneseq
      %v2113 = vshrl.u32 %v2112, 7
      %v2114 = vsub.s32 %v2111, %v2113
      %v2115 = vrot.slane %v1905, %v2114
      %v2117 = vunpack.c.l.s4 839922192
      %v2118 = vunpack.c.0.s8 %v2117
      %v2119 = vlaneseq
      %v2120 = vshrl.u32 %v2119, 7
      %v2121 = vsub.s32 %v2118, %v2120
      %v2122 = vrot.slane %v1909, %v2121
      %v2124 = vunpack.c.l.s4 1985246804
      %v2125 = vunpack.c.0.s8 %v2124
      %v2126 = vlaneseq
      %v2127 = vshrl.u32 %v2126, 7
      %v2128 = vsub.s32 %v2125, %v2127
      %v2129 = vrot.slane %v1909, %v2128
      %v2131 = vunpack.c.l.s4 839922192
      %v2132 = vunpack.c.0.s8 %v2131
      %v2133 = vlaneseq
      %v2134 = vshrl.u32 %v2133, 7
      %v2135 = vsub.s32 %v2132, %v2134
      %v2136 = vrot.slane %v1913, %v2135
      %v2138 = vunpack.c.l.s4 1985246804
      %v2139 = vunpack.c.0.s8 %v2138
      %v2140 = vlaneseq
      %v2141 = vshrl.u32 %v2140, 7
      %v2142 = vsub.s32 %v2139, %v2141
      %v2143 = vrot.slane %v1913, %v2142
      %v2145 = vunpack.c.l.s4 839922192
      %v2146 = vunpack.c.0.s8 %v2145
      %v2147 = vlaneseq
      %v2148 = vshrl.u32 %v2147, 7
      %v2149 = vsub.s32 %v2146, %v2148
      %v2150 = vrot.slane %v1917, %v2149
      %v2152 = vunpack.c.l.s4 1985246804
      %v2153 = vunpack.c.0.s8 %v2152
      %v2154 = vlaneseq
      %v2155 = vshrl.u32 %v2154, 7
      %v2156 = vsub.s32 %v2153, %v2155
      %v2157 = vrot.slane %v1917, %v2156
      %v2159 = vunpack.c.l.s4 839922192
      %v2160 = vunpack.c.0.s8 %v2159
      %v2161 = vlaneseq
      %v2162 = vshrl.u32 %v2161, 7
      %v2163 = vsub.s32 %v2160, %v2162
      %v2164 = vrot.slane %v1921, %v2163
      %v2166 = vunpack.c.l.s4 1985246804
      %v2167 = vunpack.c.0.s8 %v2166
      %v2168 = vlaneseq
      %v2169 = vshrl.u32 %v2168, 7
      %v2170 = vsub.s32 %v2167, %v2169
      %v2171 = vrot.slane %v1921, %v2170
      %v2173 = vunpack.c.l.s4 839922192
      %v2174 = vunpack.c.0.s8 %v2173
      %v2175 = vlaneseq
      %v2176 = vshrl.u32 %v2175, 7
      %v2177 = vsub.s32 %v2174, %v2176
      %v2178 = vrot.slane %v1925, %v2177
      %v2180 = vunpack.c.l.s4 1985246804
      %v2181 = vunpack.c.0.s8 %v2180
      %v2182 = vlaneseq
      %v2183 = vshrl.u32 %v2182, 7
      %v2184 = vsub.s32 %v2181, %v2183
      %v2185 = vrot.slane %v1925, %v2184
      %v2187 = vunpack.c.l.s4 839922192
      %v2188 = vunpack.c.0.s8 %v2187
      %v2189 = vlaneseq
      %v2190 = vshrl.u32 %v2189, 7
      %v2191 = vsub.s32 %v2188, %v2190
      %v2192 = vrot.slane %v1929, %v2191
      %v2194 = vunpack.c.l.s4 1985246804
      %v2195 = vunpack.c.0.s8 %v2194
      %v2196 = vlaneseq
      %v2197 = vshrl.u32 %v2196, 7
      %v2198 = vsub.s32 %v2195, %v2197
      %v2199 = vrot.slane %v1929, %v2198
      %v2201 = vunpack.c.l.s4 839922192
      %v2202 = vunpack.c.0.s8 %v2201
      %v2203 = vlaneseq
      %v2204 = vshrl.u32 %v2203, 7
      %v2205 = vsub.s32 %v2202, %v2204
      %v2206 = vrot.slane %v1933, %v2205
      %v2208 = vunpack.c.l.s4 1985246804
      %v2209 = vunpack.c.0.s8 %v2208
      %v2210 = vlaneseq
      %v2211 = vshrl.u32 %v2210, 7
      %v2212 = vsub.s32 %v2209, %v2211
      %v2213 = vrot.slane %v1933, %v2212
      %v2215 = vunpack.c.l.s4 839922192
      %v2216 = vunpack.c.0.s8 %v2215
      %v2217 = vlaneseq
      %v2218 = vshrl.u32 %v2217, 7
      %v2219 = vsub.s32 %v2216, %v2218
      %v2220 = vrot.slane %v1937, %v2219
      %v2222 = vunpack.c.l.s4 1985246804
      %v2223 = vunpack.c.0.s8 %v2222
      %v2224 = vlaneseq
      %v2225 = vshrl.u32 %v2224, 7
      %v2226 = vsub.s32 %v2223, %v2225
      %v2227 = vrot.slane %v1937, %v2226
      %v2229 = vunpack.c.l.s4 839922192
      %v2230 = vunpack.c.0.s8 %v2229
      %v2231 = vlaneseq
      %v2232 = vshrl.u32 %v2231, 7
      %v2233 = vsub.s32 %v2230, %v2232
      %v2234 = vrot.slane %v1941, %v2233
      %v2236 = vunpack.c.l.s4 1985246804
      %v2237 = vunpack.c.0.s8 %v2236
      %v2238 = vlaneseq
      %v2239 = vshrl.u32 %v2238, 7
      %v2240 = vsub.s32 %v2237, %v2239
      %v2241 = vrot.slane %v1941, %v2240
      %v2243 = vunpack.c.l.s4 839922192
      %v2244 = vunpack.c.0.s8 %v2243
      %v2245 = vlaneseq
      %v2246 = vshrl.u32 %v2245, 7
      %v2247 = vsub.s32 %v2244, %v2246
      %v2248 = vrot.slane %v1945, %v2247
      %v2250 = vunpack.c.l.s4 1985246804
      %v2251 = vunpack.c.0.s8 %v2250
      %v2252 = vlaneseq
      %v2253 = vshrl.u32 %v2252, 7
      %v2254 = vsub.s32 %v2251, %v2253
      %v2255 = vrot.slane %v1945, %v2254
      %v2257 = vunpack.c.l.s4 839922192
      %v2258 = vunpack.c.0.s8 %v2257
      %v2259 = vlaneseq
      %v2260 = vshrl.u32 %v2259, 7
      %v2261 = vsub.s32 %v2258, %v2260
      %v2262 = vrot.slane %v1949, %v2261
      %v2264 = vunpack.c.l.s4 1985246804
      %v2265 = vunpack.c.0.s8 %v2264
      %v2266 = vlaneseq
      %v2267 = vshrl.u32 %v2266, 7
      %v2268 = vsub.s32 %v2265, %v2267
      %v2269 = vrot.slane %v1949, %v2268
      %v2271 = vunpack.c.l.s4 839922192
      %v2272 = vunpack.c.0.s8 %v2271
      %v2273 = vlaneseq
      %v2274 = vshrl.u32 %v2273, 7
      %v2275 = vsub.s32 %v2272, %v2274
      %v2276 = vrot.slane %v1953, %v2275
      %v2278 = vunpack.c.l.s4 1985246804
      %v2279 = vunpack.c.0.s8 %v2278
      %v2280 = vlaneseq
      %v2281 = vshrl.u32 %v2280, 7
      %v2282 = vsub.s32 %v2279, %v2281
      %v2283 = vrot.slane %v1953, %v2282
      %v2285 = vunpack.c.l.s4 839922192
      %v2286 = vunpack.c.0.s8 %v2285
      %v2287 = vlaneseq
      %v2288 = vshrl.u32 %v2287, 7
      %v2289 = vsub.s32 %v2286, %v2288
      %v2290 = vrot.slane %v1957, %v2289
      %v2292 = vunpack.c.l.s4 1985246804
      %v2293 = vunpack.c.0.s8 %v2292
      %v2294 = vlaneseq
      %v2295 = vshrl.u32 %v2294, 7
      %v2296 = vsub.s32 %v2293, %v2295
      %v2297 = vrot.slane %v1957, %v2296
      %v2299 = vunpack.c.l.s4 839922192
      %v2300 = vunpack.c.0.s8 %v2299
      %v2301 = vlaneseq
      %v2302 = vshrl.u32 %v2301, 7
      %v2303 = vsub.s32 %v2300, %v2302
      %v2304 = vrot.slane %v1961, %v2303
      %v2306 = vunpack.c.l.s4 1985246804
      %v2307 = vunpack.c.0.s8 %v2306
      %v2308 = vlaneseq
      %v2309 = vshrl.u32 %v2308, 7
      %v2310 = vsub.s32 %v2307, %v2309
      %v2311 = vrot.slane %v1961, %v2310
      %v2313 = vunpack.c.l.s4 839922192
      %v2314 = vunpack.c.0.s8 %v2313
      %v2315 = vlaneseq
      %v2316 = vshrl.u32 %v2315, 7
      %v2317 = vsub.s32 %v2314, %v2316
      %v2318 = vrot.slane %v1965, %v2317
      %v2320 = vunpack.c.l.s4 1985246804
      %v2321 = vunpack.c.0.s8 %v2320
      %v2322 = vlaneseq
      %v2323 = vshrl.u32 %v2322, 7
      %v2324 = vsub.s32 %v2321, %v2323
      %v2325 = vrot.slane %v1965, %v2324
      %v2327 = vunpack.c.l.s4 839922192
      %v2328 = vunpack.c.0.s8 %v2327
      %v2329 = vlaneseq
      %v2330 = vshrl.u32 %v2329, 7
      %v2331 = vsub.s32 %v2328, %v2330
      %v2332 = vrot.slane %v1969, %v2331
      %v2334 = vunpack.c.l.s4 1985246804
      %v2335 = vunpack.c.0.s8 %v2334
      %v2336 = vlaneseq
      %v2337 = vshrl.u32 %v2336, 7
      %v2338 = vsub.s32 %v2335, %v2337
      %v2339 = vrot.slane %v1969, %v2338
      %v2341 = vunpack.c.l.s4 839922192
      %v2342 = vunpack.c.0.s8 %v2341
      %v2343 = vlaneseq
      %v2344 = vshrl.u32 %v2343, 7
      %v2345 = vsub.s32 %v2342, %v2344
      %v2346 = vrot.slane %v1973, %v2345
      %v2348 = vunpack.c.l.s4 1985246804
      %v2349 = vunpack.c.0.s8 %v2348
      %v2350 = vlaneseq
      %v2351 = vshrl.u32 %v2350, 7
      %v2352 = vsub.s32 %v2349, %v2351
      %v2353 = vrot.slane %v1973, %v2352
      %v2355 = vunpack.c.l.s4 839922192
      %v2356 = vunpack.c.0.s8 %v2355
      %v2357 = vlaneseq
      %v2358 = vshrl.u32 %v2357, 7
      %v2359 = vsub.s32 %v2356, %v2358
      %v2360 = vrot.slane %v1977, %v2359
      %v2362 = vunpack.c.l.s4 1985246804
      %v2363 = vunpack.c.0.s8 %v2362
      %v2364 = vlaneseq
      %v2365 = vshrl.u32 %v2364, 7
      %v2366 = vsub.s32 %v2363, %v2365
      %v2367 = vrot.slane %v1977, %v2366
      %v2369 = vunpack.c.l.s4 839922192
      %v2370 = vunpack.c.0.s8 %v2369
      %v2371 = vlaneseq
      %v2372 = vshrl.u32 %v2371, 7
      %v2373 = vsub.s32 %v2370, %v2372
      %v2374 = vrot.slane %v1981, %v2373
      %v2376 = vunpack.c.l.s4 1985246804
      %v2377 = vunpack.c.0.s8 %v2376
      %v2378 = vlaneseq
      %v2379 = vshrl.u32 %v2378, 7
      %v2380 = vsub.s32 %v2377, %v2379
      %v2381 = vrot.slane %v1981, %v2380
      %v2383 = vunpack.c.l.s4 839922192
      %v2384 = vunpack.c.0.s8 %v2383
      %v2385 = vlaneseq
      %v2386 = vshrl.u32 %v2385, 7
      %v2387 = vsub.s32 %v2384, %v2386
      %v2388 = vrot.slane %v1985, %v2387
      %v2390 = vunpack.c.l.s4 1985246804
      %v2391 = vunpack.c.0.s8 %v2390
      %v2392 = vlaneseq
      %v2393 = vshrl.u32 %v2392, 7
      %v2394 = vsub.s32 %v2391, %v2393
      %v2395 = vrot.slane %v1985, %v2394
      %v2397 = vunpack.c.l.s4 839922192
      %v2398 = vunpack.c.0.s8 %v2397
      %v2399 = vlaneseq
      %v2400 = vshrl.u32 %v2399, 7
      %v2401 = vsub.s32 %v2398, %v2400
      %v2402 = vrot.slane %v1989, %v2401
      %v2404 = vunpack.c.l.s4 1985246804
      %v2405 = vunpack.c.0.s8 %v2404
      %v2406 = vlaneseq
      %v2407 = vshrl.u32 %v2406, 7
      %v2408 = vsub.s32 %v2405, %v2407
      %v2409 = vrot.slane %v1989, %v2408
      %v2411 = vunpack.c.l.s4 839922192
      %v2412 = vunpack.c.0.s8 %v2411
      %v2413 = vlaneseq
      %v2414 = vshrl.u32 %v2413, 7
      %v2415 = vsub.s32 %v2412, %v2414
      %v2416 = vrot.slane %v1993, %v2415
      %v2418 = vunpack.c.l.s4 1985246804
      %v2419 = vunpack.c.0.s8 %v2418
      %v2420 = vlaneseq
      %v2421 = vshrl.u32 %v2420, 7
      %v2422 = vsub.s32 %v2419, %v2421
      %v2423 = vrot.slane %v1993, %v2422
      %v2425 = vunpack.c.l.s4 839922192
      %v2426 = vunpack.c.0.s8 %v2425
      %v2427 = vlaneseq
      %v2428 = vshrl.u32 %v2427, 7
      %v2429 = vsub.s32 %v2426, %v2428
      %v2430 = vrot.slane %v1997, %v2429
      %v2432 = vunpack.c.l.s4 1985246804
      %v2433 = vunpack.c.0.s8 %v2432
      %v2434 = vlaneseq
      %v2435 = vshrl.u32 %v2434, 7
      %v2436 = vsub.s32 %v2433, %v2435
      %v2437 = vrot.slane %v1997, %v2436
      %v2439 = vunpack.c.l.s4 839922192
      %v2440 = vunpack.c.0.s8 %v2439
      %v2441 = vlaneseq
      %v2442 = vshrl.u32 %v2441, 7
      %v2443 = vsub.s32 %v2440, %v2442
      %v2444 = vrot.slane %v2001, %v2443
      %v2446 = vunpack.c.l.s4 1985246804
      %v2447 = vunpack.c.0.s8 %v2446
      %v2448 = vlaneseq
      %v2449 = vshrl.u32 %v2448, 7
      %v2450 = vsub.s32 %v2447, %v2449
      %v2451 = vrot.slane %v2001, %v2450
      %v2453 = vunpack.c.l.s4 839922192
      %v2454 = vunpack.c.0.s8 %v2453
      %v2455 = vlaneseq
      %v2456 = vshrl.u32 %v2455, 7
      %v2457 = vsub.s32 %v2454, %v2456
      %v2458 = vrot.slane %v2005, %v2457
      %v2460 = vunpack.c.l.s4 1985246804
      %v2461 = vunpack.c.0.s8 %v2460
      %v2462 = vlaneseq
      %v2463 = vshrl.u32 %v2462, 7
      %v2464 = vsub.s32 %v2461, %v2463
      %v2465 = vrot.slane %v2005, %v2464
      %v2467 = vunpack.c.l.s4 839922192
      %v2468 = vunpack.c.0.s8 %v2467
      %v2469 = vlaneseq
      %v2470 = vshrl.u32 %v2469, 7
      %v2471 = vsub.s32 %v2468, %v2470
      %v2472 = vrot.slane %v2009, %v2471
      %v2474 = vunpack.c.l.s4 1985246804
      %v2475 = vunpack.c.0.s8 %v2474
      %v2476 = vlaneseq
      %v2477 = vshrl.u32 %v2476, 7
      %v2478 = vsub.s32 %v2475, %v2477
      %v2479 = vrot.slane %v2009, %v2478
      %v2481 = vunpack.c.l.s4 839922192
      %v2482 = vunpack.c.0.s8 %v2481
      %v2483 = vlaneseq
      %v2484 = vshrl.u32 %v2483, 7
      %v2485 = vsub.s32 %v2482, %v2484
      %v2486 = vrot.slane %v2013, %v2485
      %v2488 = vunpack.c.l.s4 1985246804
      %v2489 = vunpack.c.0.s8 %v2488
      %v2490 = vlaneseq
      %v2491 = vshrl.u32 %v2490, 7
      %v2492 = vsub.s32 %v2489, %v2491
      %v2493 = vrot.slane %v2013, %v2492
      %v2495 = vunpack.c.l.s4 839922192
      %v2496 = vunpack.c.0.s8 %v2495
      %v2497 = vlaneseq
      %v2498 = vshrl.u32 %v2497, 7
      %v2499 = vsub.s32 %v2496, %v2498
      %v2500 = vrot.slane %v2017, %v2499
      %v2502 = vunpack.c.l.s4 1985246804
      %v2503 = vunpack.c.0.s8 %v2502
      %v2504 = vlaneseq
      %v2505 = vshrl.u32 %v2504, 7
      %v2506 = vsub.s32 %v2503, %v2505
      %v2507 = vrot.slane %v2017, %v2506
      %v2509 = vunpack.c.l.s4 839922192
      %v2510 = vunpack.c.0.s8 %v2509
      %v2511 = vlaneseq
      %v2512 = vshrl.u32 %v2511, 7
      %v2513 = vsub.s32 %v2510, %v2512
      %v2514 = vrot.slane %v2021, %v2513
      %v2516 = vunpack.c.l.s4 1985246804
      %v2517 = vunpack.c.0.s8 %v2516
      %v2518 = vlaneseq
      %v2519 = vshrl.u32 %v2518, 7
      %v2520 = vsub.s32 %v2517, %v2519
      %v2521 = vrot.slane %v2021, %v2520
      %v2523 = vunpack.c.l.s4 839922192
      %v2524 = vunpack.c.0.s8 %v2523
      %v2525 = vlaneseq
      %v2526 = vshrl.u32 %v2525, 7
      %v2527 = vsub.s32 %v2524, %v2526
      %v2528 = vrot.slane %v2025, %v2527
      %v2530 = vunpack.c.l.s4 1985246804
      %v2531 = vunpack.c.0.s8 %v2530
      %v2532 = vlaneseq
      %v2533 = vshrl.u32 %v2532, 7
      %v2534 = vsub.s32 %v2531, %v2533
      %v2535 = vrot.slane %v2025, %v2534
      %v2537 = vunpack.c.l.s4 839922192
      %v2538 = vunpack.c.0.s8 %v2537
      %v2539 = vlaneseq
      %v2540 = vshrl.u32 %v2539, 7
      %v2541 = vsub.s32 %v2538, %v2540
      %v2542 = vrot.slane %v2029, %v2541
      %v2544 = vunpack.c.l.s4 1985246804
      %v2545 = vunpack.c.0.s8 %v2544
      %v2546 = vlaneseq
      %v2547 = vshrl.u32 %v2546, 7
      %v2548 = vsub.s32 %v2545, %v2547
      %v2549 = vrot.slane %v2029, %v2548
      %v2551 = vunpack.c.l.s4 839922192
      %v2552 = vunpack.c.0.s8 %v2551
      %v2553 = vlaneseq
      %v2554 = vshrl.u32 %v2553, 7
      %v2555 = vsub.s32 %v2552, %v2554
      %v2556 = vrot.slane %v2033, %v2555
      %v2558 = vunpack.c.l.s4 1985246804
      %v2559 = vunpack.c.0.s8 %v2558
      %v2560 = vlaneseq
      %v2561 = vshrl.u32 %v2560, 7
      %v2562 = vsub.s32 %v2559, %v2561
      %v2563 = vrot.slane %v2033, %v2562
      %v2565 = vunpack.c.l.s4 839922192
      %v2566 = vunpack.c.0.s8 %v2565
      %v2567 = vlaneseq
      %v2568 = vshrl.u32 %v2567, 7
      %v2569 = vsub.s32 %v2566, %v2568
      %v2570 = vrot.slane %v2037, %v2569
      %v2572 = vunpack.c.l.s4 1985246804
      %v2573 = vunpack.c.0.s8 %v2572
      %v2574 = vlaneseq
      %v2575 = vshrl.u32 %v2574, 7
      %v2576 = vsub.s32 %v2573, %v2575
      %v2577 = vrot.slane %v2037, %v2576
      %v2650 = vmul.bf16 %v1822, %v2080
      %v2651 = vmul.bf16 %v1823, %v2087
      %v2652 = vmul.bf16 %v1824, %v2094
      %v2653 = vmul.bf16 %v1825, %v2101
      %v2654 = vmul.bf16 %v1826, %v2108
      %v2655 = vmul.bf16 %v1827, %v2115
      %v2656 = vmul.bf16 %v1828, %v2122
      %v2657 = vmul.bf16 %v1829, %v2129
      %v2658 = vmul.bf16 %v1830, %v2136
      %v2659 = vmul.bf16 %v1831, %v2143
      %v2660 = vmul.bf16 %v1832, %v2150
      %v2661 = vmul.bf16 %v1833, %v2157
      %v2662 = vmul.bf16 %v1834, %v2164
      %v2663 = vmul.bf16 %v1835, %v2171
      %v2664 = vmul.bf16 %v1836, %v2178
      %v2665 = vmul.bf16 %v1837, %v2185
      %v2666 = vmul.bf16 %v1838, %v2192
      %v2667 = vmul.bf16 %v1839, %v2199
      %v2668 = vmul.bf16 %v1840, %v2206
      %v2669 = vmul.bf16 %v1841, %v2213
      %v2670 = vmul.bf16 %v1842, %v2220
      %v2671 = vmul.bf16 %v1843, %v2227
      %v2672 = vmul.bf16 %v1844, %v2234
      %v2673 = vmul.bf16 %v1845, %v2241
      %v2674 = vmul.bf16 %v1846, %v2248
      %v2675 = vmul.bf16 %v1847, %v2255
      %v2676 = vmul.bf16 %v1848, %v2262
      %v2677 = vmul.bf16 %v1849, %v2269
      %v2678 = vmul.bf16 %v1850, %v2276
      %v2679 = vmul.bf16 %v1851, %v2283
      %v2680 = vmul.bf16 %v1852, %v2290
      %v2681 = vmul.bf16 %v1853, %v2297
      %v2682 = vmul.bf16 %v1854, %v2304
      %v2683 = vmul.bf16 %v1855, %v2311
      %v2684 = vmul.bf16 %v1856, %v2318
      %v2685 = vmul.bf16 %v1857, %v2325
      %v2686 = vmul.bf16 %v1858, %v2332
      %v2687 = vmul.bf16 %v1859, %v2339
      %v2688 = vmul.bf16 %v1860, %v2346
      %v2689 = vmul.bf16 %v1861, %v2353
      %v2690 = vmul.bf16 %v1862, %v2360
      %v2691 = vmul.bf16 %v1863, %v2367
      %v2692 = vmul.bf16 %v1864, %v2374
      %v2693 = vmul.bf16 %v1865, %v2381
      %v2694 = vmul.bf16 %v1866, %v2388
      %v2695 = vmul.bf16 %v1867, %v2395
      %v2696 = vmul.bf16 %v1868, %v2402
      %v2697 = vmul.bf16 %v1869, %v2409
      %v2698 = vmul.bf16 %v1870, %v2416
      %v2699 = vmul.bf16 %v1871, %v2423
      %v2700 = vmul.bf16 %v1872, %v2430
      %v2701 = vmul.bf16 %v1873, %v2437
      %v2702 = vmul.bf16 %v1874, %v2444
      %v2703 = vmul.bf16 %v1875, %v2451
      %v2704 = vmul.bf16 %v1876, %v2458
      %v2705 = vmul.bf16 %v1877, %v2465
      %v2706 = vmul.bf16 %v1878, %v2472
      %v2707 = vmul.bf16 %v1879, %v2479
      %v2708 = vmul.bf16 %v1880, %v2486
      %v2709 = vmul.bf16 %v1881, %v2493
      %v2710 = vmul.bf16 %v1882, %v2500
      %v2711 = vmul.bf16 %v1883, %v2507
      %v2712 = vmul.bf16 %v1884, %v2514
      %v2713 = vmul.bf16 %v1885, %v2521
      %v2714 = vmul.bf16 %v1886, %v2528
      %v2715 = vmul.bf16 %v1887, %v2535
      %v2716 = vmul.bf16 %v1888, %v2542
      %v2717 = vmul.bf16 %v1889, %v2549
      %v2718 = vmul.bf16 %v1890, %v2556
      %v2719 = vmul.bf16 %v1891, %v2563
      %v2720 = vmul.bf16 %v1892, %v2570
      %v2721 = vmul.bf16 %v1893, %v2577
      %v2722 = vld [vmem:[%s355] sm:$0xff]
      %v2723 = vld [vmem:[%s355 + $0x8] sm:$0xff]
      %v2724 = vld [vmem:[%s355 + $0x10] sm:$0xf]
      %v2725 = vld [vmem:[%s355 + $0x14] sm:$0xff]
      %v2726 = vld [vmem:[%s355 + $0x1c] sm:$0xff]
      %v2727 = vld [vmem:[%s355 + $0x24] sm:$0xf]
      %v2728 = vld [vmem:[%s355 + $0x28] sm:$0xff]
      %v2729 = vld [vmem:[%s355 + $0x30] sm:$0xff]
      %v2730 = vld [vmem:[%s355 + $0x38] sm:$0xf]
      %v2731 = vld [vmem:[%s355 + $0x3c] sm:$0xff]
      %v2732 = vld [vmem:[%s355 + $0x44] sm:$0xff]
      %v2733 = vld [vmem:[%s355 + $0x4c] sm:$0xf]
      %v2734 = vld [vmem:[%s355 + $0x50] sm:$0xff]
      %v2735 = vld [vmem:[%s355 + $0x58] sm:$0xff]
      %v2736 = vld [vmem:[%s355 + $0x60] sm:$0xf]
      %v2737 = vld [vmem:[%s355 + $0x64] sm:$0xff]
      %v2738 = vld [vmem:[%s355 + $0x6c] sm:$0xff]
      %v2739 = vld [vmem:[%s355 + $0x74] sm:$0xf]
      %v2740 = vld [vmem:[%s355 + $0x78] sm:$0xff]
      %v2741 = vld [vmem:[%s355 + $0x80] sm:$0xff]
      %v2742 = vld [vmem:[%s355 + $0x88] sm:$0xf]
      %v2743 = vld [vmem:[%s355 + $0x8c] sm:$0xff]
      %v2744 = vld [vmem:[%s355 + $0x94] sm:$0xff]
      %v2745 = vld [vmem:[%s355 + $0x9c] sm:$0xf]
      %v2746 = vld [vmem:[%s355 + $0xa0] sm:$0xff]
      %v2747 = vld [vmem:[%s355 + $0xa8] sm:$0xff]
      %v2748 = vld [vmem:[%s355 + $0xb0] sm:$0xf]
      %v2749 = vld [vmem:[%s355 + $0xb4] sm:$0xff]
      %v2750 = vld [vmem:[%s355 + $0xbc] sm:$0xff]
      %v2751 = vld [vmem:[%s355 + $0xc4] sm:$0xf]
      %v2752 = vld [vmem:[%s355 + $0xc8] sm:$0xff]
      %v2753 = vld [vmem:[%s355 + $0xd0] sm:$0xff]
      %v2754 = vld [vmem:[%s355 + $0xd8] sm:$0xf]
      %v2755 = vld [vmem:[%s355 + $0xdc] sm:$0xff]
      %v2756 = vld [vmem:[%s355 + $0xe4] sm:$0xff]
      %v2757 = vld [vmem:[%s355 + $0xec] sm:$0xf]
      %v2758 = vld [vmem:[%s355 + $0xf0] sm:$0xff]
      %v2759 = vld [vmem:[%s355 + $0xf8] sm:$0xff]
      %v2760 = vld [vmem:[%s355 + $0x100] sm:$0xf]
      %v2761 = vld [vmem:[%s355 + $0x104] sm:$0xff]
      %v2762 = vld [vmem:[%s355 + $0x10c] sm:$0xff]
      %v2763 = vld [vmem:[%s355 + $0x114] sm:$0xf]
      %v2764 = vld [vmem:[%s355 + $0x118] sm:$0xff]
      %v2765 = vld [vmem:[%s355 + $0x120] sm:$0xff]
      %v2766 = vld [vmem:[%s355 + $0x128] sm:$0xf]
      %v2767 = vld [vmem:[%s355 + $0x12c] sm:$0xff]
      %v2768 = vld [vmem:[%s355 + $0x134] sm:$0xff]
      %v2769 = vld [vmem:[%s355 + $0x13c] sm:$0xf]
      %v2770 = vld [vmem:[%s355 + $0x140] sm:$0xff]
      %v2771 = vld [vmem:[%s355 + $0x148] sm:$0xff]
      %v2772 = vld [vmem:[%s355 + $0x150] sm:$0xf]
      %v2773 = vld [vmem:[%s355 + $0x154] sm:$0xff]
      %v2774 = vld [vmem:[%s355 + $0x15c] sm:$0xff]
      %v2775 = vld [vmem:[%s355 + $0x164] sm:$0xf]
      %v2830 = vunpack.c.l.b16 %v2722
      %v2831 = vunpack.c.h.b16 %v2722
      %v2832 = vunpack.c.l.b16 %v2723
      %v2833 = vunpack.c.h.b16 %v2723
      %v2834 = vunpack.c.l.b16 %v2724
      %v2835 = vunpack.c.l.b16 %v2725
      %v2836 = vunpack.c.h.b16 %v2725
      %v2837 = vunpack.c.l.b16 %v2726
      %v2838 = vunpack.c.h.b16 %v2726
      %v2839 = vunpack.c.l.b16 %v2727
      %v2840 = vunpack.c.l.b16 %v2728
      %v2841 = vunpack.c.h.b16 %v2728
      %v2842 = vunpack.c.l.b16 %v2729
      %v2843 = vunpack.c.h.b16 %v2729
      %v2844 = vunpack.c.l.b16 %v2730
      %v2845 = vunpack.c.l.b16 %v2731
      %v2846 = vunpack.c.h.b16 %v2731
      %v2847 = vunpack.c.l.b16 %v2732
      %v2848 = vunpack.c.h.b16 %v2732
      %v2849 = vunpack.c.l.b16 %v2733
      %v2850 = vunpack.c.l.b16 %v2734
      %v2851 = vunpack.c.h.b16 %v2734
      %v2852 = vunpack.c.l.b16 %v2735
      %v2853 = vunpack.c.h.b16 %v2735
      %v2854 = vunpack.c.l.b16 %v2736
      %v2855 = vunpack.c.l.b16 %v2737
      %v2856 = vunpack.c.h.b16 %v2737
      %v2857 = vunpack.c.l.b16 %v2738
      %v2858 = vunpack.c.h.b16 %v2738
      %v2859 = vunpack.c.l.b16 %v2739
      %v2860 = vunpack.c.l.b16 %v2740
      %v2861 = vunpack.c.h.b16 %v2740
      %v2862 = vunpack.c.l.b16 %v2741
      %v2863 = vunpack.c.h.b16 %v2741
      %v2864 = vunpack.c.l.b16 %v2742
      %v2865 = vunpack.c.l.b16 %v2743
      %v2866 = vunpack.c.h.b16 %v2743
      %v2867 = vunpack.c.l.b16 %v2744
      %v2868 = vunpack.c.h.b16 %v2744
      %v2869 = vunpack.c.l.b16 %v2745
      %v2870 = vunpack.c.l.b16 %v2746
      %v2871 = vunpack.c.h.b16 %v2746
      %v2872 = vunpack.c.l.b16 %v2747
      %v2873 = vunpack.c.h.b16 %v2747
      %v2874 = vunpack.c.l.b16 %v2748
      %v2875 = vunpack.c.l.b16 %v2749
      %v2876 = vunpack.c.h.b16 %v2749
      %v2877 = vunpack.c.l.b16 %v2750
      %v2878 = vunpack.c.h.b16 %v2750
      %v2879 = vunpack.c.l.b16 %v2751
      %v2880 = vunpack.c.l.b16 %v2752
      %v2881 = vunpack.c.h.b16 %v2752
      %v2882 = vunpack.c.l.b16 %v2753
      %v2883 = vunpack.c.h.b16 %v2753
      %v2884 = vunpack.c.l.b16 %v2754
      %v2885 = vunpack.c.l.b16 %v2755
      %v2886 = vunpack.c.h.b16 %v2755
      %v2887 = vunpack.c.l.b16 %v2756
      %v2888 = vunpack.c.h.b16 %v2756
      %v2889 = vunpack.c.l.b16 %v2757
      %v2890 = vunpack.c.l.b16 %v2758
      %v2891 = vunpack.c.h.b16 %v2758
      %v2892 = vunpack.c.l.b16 %v2759
      %v2893 = vunpack.c.h.b16 %v2759
      %v2894 = vunpack.c.l.b16 %v2760
      %v2895 = vunpack.c.l.b16 %v2761
      %v2896 = vunpack.c.h.b16 %v2761
      %v2897 = vunpack.c.l.b16 %v2762
      %v2898 = vunpack.c.h.b16 %v2762
      %v2899 = vunpack.c.l.b16 %v2763
      %v2900 = vunpack.c.l.b16 %v2764
      %v2901 = vunpack.c.h.b16 %v2764
      %v2902 = vunpack.c.l.b16 %v2765
      %v2903 = vunpack.c.h.b16 %v2765
      %v2904 = vunpack.c.l.b16 %v2766
      %v2905 = vunpack.c.l.b16 %v2767
      %v2906 = vunpack.c.h.b16 %v2767
      %v2907 = vunpack.c.l.b16 %v2768
      %v2908 = vunpack.c.h.b16 %v2768
      %v2909 = vunpack.c.l.b16 %v2769
      %v2910 = vunpack.c.l.b16 %v2770
      %v2911 = vunpack.c.h.b16 %v2770
      %v2912 = vunpack.c.l.b16 %v2771
      %v2913 = vunpack.c.h.b16 %v2771
      %v2914 = vunpack.c.l.b16 %v2772
      %v2915 = vunpack.c.l.b16 %v2773
      %v2916 = vunpack.c.h.b16 %v2773
      %v2917 = vunpack.c.l.b16 %v2774
      %v2918 = vunpack.c.h.b16 %v2774
      %v2919 = vunpack.c.l.b16 %v2775
      %v2920 = vpack.c.b16 %v2835, %v2830
      %v2921 = vpack.c.b16 %v2836, %v2831
      %v2922 = vpack.c.b16 %v2837, %v2832
      %v2923 = vpack.c.b16 %v2838, %v2833
      %v2924 = vpack.c.b16 %v2839, %v2834
      %v2925 = vpack.c.b16 %v2845, %v2840
      %v2926 = vpack.c.b16 %v2846, %v2841
      %v2927 = vpack.c.b16 %v2847, %v2842
      %v2928 = vpack.c.b16 %v2848, %v2843
      %v2929 = vpack.c.b16 %v2849, %v2844
      %v2930 = vpack.c.b16 %v2855, %v2850
      %v2931 = vpack.c.b16 %v2856, %v2851
      %v2932 = vpack.c.b16 %v2857, %v2852
      %v2933 = vpack.c.b16 %v2858, %v2853
      %v2934 = vpack.c.b16 %v2859, %v2854
      %v2935 = vpack.c.b16 %v2865, %v2860
      %v2936 = vpack.c.b16 %v2866, %v2861
      %v2937 = vpack.c.b16 %v2867, %v2862
      %v2938 = vpack.c.b16 %v2868, %v2863
      %v2939 = vpack.c.b16 %v2869, %v2864
      %v2940 = vpack.c.b16 %v2875, %v2870
      %v2941 = vpack.c.b16 %v2876, %v2871
      %v2942 = vpack.c.b16 %v2877, %v2872
      %v2943 = vpack.c.b16 %v2878, %v2873
      %v2944 = vpack.c.b16 %v2879, %v2874
      %v2945 = vpack.c.b16 %v2885, %v2880
      %v2946 = vpack.c.b16 %v2886, %v2881
      %v2947 = vpack.c.b16 %v2887, %v2882
      %v2948 = vpack.c.b16 %v2888, %v2883
      %v2949 = vpack.c.b16 %v2889, %v2884
      %v2950 = vpack.c.b16 %v2895, %v2890
      %v2951 = vpack.c.b16 %v2896, %v2891
      %v2952 = vpack.c.b16 %v2897, %v2892
      %v2953 = vpack.c.b16 %v2898, %v2893
      %v2954 = vpack.c.b16 %v2899, %v2894
      %v2955 = vpack.c.b16 %v2905, %v2900
      %v2956 = vpack.c.b16 %v2906, %v2901
      %v2957 = vpack.c.b16 %v2907, %v2902
      %v2958 = vpack.c.b16 %v2908, %v2903
      %v2959 = vpack.c.b16 %v2909, %v2904
      %v2960 = vpack.c.b16 %v2915, %v2910
      %v2961 = vpack.c.b16 %v2916, %v2911
      %v2962 = vpack.c.b16 %v2917, %v2912
      %v2963 = vpack.c.b16 %v2918, %v2913
      %v2964 = vpack.c.b16 %v2919, %v2914
      %v3073 = vunpack.c.l.b16 %v2650
      %v3074 = vunpack.c.h.b16 %v2650
      %v3075 = vunpack.c.l.b16 %v2651
      %v3076 = vunpack.c.h.b16 %v2651
      %v3077 = vunpack.c.l.b16 %v2652
      %v3078 = vunpack.c.h.b16 %v2652
      %v3079 = vunpack.c.l.b16 %v2653
      %v3080 = vunpack.c.h.b16 %v2653
      %v3081 = vunpack.c.l.b16 %v2654
      %v3082 = vunpack.c.h.b16 %v2654
      %v3083 = vunpack.c.l.b16 %v2655
      %v3084 = vunpack.c.h.b16 %v2655
      %v3085 = vunpack.c.l.b16 %v2656
      %v3086 = vunpack.c.h.b16 %v2656
      %v3087 = vunpack.c.l.b16 %v2657
      %v3088 = vunpack.c.h.b16 %v2657
      %v3089 = vunpack.c.l.b16 %v2658
      %v3090 = vunpack.c.h.b16 %v2658
      %v3091 = vunpack.c.l.b16 %v2659
      %v3092 = vunpack.c.h.b16 %v2659
      %v3093 = vunpack.c.l.b16 %v2660
      %v3094 = vunpack.c.h.b16 %v2660
      %v3095 = vunpack.c.l.b16 %v2661
      %v3096 = vunpack.c.h.b16 %v2661
      %v3097 = vunpack.c.l.b16 %v2662
      %v3098 = vunpack.c.h.b16 %v2662
      %v3099 = vunpack.c.l.b16 %v2663
      %v3100 = vunpack.c.h.b16 %v2663
      %v3101 = vunpack.c.l.b16 %v2664
      %v3102 = vunpack.c.h.b16 %v2664
      %v3103 = vunpack.c.l.b16 %v2665
      %v3104 = vunpack.c.h.b16 %v2665
      %v3105 = vunpack.c.l.b16 %v2666
      %v3106 = vunpack.c.h.b16 %v2666
      %v3107 = vunpack.c.l.b16 %v2667
      %v3108 = vunpack.c.h.b16 %v2667
      %v3109 = vunpack.c.l.b16 %v2668
      %v3110 = vunpack.c.h.b16 %v2668
      %v3111 = vunpack.c.l.b16 %v2669
      %v3112 = vunpack.c.h.b16 %v2669
      %v3113 = vunpack.c.l.b16 %v2670
      %v3114 = vunpack.c.h.b16 %v2670
      %v3115 = vunpack.c.l.b16 %v2671
      %v3116 = vunpack.c.h.b16 %v2671
      %v3117 = vunpack.c.l.b16 %v2672
      %v3118 = vunpack.c.h.b16 %v2672
      %v3119 = vunpack.c.l.b16 %v2673
      %v3120 = vunpack.c.h.b16 %v2673
      %v3121 = vunpack.c.l.b16 %v2674
      %v3122 = vunpack.c.h.b16 %v2674
      %v3123 = vunpack.c.l.b16 %v2675
      %v3124 = vunpack.c.h.b16 %v2675
      %v3125 = vunpack.c.l.b16 %v2676
      %v3126 = vunpack.c.h.b16 %v2676
      %v3127 = vunpack.c.l.b16 %v2677
      %v3128 = vunpack.c.h.b16 %v2677
      %v3129 = vunpack.c.l.b16 %v2678
      %v3130 = vunpack.c.h.b16 %v2678
      %v3131 = vunpack.c.l.b16 %v2679
      %v3132 = vunpack.c.h.b16 %v2679
      %v3133 = vunpack.c.l.b16 %v2680
      %v3134 = vunpack.c.h.b16 %v2680
      %v3135 = vunpack.c.l.b16 %v2681
      %v3136 = vunpack.c.h.b16 %v2681
      %v3137 = vunpack.c.l.b16 %v2682
      %v3138 = vunpack.c.h.b16 %v2682
      %v3139 = vunpack.c.l.b16 %v2683
      %v3140 = vunpack.c.h.b16 %v2683
      %v3141 = vunpack.c.l.b16 %v2684
      %v3142 = vunpack.c.h.b16 %v2684
      %v3143 = vunpack.c.l.b16 %v2685
      %v3144 = vunpack.c.h.b16 %v2685
      %v3145 = vunpack.c.l.b16 %v2686
      %v3146 = vunpack.c.h.b16 %v2686
      %v3147 = vunpack.c.l.b16 %v2687
      %v3148 = vunpack.c.h.b16 %v2687
      %v3149 = vunpack.c.l.b16 %v2688
      %v3150 = vunpack.c.h.b16 %v2688
      %v3151 = vunpack.c.l.b16 %v2689
      %v3152 = vunpack.c.h.b16 %v2689
      %v3153 = vunpack.c.l.b16 %v2690
      %v3154 = vunpack.c.h.b16 %v2690
      %v3155 = vunpack.c.l.b16 %v2691
      %v3156 = vunpack.c.h.b16 %v2691
      %v3157 = vunpack.c.l.b16 %v2692
      %v3158 = vunpack.c.h.b16 %v2692
      %v3159 = vunpack.c.l.b16 %v2693
      %v3160 = vunpack.c.h.b16 %v2693
      %v3161 = vunpack.c.l.b16 %v2694
      %v3162 = vunpack.c.h.b16 %v2694
      %v3163 = vunpack.c.l.b16 %v2695
      %v3164 = vunpack.c.h.b16 %v2695
      %v3165 = vunpack.c.l.b16 %v2696
      %v3166 = vunpack.c.h.b16 %v2696
      %v3167 = vunpack.c.l.b16 %v2697
      %v3168 = vunpack.c.h.b16 %v2697
      %v3169 = vunpack.c.l.b16 %v2698
      %v3170 = vunpack.c.h.b16 %v2698
      %v3171 = vunpack.c.l.b16 %v2699
      %v3172 = vunpack.c.h.b16 %v2699
      %v3173 = vunpack.c.l.b16 %v2700
      %v3174 = vunpack.c.h.b16 %v2700
      %v3175 = vunpack.c.l.b16 %v2701
      %v3176 = vunpack.c.h.b16 %v2701
      %v3177 = vunpack.c.l.b16 %v2702
      %v3178 = vunpack.c.h.b16 %v2702
      %v3179 = vunpack.c.l.b16 %v2703
      %v3180 = vunpack.c.h.b16 %v2703
      %v3181 = vunpack.c.l.b16 %v2704
      %v3182 = vunpack.c.h.b16 %v2704
      %v3183 = vunpack.c.l.b16 %v2705
      %v3184 = vunpack.c.h.b16 %v2705
      %v3185 = vunpack.c.l.b16 %v2706
      %v3186 = vunpack.c.h.b16 %v2706
      %v3187 = vunpack.c.l.b16 %v2707
      %v3188 = vunpack.c.h.b16 %v2707
      %v3189 = vunpack.c.l.b16 %v2708
      %v3190 = vunpack.c.h.b16 %v2708
      %v3191 = vunpack.c.l.b16 %v2709
      %v3192 = vunpack.c.h.b16 %v2709
      %v3193 = vunpack.c.l.b16 %v2710
      %v3194 = vunpack.c.h.b16 %v2710
      %v3195 = vunpack.c.l.b16 %v2711
      %v3196 = vunpack.c.h.b16 %v2711
      %v3197 = vunpack.c.l.b16 %v2712
      %v3198 = vunpack.c.h.b16 %v2712
      %v3199 = vunpack.c.l.b16 %v2713
      %v3200 = vunpack.c.h.b16 %v2713
      %v3201 = vunpack.c.l.b16 %v2714
      %v3202 = vunpack.c.h.b16 %v2714
      %v3203 = vunpack.c.l.b16 %v2715
      %v3204 = vunpack.c.h.b16 %v2715
      %v3205 = vunpack.c.l.b16 %v2716
      %v3206 = vunpack.c.h.b16 %v2716
      %v3207 = vunpack.c.l.b16 %v2717
      %v3208 = vunpack.c.h.b16 %v2717
      %v3209 = vunpack.c.l.b16 %v2718
      %v3210 = vunpack.c.h.b16 %v2718
      %v3211 = vunpack.c.l.b16 %v2719
      %v3212 = vunpack.c.h.b16 %v2719
      %v3213 = vunpack.c.l.b16 %v2720
      %v3214 = vunpack.c.h.b16 %v2720
      %v3215 = vunpack.c.l.b16 %v2721
      %v3216 = vunpack.c.h.b16 %v2721
      %v3217 = vpack.c.b16 %v3075, %v3073
      %v3218 = vpack.c.b16 %v3076, %v3074
      %v3219 = vpack.c.b16 %v3079, %v3077
      %v3220 = vpack.c.b16 %v3080, %v3078
      %v3221 = vpack.c.b16 %v3083, %v3081
      %v3222 = vpack.c.b16 %v3084, %v3082
      %v3223 = vpack.c.b16 %v3087, %v3085
      %v3224 = vpack.c.b16 %v3088, %v3086
      %v3225 = vpack.c.b16 %v3091, %v3089
      %v3226 = vpack.c.b16 %v3092, %v3090
      %v3227 = vpack.c.b16 %v3095, %v3093
      %v3228 = vpack.c.b16 %v3096, %v3094
      %v3229 = vpack.c.b16 %v3099, %v3097
      %v3230 = vpack.c.b16 %v3100, %v3098
      %v3231 = vpack.c.b16 %v3103, %v3101
      %v3232 = vpack.c.b16 %v3104, %v3102
      %v3233 = vpack.c.b16 %v3107, %v3105
      %v3234 = vpack.c.b16 %v3108, %v3106
      %v3235 = vpack.c.b16 %v3111, %v3109
      %v3236 = vpack.c.b16 %v3112, %v3110
      %v3237 = vpack.c.b16 %v3115, %v3113
      %v3238 = vpack.c.b16 %v3116, %v3114
      %v3239 = vpack.c.b16 %v3119, %v3117
      %v3240 = vpack.c.b16 %v3120, %v3118
      %v3241 = vpack.c.b16 %v3123, %v3121
      %v3242 = vpack.c.b16 %v3124, %v3122
      %v3243 = vpack.c.b16 %v3127, %v3125
      %v3244 = vpack.c.b16 %v3128, %v3126
      %v3245 = vpack.c.b16 %v3131, %v3129
      %v3246 = vpack.c.b16 %v3132, %v3130
      %v3247 = vpack.c.b16 %v3135, %v3133
      %v3248 = vpack.c.b16 %v3136, %v3134
      %v3249 = vpack.c.b16 %v3139, %v3137
      %v3250 = vpack.c.b16 %v3140, %v3138
      %v3251 = vpack.c.b16 %v3143, %v3141
      %v3252 = vpack.c.b16 %v3144, %v3142
      %v3253 = vpack.c.b16 %v3147, %v3145
      %v3254 = vpack.c.b16 %v3148, %v3146
      %v3255 = vpack.c.b16 %v3151, %v3149
      %v3256 = vpack.c.b16 %v3152, %v3150
      %v3257 = vpack.c.b16 %v3155, %v3153
      %v3258 = vpack.c.b16 %v3156, %v3154
      %v3259 = vpack.c.b16 %v3159, %v3157
      %v3260 = vpack.c.b16 %v3160, %v3158
      %v3261 = vpack.c.b16 %v3163, %v3161
      %v3262 = vpack.c.b16 %v3164, %v3162
      %v3263 = vpack.c.b16 %v3167, %v3165
      %v3264 = vpack.c.b16 %v3168, %v3166
      %v3265 = vpack.c.b16 %v3171, %v3169
      %v3266 = vpack.c.b16 %v3172, %v3170
      %v3267 = vpack.c.b16 %v3175, %v3173
      %v3268 = vpack.c.b16 %v3176, %v3174
      %v3269 = vpack.c.b16 %v3179, %v3177
      %v3270 = vpack.c.b16 %v3180, %v3178
      %v3271 = vpack.c.b16 %v3183, %v3181
      %v3272 = vpack.c.b16 %v3184, %v3182
      %v3273 = vpack.c.b16 %v3187, %v3185
      %v3274 = vpack.c.b16 %v3188, %v3186
      %v3275 = vpack.c.b16 %v3191, %v3189
      %v3276 = vpack.c.b16 %v3192, %v3190
      %v3277 = vpack.c.b16 %v3195, %v3193
      %v3278 = vpack.c.b16 %v3196, %v3194
      %v3279 = vpack.c.b16 %v3199, %v3197
      %v3280 = vpack.c.b16 %v3200, %v3198
      %v3281 = vpack.c.b16 %v3203, %v3201
      %v3282 = vpack.c.b16 %v3204, %v3202
      %v3283 = vpack.c.b16 %v3207, %v3205
      %v3284 = vpack.c.b16 %v3208, %v3206
      %v3285 = vpack.c.b16 %v3211, %v3209
      %v3286 = vpack.c.b16 %v3212, %v3210
      %v3287 = vpack.c.b16 %v3215, %v3213
      %v3288 = vpack.c.b16 %v3216, %v3214
      %vm3361 = vcmask 523264
      %v3363 = vsel %vm3361, %v2924, 0
      %v3366 = vsel %vm3361, %v2929, 0
      %v3369 = vsel %vm3361, %v2934, 0
      %v3372 = vsel %vm3361, %v2939, 0
      %v3375 = vsel %vm3361, %v2944, 0
      %v3378 = vsel %vm3361, %v2949, 0
      %v3381 = vsel %vm3361, %v2954, 0
      %v3384 = vsel %vm3361, %v2959, 0
      %v3387 = vsel %vm3361, %v2964, 0
      %3389 = vmatprep.subr.bf16.mxu0 %v3218
      %3390 = vmatpush1.bf16.msra.mxu0 %v3217
      %3391 = vmatprep.subr.bf16.mxu0 %v3220
      %3392 = vmatpush1.bf16.msra.mxu0 %v3219
      %3393 = vmatprep.subr.bf16.mxu0 %v3222
      %3394 = vmatpush1.bf16.msra.mxu0 %v3221
      %3395 = vmatprep.subr.bf16.mxu0 %v3224
      %3396 = vmatpush1.bf16.msra.mxu0 %v3223
      %3397 = vmatprep.subr.bf16.mxu0 %v3226
      %3398 = vmatpush1.bf16.msra.mxu0 %v3225
      %3399 = vmatprep.subr.bf16.mxu0 %v3228
      %3400 = vmatpush1.bf16.msra.mxu0 %v3227
      %3401 = vmatprep.subr.bf16.mxu0 %v3230
      %3402 = vmatpush1.bf16.msra.mxu0 %v3229
      %3403 = vmatprep.subr.bf16.mxu0 %v3232
      %3404 = vmatpush1.bf16.msra.mxu0 %v3231
      %3405 = vmatprep.subr.bf16.mxu0 %v3234
      %3406 = vmatpush1.bf16.msra.mxu0 %v3233
      %3407 = vmatprep.subr.bf16.mxu0 %v3236
      %3408 = vmatpush1.bf16.msra.mxu0 %v3235
      %3409 = vmatprep.subr.bf16.mxu0 %v3238
      %3410 = vmatpush1.bf16.msra.mxu0 %v3237
      %3411 = vmatprep.subr.bf16.mxu0 %v3240
      %3412 = vmatpush1.bf16.msra.mxu0 %v3239
      %3413 = vmatprep.subr.bf16.mxu0 %v3242
      %3414 = vmatpush1.bf16.msra.mxu0 %v3241
      %3415 = vmatprep.subr.bf16.mxu0 %v3244
      %3416 = vmatpush1.bf16.msra.mxu0 %v3243
      %3417 = vmatprep.subr.bf16.mxu0 %v3246
      %3418 = vmatpush1.bf16.msra.mxu0 %v3245
      %3419 = vmatprep.subr.bf16.mxu0 %v3248
      %3420 = vmatpush1.bf16.msra.mxu0 %v3247
      %3421 = vmatprep.mubr.bf16.mxu0 %v2921
      %3422 = vmatmul.mubr.bf16.gmra.mrb[0].mxu0 %v2920
      %v3423 = vpop.f32.mrb[0].mxu0
      %v3424 = vadd.f32 0.0, %v3423
      %v3425 = vpop.f32.mrb[0].mxu0
      %v3426 = vadd.f32 0.0, %v3425
      %v3427 = vpop.f32.mrb[0].mxu0
      %v3428 = vadd.f32 0.0, %v3427
      %v3429 = vpop.f32.mrb[0].mxu0
      %v3430 = vadd.f32 0.0, %v3429
      %3431 = vmatprep.mubr.bf16.mxu0 %v2926
      %3432 = vmatmul.mubr.bf16.gmra.mrb[0].mxu0 %v2925
      %v3433 = vpop.f32.mrb[0].mxu0
      %v3434 = vadd.f32 0.0, %v3433
      %v3435 = vpop.f32.mrb[0].mxu0
      %v3436 = vadd.f32 0.0, %v3435
      %v3437 = vpop.f32.mrb[0].mxu0
      %v3438 = vadd.f32 0.0, %v3437
      %v3439 = vpop.f32.mrb[0].mxu0
      %v3440 = vadd.f32 0.0, %v3439
      %3441 = vmatprep.mubr.bf16.mxu0 %v2931
      %3442 = vmatmul.mubr.bf16.gmra.mrb[0].mxu0 %v2930
      %v3443 = vpop.f32.mrb[0].mxu0
      %v3444 = vadd.f32 0.0, %v3443
      %v3445 = vpop.f32.mrb[0].mxu0
      %v3446 = vadd.f32 0.0, %v3445
      %v3447 = vpop.f32.mrb[0].mxu0
      %v3448 = vadd.f32 0.0, %v3447
      %v3449 = vpop.f32.mrb[0].mxu0
      %v3450 = vadd.f32 0.0, %v3449
      %3451 = vmatprep.mubr.bf16.mxu0 %v2936
      %3452 = vmatmul.mubr.bf16.gmra.mrb[0].mxu0 %v2935
      %v3453 = vpop.f32.mrb[0].mxu0
      %v3454 = vadd.f32 0.0, %v3453
      %v3455 = vpop.f32.mrb[0].mxu0
      %v3456 = vadd.f32 0.0, %v3455
      %v3457 = vpop.f32.mrb[0].mxu0
      %v3458 = vadd.f32 0.0, %v3457
      %v3459 = vpop.f32.mrb[0].mxu0
      %v3460 = vadd.f32 0.0, %v3459
      %3461 = vmatprep.mubr.bf16.mxu0 %v2941
      %3462 = vmatmul.mubr.bf16.gmra.mrb[0].mxu0 %v2940
      %v3463 = vpop.f32.mrb[0].mxu0
      %v3464 = vadd.f32 0.0, %v3463
      %v3465 = vpop.f32.mrb[0].mxu0
      %v3466 = vadd.f32 0.0, %v3465
      %v3467 = vpop.f32.mrb[0].mxu0
      %v3468 = vadd.f32 0.0, %v3467
      %v3469 = vpop.f32.mrb[0].mxu0
      %v3470 = vadd.f32 0.0, %v3469
      %3471 = vmatprep.mubr.bf16.mxu0 %v2946
      %3472 = vmatmul.mubr.bf16.gmra.mrb[0].mxu0 %v2945
      %v3473 = vpop.f32.mrb[0].mxu0
      %v3474 = vadd.f32 0.0, %v3473
      %v3475 = vpop.f32.mrb[0].mxu0
      %v3476 = vadd.f32 0.0, %v3475
      %v3477 = vpop.f32.mrb[0].mxu0
      %v3478 = vadd.f32 0.0, %v3477
      %v3479 = vpop.f32.mrb[0].mxu0
      %v3480 = vadd.f32 0.0, %v3479
      %3481 = vmatprep.mubr.bf16.mxu0 %v2951
      %3482 = vmatmul.mubr.bf16.gmra.mrb[0].mxu0 %v2950
      %v3483 = vpop.f32.mrb[0].mxu0
      %v3484 = vadd.f32 0.0, %v3483
      %v3485 = vpop.f32.mrb[0].mxu0
      %v3486 = vadd.f32 0.0, %v3485
      %v3487 = vpop.f32.mrb[0].mxu0
      %v3488 = vadd.f32 0.0, %v3487
      %v3489 = vpop.f32.mrb[0].mxu0
      %v3490 = vadd.f32 0.0, %v3489
      %3491 = vmatprep.mubr.bf16.mxu0 %v2956
      %3492 = vmatmul.mubr.bf16.gmra.mrb[0].mxu0 %v2955
      %v3493 = vpop.f32.mrb[0].mxu0
      %v3494 = vadd.f32 0.0, %v3493
      %v3495 = vpop.f32.mrb[0].mxu0
      %v3496 = vadd.f32 0.0, %v3495
      %v3497 = vpop.f32.mrb[0].mxu0
      %v3498 = vadd.f32 0.0, %v3497
      %v3499 = vpop.f32.mrb[0].mxu0
      %v3500 = vadd.f32 0.0, %v3499
      %3501 = vmatprep.mubr.bf16.mxu0 %v2961
      %3502 = vmatmul.mubr.bf16.gmra.mrb[0].mxu0 %v2960
      %v3503 = vpop.f32.mrb[0].mxu0
      %v3504 = vadd.f32 0.0, %v3503
      %v3505 = vpop.f32.mrb[0].mxu0
      %v3506 = vadd.f32 0.0, %v3505
      %v3507 = vpop.f32.mrb[0].mxu0
      %v3508 = vadd.f32 0.0, %v3507
      %v3509 = vpop.f32.mrb[0].mxu0
      %v3510 = vadd.f32 0.0, %v3509
      %3511 = vdwg.mxu0
      %3512 = vmatprep.subr.bf16.mxu0 %v3250
      %3513 = vmatpush1.bf16.msra.mxu0 %v3249
      %3514 = vmatprep.subr.bf16.mxu0 %v3252
      %3515 = vmatpush1.bf16.msra.mxu0 %v3251
      %3516 = vmatprep.subr.bf16.mxu0 %v3254
      %3517 = vmatpush1.bf16.msra.mxu0 %v3253
      %3518 = vmatprep.subr.bf16.mxu0 %v3256
      %3519 = vmatpush1.bf16.msra.mxu0 %v3255
      %3520 = vmatprep.subr.bf16.mxu0 %v3258
      %3521 = vmatpush1.bf16.msra.mxu0 %v3257
      %3522 = vmatprep.subr.bf16.mxu0 %v3260
      %3523 = vmatpush1.bf16.msra.mxu0 %v3259
      %3524 = vmatprep.subr.bf16.mxu0 %v3262
      %3525 = vmatpush1.bf16.msra.mxu0 %v3261
      %3526 = vmatprep.subr.bf16.mxu0 %v3264
      %3527 = vmatpush1.bf16.msra.mxu0 %v3263
      %3528 = vmatprep.subr.bf16.mxu0 %v3266
      %3529 = vmatpush1.bf16.msra.mxu0 %v3265
      %3530 = vmatprep.subr.bf16.mxu0 %v3268
      %3531 = vmatpush1.bf16.msra.mxu0 %v3267
      %3532 = vmatprep.subr.bf16.mxu0 %v3270
      %3533 = vmatpush1.bf16.msra.mxu0 %v3269
      %3534 = vmatprep.subr.bf16.mxu0 %v3272
      %3535 = vmatpush1.bf16.msra.mxu0 %v3271
      %3536 = vmatprep.subr.bf16.mxu0 %v3274
      %3537 = vmatpush1.bf16.msra.mxu0 %v3273
      %3538 = vmatprep.subr.bf16.mxu0 %v3276
      %3539 = vmatpush1.bf16.msra.mxu0 %v3275
      %3540 = vmatprep.subr.bf16.mxu0 %v3278
      %3541 = vmatpush1.bf16.msra.mxu0 %v3277
      %3542 = vmatprep.subr.bf16.mxu0 %v3280
      %3543 = vmatpush1.bf16.msra.mxu0 %v3279
      %3544 = vmatprep.mubr.bf16.mxu0 %v2923
      %3545 = vmatmul.mubr.bf16.gmra.mrb[0].mxu0 %v2922
      %v3546 = vpop.f32.mrb[0].mxu0
      %v3547 = vadd.f32 %v3424, %v3546
      %v3548 = vpop.f32.mrb[0].mxu0
      %v3549 = vadd.f32 %v3426, %v3548
      %v3550 = vpop.f32.mrb[0].mxu0
      %v3551 = vadd.f32 %v3428, %v3550
      %v3552 = vpop.f32.mrb[0].mxu0
      %v3553 = vadd.f32 %v3430, %v3552
      %3554 = vmatprep.mubr.bf16.mxu0 %v2928
      %3555 = vmatmul.mubr.bf16.gmra.mrb[0].mxu0 %v2927
      %v3556 = vpop.f32.mrb[0].mxu0
      %v3557 = vadd.f32 %v3434, %v3556
      %v3558 = vpop.f32.mrb[0].mxu0
      %v3559 = vadd.f32 %v3436, %v3558
      %v3560 = vpop.f32.mrb[0].mxu0
      %v3561 = vadd.f32 %v3438, %v3560
      %v3562 = vpop.f32.mrb[0].mxu0
      %v3563 = vadd.f32 %v3440, %v3562
      %3564 = vmatprep.mubr.bf16.mxu0 %v2933
      %3565 = vmatmul.mubr.bf16.gmra.mrb[0].mxu0 %v2932
      %v3566 = vpop.f32.mrb[0].mxu0
      %v3567 = vadd.f32 %v3444, %v3566
      %v3568 = vpop.f32.mrb[0].mxu0
      %v3569 = vadd.f32 %v3446, %v3568
      %v3570 = vpop.f32.mrb[0].mxu0
      %v3571 = vadd.f32 %v3448, %v3570
      %v3572 = vpop.f32.mrb[0].mxu0
      %v3573 = vadd.f32 %v3450, %v3572
      %3574 = vmatprep.mubr.bf16.mxu0 %v2938
      %3575 = vmatmul.mubr.bf16.gmra.mrb[0].mxu0 %v2937
      %v3576 = vpop.f32.mrb[0].mxu0
      %v3577 = vadd.f32 %v3454, %v3576
      %v3578 = vpop.f32.mrb[0].mxu0
      %v3579 = vadd.f32 %v3456, %v3578
      %v3580 = vpop.f32.mrb[0].mxu0
      %v3581 = vadd.f32 %v3458, %v3580
      %v3582 = vpop.f32.mrb[0].mxu0
      %v3583 = vadd.f32 %v3460, %v3582
      %3584 = vmatprep.mubr.bf16.mxu0 %v2943
      %3585 = vmatmul.mubr.bf16.gmra.mrb[0].mxu0 %v2942
      %v3586 = vpop.f32.mrb[0].mxu0
      %v3587 = vadd.f32 %v3464, %v3586
      %v3588 = vpop.f32.mrb[0].mxu0
      %v3589 = vadd.f32 %v3466, %v3588
      %v3590 = vpop.f32.mrb[0].mxu0
      %v3591 = vadd.f32 %v3468, %v3590
      %v3592 = vpop.f32.mrb[0].mxu0
      %v3593 = vadd.f32 %v3470, %v3592
      %3594 = vmatprep.mubr.bf16.mxu0 %v2948
      %3595 = vmatmul.mubr.bf16.gmra.mrb[0].mxu0 %v2947
      %v3596 = vpop.f32.mrb[0].mxu0
      %v3597 = vadd.f32 %v3474, %v3596
      %v3598 = vpop.f32.mrb[0].mxu0
      %v3599 = vadd.f32 %v3476, %v3598
      %v3600 = vpop.f32.mrb[0].mxu0
      %v3601 = vadd.f32 %v3478, %v3600
      %v3602 = vpop.f32.mrb[0].mxu0
      %v3603 = vadd.f32 %v3480, %v3602
      %3604 = vmatprep.mubr.bf16.mxu0 %v2953
      %3605 = vmatmul.mubr.bf16.gmra.mrb[0].mxu0 %v2952
      %v3606 = vpop.f32.mrb[0].mxu0
      %v3607 = vadd.f32 %v3484, %v3606
      %v3608 = vpop.f32.mrb[0].mxu0
      %v3609 = vadd.f32 %v3486, %v3608
      %v3610 = vpop.f32.mrb[0].mxu0
      %v3611 = vadd.f32 %v3488, %v3610
      %v3612 = vpop.f32.mrb[0].mxu0
      %v3613 = vadd.f32 %v3490, %v3612
      %3614 = vmatprep.mubr.bf16.mxu0 %v2958
      %3615 = vmatmul.mubr.bf16.gmra.mrb[0].mxu0 %v2957
      %v3616 = vpop.f32.mrb[0].mxu0
      %v3617 = vadd.f32 %v3494, %v3616
      %v3618 = vpop.f32.mrb[0].mxu0
      %v3619 = vadd.f32 %v3496, %v3618
      %v3620 = vpop.f32.mrb[0].mxu0
      %v3621 = vadd.f32 %v3498, %v3620
      %v3622 = vpop.f32.mrb[0].mxu0
      %v3623 = vadd.f32 %v3500, %v3622
      %3624 = vmatprep.mubr.bf16.mxu0 %v2963
      %3625 = vmatmul.mubr.bf16.gmra.mrb[0].mxu0 %v2962
      %v3626 = vpop.f32.mrb[0].mxu0
      %v3627 = vadd.f32 %v3504, %v3626
      %v3628 = vpop.f32.mrb[0].mxu0
      %v3629 = vadd.f32 %v3506, %v3628
      %v3630 = vpop.f32.mrb[0].mxu0
      %v3631 = vadd.f32 %v3508, %v3630
      %v3632 = vpop.f32.mrb[0].mxu0
      %v3633 = vadd.f32 %v3510, %v3632
      %3634 = vdwg.mxu0
      %3635 = vmatprep.subr.bf16.mxu0 %v3282
      %3636 = vmatpush1.bf16.msra.mxu0 %v3281
      %3637 = vmatprep.subr.bf16.mxu0 %v3284
      %3638 = vmatpush1.bf16.msra.mxu0 %v3283
      %3639 = vmatprep.subr.bf16.mxu0 %v3286
      %3640 = vmatpush1.bf16.msra.mxu0 %v3285
      %3641 = vmatprep.subr.bf16.mxu0 %v3288
      %3642 = vmatpush1.bf16.msra.mxu0 %v3287
      %3643 = vmatprep.subr.bf16.mxu0 0
      %3644 = vmatpush1.bf16.msra.mxu0 0
      %3645 = vmatprep.subr.bf16.mxu0 0
      %3646 = vmatpush1.bf16.msra.mxu0 0
      %3647 = vmatprep.subr.bf16.mxu0 0
      %3648 = vmatpush1.bf16.msra.mxu0 0
      %3649 = vmatprep.subr.bf16.mxu0 0
      %3650 = vmatpush1.bf16.msra.mxu0 0
      %3651 = vmatprep.subr.bf16.mxu0 0
      %3652 = vmatpush1.bf16.msra.mxu0 0
      %3653 = vmatprep.subr.bf16.mxu0 0
      %3654 = vmatpush1.bf16.msra.mxu0 0
      %3655 = vmatprep.subr.bf16.mxu0 0
      %3656 = vmatpush1.bf16.msra.mxu0 0
      %3657 = vmatprep.subr.bf16.mxu0 0
      %3658 = vmatpush1.bf16.msra.mxu0 0
      %3659 = vmatprep.subr.bf16.mxu0 0
      %3660 = vmatpush1.bf16.msra.mxu0 0
      %3661 = vmatprep.subr.bf16.mxu0 0
      %3662 = vmatpush1.bf16.msra.mxu0 0
      %3663 = vmatprep.subr.bf16.mxu0 0
      %3664 = vmatpush1.bf16.msra.mxu0 0
      %3665 = vmatprep.subr.bf16.mxu0 0
      %3666 = vmatpush1.bf16.msra.mxu0 0
      %3667 = vmatprep.mubr.bf16.mxu0 0
      %3668 = vmatmul.mubr.bf16.gmra.mrb[0].mxu0 %v3363
      %v3669 = vpop.f32.mrb[0].mxu0
      %v3670 = vadd.f32 %v3547, %v3669
      %v3671 = vpop.f32.mrb[0].mxu0
      %v3672 = vadd.f32 %v3549, %v3671
      %v3673 = vpop.f32.mrb[0].mxu0
      %v3674 = vadd.f32 %v3551, %v3673
      %v3675 = vpop.f32.mrb[0].mxu0
      %v3676 = vadd.f32 %v3553, %v3675
      %3677 = vmatprep.mubr.bf16.mxu0 0
      %3678 = vmatmul.mubr.bf16.gmra.mrb[0].mxu0 %v3366
      %v3679 = vpop.f32.mrb[0].mxu0
      %v3680 = vadd.f32 %v3557, %v3679
      %v3681 = vpop.f32.mrb[0].mxu0
      %v3682 = vadd.f32 %v3559, %v3681
      %v3683 = vpop.f32.mrb[0].mxu0
      %v3684 = vadd.f32 %v3561, %v3683
      %v3685 = vpop.f32.mrb[0].mxu0
      %v3686 = vadd.f32 %v3563, %v3685
      %3687 = vmatprep.mubr.bf16.mxu0 0
      %3688 = vmatmul.mubr.bf16.gmra.mrb[0].mxu0 %v3369
      %v3689 = vpop.f32.mrb[0].mxu0
      %v3690 = vadd.f32 %v3567, %v3689
      %v3691 = vpop.f32.mrb[0].mxu0
      %v3692 = vadd.f32 %v3569, %v3691
      %v3693 = vpop.f32.mrb[0].mxu0
      %v3694 = vadd.f32 %v3571, %v3693
      %v3695 = vpop.f32.mrb[0].mxu0
      %v3696 = vadd.f32 %v3573, %v3695
      %3697 = vmatprep.mubr.bf16.mxu0 0
      %3698 = vmatmul.mubr.bf16.gmra.mrb[0].mxu0 %v3372
      %v3699 = vpop.f32.mrb[0].mxu0
      %v3700 = vadd.f32 %v3577, %v3699
      %v3701 = vpop.f32.mrb[0].mxu0
      %v3702 = vadd.f32 %v3579, %v3701
      %v3703 = vpop.f32.mrb[0].mxu0
      %v3704 = vadd.f32 %v3581, %v3703
      %v3705 = vpop.f32.mrb[0].mxu0
      %v3706 = vadd.f32 %v3583, %v3705
      %3707 = vmatprep.mubr.bf16.mxu0 0
      %3708 = vmatmul.mubr.bf16.gmra.mrb[0].mxu0 %v3375
      %v3709 = vpop.f32.mrb[0].mxu0
      %v3710 = vadd.f32 %v3587, %v3709
      %v3711 = vpop.f32.mrb[0].mxu0
      %v3712 = vadd.f32 %v3589, %v3711
      %v3713 = vpop.f32.mrb[0].mxu0
      %v3714 = vadd.f32 %v3591, %v3713
      %v3715 = vpop.f32.mrb[0].mxu0
      %v3716 = vadd.f32 %v3593, %v3715
      %3717 = vmatprep.mubr.bf16.mxu0 0
      %3718 = vmatmul.mubr.bf16.gmra.mrb[0].mxu0 %v3378
      %v3719 = vpop.f32.mrb[0].mxu0
      %v3720 = vadd.f32 %v3597, %v3719
      %v3721 = vpop.f32.mrb[0].mxu0
      %v3722 = vadd.f32 %v3599, %v3721
      %v3723 = vpop.f32.mrb[0].mxu0
      %v3724 = vadd.f32 %v3601, %v3723
      %v3725 = vpop.f32.mrb[0].mxu0
      %v3726 = vadd.f32 %v3603, %v3725
      %3727 = vmatprep.mubr.bf16.mxu0 0
      %3728 = vmatmul.mubr.bf16.gmra.mrb[0].mxu0 %v3381
      %v3729 = vpop.f32.mrb[0].mxu0
      %v3730 = vadd.f32 %v3607, %v3729
      %v3731 = vpop.f32.mrb[0].mxu0
      %v3732 = vadd.f32 %v3609, %v3731
      %v3733 = vpop.f32.mrb[0].mxu0
      %v3734 = vadd.f32 %v3611, %v3733
      %v3735 = vpop.f32.mrb[0].mxu0
      %v3736 = vadd.f32 %v3613, %v3735
      %3737 = vmatprep.mubr.bf16.mxu0 0
      %3738 = vmatmul.mubr.bf16.gmra.mrb[0].mxu0 %v3384
      %v3739 = vpop.f32.mrb[0].mxu0
      %v3740 = vadd.f32 %v3617, %v3739
      %v3741 = vpop.f32.mrb[0].mxu0
      %v3742 = vadd.f32 %v3619, %v3741
      %v3743 = vpop.f32.mrb[0].mxu0
      %v3744 = vadd.f32 %v3621, %v3743
      %v3745 = vpop.f32.mrb[0].mxu0
      %v3746 = vadd.f32 %v3623, %v3745
      %3747 = vmatprep.mubr.bf16.mxu0 0
      %3748 = vmatmul.mubr.bf16.gmra.mrb[0].mxu0 %v3387
      %v3749 = vpop.f32.mrb[0].mxu0
      %v3750 = vadd.f32 %v3627, %v3749
      %v3751 = vpop.f32.mrb[0].mxu0
      %v3752 = vadd.f32 %v3629, %v3751
      %v3753 = vpop.f32.mrb[0].mxu0
      %v3754 = vadd.f32 %v3631, %v3753
      %v3755 = vpop.f32.mrb[0].mxu0
      %v3756 = vadd.f32 %v3633, %v3755
      %3757 = vdwg.mxu0
      %vm3758 = vcmask 556032
      %v3759 = vsel %vm3758, %v3672, 0.0
      %v3760 = vadd.f32 %v3670, %v3759
      %3761 = vadd.xlane.f32.xlu0 %v3760
      %v3762 = vpop.xlane.xlu0 %3761
      %v3763 = vsel %vm3758, %v3676, 0.0
      %v3764 = vadd.f32 %v3674, %v3763
      %3765 = vadd.xlane.f32.xlu0 %v3764
      %v3766 = vpop.xlane.xlu0 %3765
      %v3767 = vsel %vm3758, %v3682, 0.0
      %v3768 = vadd.f32 %v3680, %v3767
      %3769 = vadd.xlane.f32.xlu0 %v3768
      %v3770 = vpop.xlane.xlu0 %3769
      %v3771 = vsel %vm3758, %v3686, 0.0
      %v3772 = vadd.f32 %v3684, %v3771
      %3773 = vadd.xlane.f32.xlu0 %v3772
      %v3774 = vpop.xlane.xlu0 %3773
      %v3775 = vsel %vm3758, %v3692, 0.0
      %v3776 = vadd.f32 %v3690, %v3775
      %3777 = vadd.xlane.f32.xlu0 %v3776
      %v3778 = vpop.xlane.xlu0 %3777
      %v3779 = vsel %vm3758, %v3696, 0.0
      %v3780 = vadd.f32 %v3694, %v3779
      %3781 = vadd.xlane.f32.xlu0 %v3780
      %v3782 = vpop.xlane.xlu0 %3781
      %v3783 = vsel %vm3758, %v3702, 0.0
      %v3784 = vadd.f32 %v3700, %v3783
      %3785 = vadd.xlane.f32.xlu0 %v3784
      %v3786 = vpop.xlane.xlu0 %3785
      %v3787 = vsel %vm3758, %v3706, 0.0
      %v3788 = vadd.f32 %v3704, %v3787
      %3789 = vadd.xlane.f32.xlu0 %v3788
      %v3790 = vpop.xlane.xlu0 %3789
      %v3791 = vsel %vm3758, %v3712, 0.0
      %v3792 = vadd.f32 %v3710, %v3791
      %3793 = vadd.xlane.f32.xlu0 %v3792
      %v3794 = vpop.xlane.xlu0 %3793
      %v3795 = vsel %vm3758, %v3716, 0.0
      %v3796 = vadd.f32 %v3714, %v3795
      %3797 = vadd.xlane.f32.xlu0 %v3796
      %v3798 = vpop.xlane.xlu0 %3797
      %v3799 = vsel %vm3758, %v3722, 0.0
      %v3800 = vadd.f32 %v3720, %v3799
      %3801 = vadd.xlane.f32.xlu0 %v3800
      %v3802 = vpop.xlane.xlu0 %3801
      %v3803 = vsel %vm3758, %v3726, 0.0
      %v3804 = vadd.f32 %v3724, %v3803
      %3805 = vadd.xlane.f32.xlu0 %v3804
      %v3806 = vpop.xlane.xlu0 %3805
      %v3807 = vsel %vm3758, %v3732, 0.0
      %v3808 = vadd.f32 %v3730, %v3807
      %3809 = vadd.xlane.f32.xlu0 %v3808
      %v3810 = vpop.xlane.xlu0 %3809
      %v3811 = vsel %vm3758, %v3736, 0.0
      %v3812 = vadd.f32 %v3734, %v3811
      %3813 = vadd.xlane.f32.xlu0 %v3812
      %v3814 = vpop.xlane.xlu0 %3813
      %v3815 = vsel %vm3758, %v3742, 0.0
      %v3816 = vadd.f32 %v3740, %v3815
      %3817 = vadd.xlane.f32.xlu0 %v3816
      %v3818 = vpop.xlane.xlu0 %3817
      %v3819 = vsel %vm3758, %v3746, 0.0
      %v3820 = vadd.f32 %v3744, %v3819
      %3821 = vadd.xlane.f32.xlu0 %v3820
      %v3822 = vpop.xlane.xlu0 %3821
      %v3823 = vsel %vm3758, %v3752, 0.0
      %v3824 = vadd.f32 %v3750, %v3823
      %3825 = vadd.xlane.f32.xlu0 %v3824
      %v3826 = vpop.xlane.xlu0 %3825
      %v3827 = vsel %vm3758, %v3756, 0.0
      %v3828 = vadd.f32 %v3754, %v3827
      %3829 = vadd.xlane.f32.xlu0 %v3828
      %v3830 = vpop.xlane.xlu0 %3829
      %v3831 = vmul.f32 %v3762, 0.0051020407
      %v3832 = vmul.f32 %v3766, 0.0051020407
      %v3833 = vmul.f32 %v3770, 0.0051020407
      %v3834 = vmul.f32 %v3774, 0.0051020407
      %v3835 = vmul.f32 %v3778, 0.0051020407
      %v3836 = vmul.f32 %v3782, 0.0051020407
      %v3837 = vmul.f32 %v3786, 0.0051020407
      %v3838 = vmul.f32 %v3790, 0.0051020407
      %v3839 = vmul.f32 %v3794, 0.0051020407
      %v3840 = vmul.f32 %v3798, 0.0051020407
      %v3841 = vmul.f32 %v3802, 0.0051020407
      %v3842 = vmul.f32 %v3806, 0.0051020407
      %v3843 = vmul.f32 %v3810, 0.0051020407
      %v3844 = vmul.f32 %v3814, 0.0051020407
      %v3845 = vmul.f32 %v3818, 0.0051020407
      %v3846 = vmul.f32 %v3822, 0.0051020407
      %v3847 = vmul.f32 %v3826, 0.0051020407
      %v3848 = vmul.f32 %v3830, 0.0051020407
      %v3849 = vmul.f32 %v3670, %v3670
      %v3850 = vmul.f32 %v3672, %v3672
      %v3851 = vmul.f32 %v3674, %v3674
      %v3852 = vmul.f32 %v3676, %v3676
      %v3853 = vmul.f32 %v3680, %v3680
      %v3854 = vmul.f32 %v3682, %v3682
      %v3855 = vmul.f32 %v3684, %v3684
      %v3856 = vmul.f32 %v3686, %v3686
      %v3857 = vmul.f32 %v3690, %v3690
      %v3858 = vmul.f32 %v3692, %v3692
      %v3859 = vmul.f32 %v3694, %v3694
      %v3860 = vmul.f32 %v3696, %v3696
      %v3861 = vmul.f32 %v3700, %v3700
      %v3862 = vmul.f32 %v3702, %v3702
      %v3863 = vmul.f32 %v3704, %v3704
      %v3864 = vmul.f32 %v3706, %v3706
      %v3865 = vmul.f32 %v3710, %v3710
      %v3866 = vmul.f32 %v3712, %v3712
      %v3867 = vmul.f32 %v3714, %v3714
      %v3868 = vmul.f32 %v3716, %v3716
      %v3869 = vmul.f32 %v3720, %v3720
      %v3870 = vmul.f32 %v3722, %v3722
      %v3871 = vmul.f32 %v3724, %v3724
      %v3872 = vmul.f32 %v3726, %v3726
      %v3873 = vmul.f32 %v3730, %v3730
      %v3874 = vmul.f32 %v3732, %v3732
      %v3875 = vmul.f32 %v3734, %v3734
      %v3876 = vmul.f32 %v3736, %v3736
      %v3877 = vmul.f32 %v3740, %v3740
      %v3878 = vmul.f32 %v3742, %v3742
      %v3879 = vmul.f32 %v3744, %v3744
      %v3880 = vmul.f32 %v3746, %v3746
      %v3881 = vmul.f32 %v3750, %v3750
      %v3882 = vmul.f32 %v3752, %v3752
      %v3883 = vmul.f32 %v3754, %v3754
      %v3884 = vmul.f32 %v3756, %v3756
      %v3885 = vsel %vm3758, %v3850, 0.0
      %v3886 = vadd.f32 %v3849, %v3885
      %3887 = vadd.xlane.f32.xlu0 %v3886
      %v3888 = vpop.xlane.xlu0 %3887
      %v3889 = vsel %vm3758, %v3852, 0.0
      %v3890 = vadd.f32 %v3851, %v3889
      %3891 = vadd.xlane.f32.xlu0 %v3890
      %v3892 = vpop.xlane.xlu0 %3891
      %v3893 = vsel %vm3758, %v3854, 0.0
      %v3894 = vadd.f32 %v3853, %v3893
      %3895 = vadd.xlane.f32.xlu0 %v3894
      %v3896 = vpop.xlane.xlu0 %3895
      %v3897 = vsel %vm3758, %v3856, 0.0
      %v3898 = vadd.f32 %v3855, %v3897
      %3899 = vadd.xlane.f32.xlu0 %v3898
      %v3900 = vpop.xlane.xlu0 %3899
      %v3901 = vsel %vm3758, %v3858, 0.0
      %v3902 = vadd.f32 %v3857, %v3901
      %3903 = vadd.xlane.f32.xlu0 %v3902
      %v3904 = vpop.xlane.xlu0 %3903
      %v3905 = vsel %vm3758, %v3860, 0.0
      %v3906 = vadd.f32 %v3859, %v3905
      %3907 = vadd.xlane.f32.xlu0 %v3906
      %v3908 = vpop.xlane.xlu0 %3907
      %v3909 = vsel %vm3758, %v3862, 0.0
      %v3910 = vadd.f32 %v3861, %v3909
      %3911 = vadd.xlane.f32.xlu0 %v3910
      %v3912 = vpop.xlane.xlu0 %3911
      %v3913 = vsel %vm3758, %v3864, 0.0
      %v3914 = vadd.f32 %v3863, %v3913
      %3915 = vadd.xlane.f32.xlu0 %v3914
      %v3916 = vpop.xlane.xlu0 %3915
      %v3917 = vsel %vm3758, %v3866, 0.0
      %v3918 = vadd.f32 %v3865, %v3917
      %3919 = vadd.xlane.f32.xlu0 %v3918
      %v3920 = vpop.xlane.xlu0 %3919
      %v3921 = vsel %vm3758, %v3868, 0.0
      %v3922 = vadd.f32 %v3867, %v3921
      %3923 = vadd.xlane.f32.xlu0 %v3922
      %v3924 = vpop.xlane.xlu0 %3923
      %v3925 = vsel %vm3758, %v3870, 0.0
      %v3926 = vadd.f32 %v3869, %v3925
      %3927 = vadd.xlane.f32.xlu0 %v3926
      %v3928 = vpop.xlane.xlu0 %3927
      %v3929 = vsel %vm3758, %v3872, 0.0
      %v3930 = vadd.f32 %v3871, %v3929
      %3931 = vadd.xlane.f32.xlu0 %v3930
      %v3932 = vpop.xlane.xlu0 %3931
      %v3933 = vsel %vm3758, %v3874, 0.0
      %v3934 = vadd.f32 %v3873, %v3933
      %3935 = vadd.xlane.f32.xlu0 %v3934
      %v3936 = vpop.xlane.xlu0 %3935
      %v3937 = vsel %vm3758, %v3876, 0.0
      %v3938 = vadd.f32 %v3875, %v3937
      %3939 = vadd.xlane.f32.xlu0 %v3938
      %v3940 = vpop.xlane.xlu0 %3939
      %v3941 = vsel %vm3758, %v3878, 0.0
      %v3942 = vadd.f32 %v3877, %v3941
      %3943 = vadd.xlane.f32.xlu0 %v3942
      %v3944 = vpop.xlane.xlu0 %3943
      %v3945 = vsel %vm3758, %v3880, 0.0
      %v3946 = vadd.f32 %v3879, %v3945
      %3947 = vadd.xlane.f32.xlu0 %v3946
      %v3948 = vpop.xlane.xlu0 %3947
      %v3949 = vsel %vm3758, %v3882, 0.0
      %v3950 = vadd.f32 %v3881, %v3949
      %3951 = vadd.xlane.f32.xlu0 %v3950
      %v3952 = vpop.xlane.xlu0 %3951
      %v3953 = vsel %vm3758, %v3884, 0.0
      %v3954 = vadd.f32 %v3883, %v3953
      %3955 = vadd.xlane.f32.xlu0 %v3954
      %v3956 = vpop.xlane.xlu0 %3955
      %v3957 = vmul.f32 %v3888, 0.0051020407
      %v3958 = vmul.f32 %v3892, 0.0051020407
      %v3959 = vmul.f32 %v3896, 0.0051020407
      %v3960 = vmul.f32 %v3900, 0.0051020407
      %v3961 = vmul.f32 %v3904, 0.0051020407
      %v3962 = vmul.f32 %v3908, 0.0051020407
      %v3963 = vmul.f32 %v3912, 0.0051020407
      %v3964 = vmul.f32 %v3916, 0.0051020407
      %v3965 = vmul.f32 %v3920, 0.0051020407
      %v3966 = vmul.f32 %v3924, 0.0051020407
      %v3967 = vmul.f32 %v3928, 0.0051020407
      %v3968 = vmul.f32 %v3932, 0.0051020407
      %v3969 = vmul.f32 %v3936, 0.0051020407
      %v3970 = vmul.f32 %v3940, 0.0051020407
      %v3971 = vmul.f32 %v3944, 0.0051020407
      %v3972 = vmul.f32 %v3948, 0.0051020407
      %v3973 = vmul.f32 %v3952, 0.0051020407
      %v3974 = vmul.f32 %v3956, 0.0051020407
      %v3975 = vmul.f32 %v3831, %v3831
      %v3976 = vmul.f32 %v3832, %v3832
      %v3977 = vmul.f32 %v3833, %v3833
      %v3978 = vmul.f32 %v3834, %v3834
      %v3979 = vmul.f32 %v3835, %v3835
      %v3980 = vmul.f32 %v3836, %v3836
      %v3981 = vmul.f32 %v3837, %v3837
      %v3982 = vmul.f32 %v3838, %v3838
      %v3983 = vmul.f32 %v3839, %v3839
      %v3984 = vmul.f32 %v3840, %v3840
      %v3985 = vmul.f32 %v3841, %v3841
      %v3986 = vmul.f32 %v3842, %v3842
      %v3987 = vmul.f32 %v3843, %v3843
      %v3988 = vmul.f32 %v3844, %v3844
      %v3989 = vmul.f32 %v3845, %v3845
      %v3990 = vmul.f32 %v3846, %v3846
      %v3991 = vmul.f32 %v3847, %v3847
      %v3992 = vmul.f32 %v3848, %v3848
      %v3993 = vsub.f32 %v3957, %v3975
      %v3994 = vsub.f32 %v3958, %v3976
      %v3995 = vsub.f32 %v3959, %v3977
      %v3996 = vsub.f32 %v3960, %v3978
      %v3997 = vsub.f32 %v3961, %v3979
      %v3998 = vsub.f32 %v3962, %v3980
      %v3999 = vsub.f32 %v3963, %v3981
      %v4000 = vsub.f32 %v3964, %v3982
      %v4001 = vsub.f32 %v3965, %v3983
      %v4002 = vsub.f32 %v3966, %v3984
      %v4003 = vsub.f32 %v3967, %v3985
      %v4004 = vsub.f32 %v3968, %v3986
      %v4005 = vsub.f32 %v3969, %v3987
      %v4006 = vsub.f32 %v3970, %v3988
      %v4007 = vsub.f32 %v3971, %v3989
      %v4008 = vsub.f32 %v3972, %v3990
      %v4009 = vsub.f32 %v3973, %v3991
      %v4010 = vsub.f32 %v3974, %v3992
      %v4011 = vmax.f32 %v3993, 0.0
      %v4012 = vmax.f32 %v3994, 0.0
      %v4013 = vmax.f32 %v3995, 0.0
      %v4014 = vmax.f32 %v3996, 0.0
      %v4015 = vmax.f32 %v3997, 0.0
      %v4016 = vmax.f32 %v3998, 0.0
      %v4017 = vmax.f32 %v3999, 0.0
      %v4018 = vmax.f32 %v4000, 0.0
      %v4019 = vmax.f32 %v4001, 0.0
      %v4020 = vmax.f32 %v4002, 0.0
      %v4021 = vmax.f32 %v4003, 0.0
      %v4022 = vmax.f32 %v4004, 0.0
      %v4023 = vmax.f32 %v4005, 0.0
      %v4024 = vmax.f32 %v4006, 0.0
      %v4025 = vmax.f32 %v4007, 0.0
      %v4026 = vmax.f32 %v4008, 0.0
      %v4027 = vmax.f32 %v4009, 0.0
      %v4028 = vmax.f32 %v4010, 0.0
      %v4029 = vld [vmem:[%s368] sm:$0xff]
      %v4030 = vld [vmem:[%s368 + $0x8] sm:$0xff]
      %v4031 = vld [vmem:[%s368 + $0x10] sm:$0xff]
      %v4032 = vld [vmem:[%s368 + $0x18] sm:$0xff]
      %v4033 = vld [vmem:[%s368 + $0x20] sm:$0xff]
      %v4034 = vld [vmem:[%s368 + $0x28] sm:$0xff]
      %v4035 = vld [vmem:[%s368 + $0x30] sm:$0xff]
      %v4036 = vld [vmem:[%s368 + $0x38] sm:$0xff]
      %v4037 = vld [vmem:[%s368 + $0x40] sm:$0xff]
      %v4038 = vld [vmem:[%s368 + $0x48] sm:$0xff]
      %v4039 = vld [vmem:[%s368 + $0x50] sm:$0xff]
      %v4040 = vld [vmem:[%s368 + $0x58] sm:$0xff]
      %v4041 = vld [vmem:[%s368 + $0x60] sm:$0xff]
      %v4042 = vld [vmem:[%s368 + $0x68] sm:$0xff]
      %v4043 = vld [vmem:[%s368 + $0x70] sm:$0xff]
      %v4044 = vld [vmem:[%s368 + $0x78] sm:$0xff]
      %v4045 = vld [vmem:[%s368 + $0x80] sm:$0xff]
      %v4046 = vld [vmem:[%s368 + $0x88] sm:$0xff]
      %v4047 = vadd.f32 %v4011, 1e-05
      %v4048 = vadd.f32 %v4012, 1e-05
      %v4049 = vadd.f32 %v4013, 1e-05
      %v4050 = vadd.f32 %v4014, 1e-05
      %v4051 = vadd.f32 %v4015, 1e-05
      %v4052 = vadd.f32 %v4016, 1e-05
      %v4053 = vadd.f32 %v4017, 1e-05
      %v4054 = vadd.f32 %v4018, 1e-05
      %v4055 = vadd.f32 %v4019, 1e-05
      %v4056 = vadd.f32 %v4020, 1e-05
      %v4057 = vadd.f32 %v4021, 1e-05
      %v4058 = vadd.f32 %v4022, 1e-05
      %v4059 = vadd.f32 %v4023, 1e-05
      %v4060 = vadd.f32 %v4024, 1e-05
      %v4061 = vadd.f32 %v4025, 1e-05
      %v4062 = vadd.f32 %v4026, 1e-05
      %v4063 = vadd.f32 %v4027, 1e-05
      %v4064 = vadd.f32 %v4028, 1e-05
      %v4065 = vrsqrt.pop %v4047
      %v4066 = vrsqrt.pop %v4048
      %v4067 = vrsqrt.pop %v4049
      %v4068 = vrsqrt.pop %v4050
      %v4069 = vrsqrt.pop %v4051
      %v4070 = vrsqrt.pop %v4052
      %v4071 = vrsqrt.pop %v4053
      %v4072 = vrsqrt.pop %v4054
      %v4073 = vrsqrt.pop %v4055
      %v4074 = vrsqrt.pop %v4056
      %v4075 = vrsqrt.pop %v4057
      %v4076 = vrsqrt.pop %v4058
      %v4077 = vrsqrt.pop %v4059
      %v4078 = vrsqrt.pop %v4060
      %v4079 = vrsqrt.pop %v4061
      %v4080 = vrsqrt.pop %v4062
      %v4081 = vrsqrt.pop %v4063
      %v4082 = vrsqrt.pop %v4064
      %v4083 = vmul.f32 %v4029, %v4065
      %v4084 = vmul.f32 %v4030, %v4066
      %v4085 = vmul.f32 %v4031, %v4067
      %v4086 = vmul.f32 %v4032, %v4068
      %v4087 = vmul.f32 %v4033, %v4069
      %v4088 = vmul.f32 %v4034, %v4070
      %v4089 = vmul.f32 %v4035, %v4071
      %v4090 = vmul.f32 %v4036, %v4072
      %v4091 = vmul.f32 %v4037, %v4073
      %v4092 = vmul.f32 %v4038, %v4074
      %v4093 = vmul.f32 %v4039, %v4075
      %v4094 = vmul.f32 %v4040, %v4076
      %v4095 = vmul.f32 %v4041, %v4077
      %v4096 = vmul.f32 %v4042, %v4078
      %v4097 = vmul.f32 %v4043, %v4079
      %v4098 = vmul.f32 %v4044, %v4080
      %v4099 = vmul.f32 %v4045, %v4081
      %v4100 = vmul.f32 %v4046, %v4082
      %v4101 = vld [vmem:[%s374] sm:$0xff]
      %v4102 = vld [vmem:[%s374 + $0x8] sm:$0xff]
      %v4103 = vld [vmem:[%s374 + $0x10] sm:$0xff]
      %v4104 = vld [vmem:[%s374 + $0x18] sm:$0xff]
      %v4105 = vld [vmem:[%s374 + $0x20] sm:$0xff]
      %v4106 = vld [vmem:[%s374 + $0x28] sm:$0xff]
      %v4107 = vld [vmem:[%s374 + $0x30] sm:$0xff]
      %v4108 = vld [vmem:[%s374 + $0x38] sm:$0xff]
      %v4109 = vld [vmem:[%s374 + $0x40] sm:$0xff]
      %v4110 = vld [vmem:[%s374 + $0x48] sm:$0xff]
      %v4111 = vld [vmem:[%s374 + $0x50] sm:$0xff]
      %v4112 = vld [vmem:[%s374 + $0x58] sm:$0xff]
      %v4113 = vld [vmem:[%s374 + $0x60] sm:$0xff]
      %v4114 = vld [vmem:[%s374 + $0x68] sm:$0xff]
      %v4115 = vld [vmem:[%s374 + $0x70] sm:$0xff]
      %v4116 = vld [vmem:[%s374 + $0x78] sm:$0xff]
      %v4117 = vld [vmem:[%s374 + $0x80] sm:$0xff]
      %v4118 = vld [vmem:[%s374 + $0x88] sm:$0xff]
      %v4119 = vmul.f32 %v3831, %v4083
      %v4120 = vmul.f32 %v3832, %v4084
      %v4121 = vmul.f32 %v3833, %v4085
      %v4122 = vmul.f32 %v3834, %v4086
      %v4123 = vmul.f32 %v3835, %v4087
      %v4124 = vmul.f32 %v3836, %v4088
      %v4125 = vmul.f32 %v3837, %v4089
      %v4126 = vmul.f32 %v3838, %v4090
      %v4127 = vmul.f32 %v3839, %v4091
      %v4128 = vmul.f32 %v3840, %v4092
      %v4129 = vmul.f32 %v3841, %v4093
      %v4130 = vmul.f32 %v3842, %v4094
      %v4131 = vmul.f32 %v3843, %v4095
      %v4132 = vmul.f32 %v3844, %v4096
      %v4133 = vmul.f32 %v3845, %v4097
      %v4134 = vmul.f32 %v3846, %v4098
      %v4135 = vmul.f32 %v3847, %v4099
      %v4136 = vmul.f32 %v3848, %v4100
      %v4137 = vsub.f32 %v4101, %v4119
      %v4138 = vsub.f32 %v4102, %v4120
      %v4139 = vsub.f32 %v4103, %v4121
      %v4140 = vsub.f32 %v4104, %v4122
      %v4141 = vsub.f32 %v4105, %v4123
      %v4142 = vsub.f32 %v4106, %v4124
      %v4143 = vsub.f32 %v4107, %v4125
      %v4144 = vsub.f32 %v4108, %v4126
      %v4145 = vsub.f32 %v4109, %v4127
      %v4146 = vsub.f32 %v4110, %v4128
      %v4147 = vsub.f32 %v4111, %v4129
      %v4148 = vsub.f32 %v4112, %v4130
      %v4149 = vsub.f32 %v4113, %v4131
      %v4150 = vsub.f32 %v4114, %v4132
      %v4151 = vsub.f32 %v4115, %v4133
      %v4152 = vsub.f32 %v4116, %v4134
      %v4153 = vsub.f32 %v4117, %v4135
      %v4154 = vsub.f32 %v4118, %v4136
      %v4155 = vld [vmem:[%s362] sm:$0xff]
      %v4156 = vld [vmem:[%s362 + $0x8] sm:$0xff]
      %v4157 = vld [vmem:[%s362 + $0x10] sm:$0xff]
      %v4158 = vld [vmem:[%s362 + $0x18] sm:$0xff]
      %v4159 = vld [vmem:[%s362 + $0x20] sm:$0xff]
      %v4160 = vld [vmem:[%s362 + $0x28] sm:$0xff]
      %v4161 = vld [vmem:[%s362 + $0x30] sm:$0xff]
      %v4162 = vld [vmem:[%s362 + $0x38] sm:$0xff]
      %v4163 = vld [vmem:[%s362 + $0x40] sm:$0xff]
      %v4164 = vld [vmem:[%s362 + $0x48] sm:$0xff]
      %v4165 = vld [vmem:[%s362 + $0x50] sm:$0xff]
      %v4166 = vld [vmem:[%s362 + $0x58] sm:$0xff]
      %v4167 = vld [vmem:[%s362 + $0x60] sm:$0xff]
      %v4168 = vld [vmem:[%s362 + $0x68] sm:$0xff]
      %v4169 = vld [vmem:[%s362 + $0x70] sm:$0xff]
      %v4170 = vld [vmem:[%s362 + $0x78] sm:$0xff]
      %v4171 = vld [vmem:[%s362 + $0x80] sm:$0xff]
      %v4172 = vld [vmem:[%s362 + $0x88] sm:$0xff]
      %v4173 = vunpack.c.l.bf16 %v4155
      %v4174 = vunpack.c.h.bf16 %v4155
      %v4175 = vunpack.c.l.bf16 %v4156
      %v4176 = vunpack.c.h.bf16 %v4156
      %v4177 = vunpack.c.l.bf16 %v4157
      %v4178 = vunpack.c.h.bf16 %v4157
      %v4179 = vunpack.c.l.bf16 %v4158
      %v4180 = vunpack.c.h.bf16 %v4158
      %v4181 = vunpack.c.l.bf16 %v4159
      %v4182 = vunpack.c.h.bf16 %v4159
      %v4183 = vunpack.c.l.bf16 %v4160
      %v4184 = vunpack.c.h.bf16 %v4160
      %v4185 = vunpack.c.l.bf16 %v4161
      %v4186 = vunpack.c.h.bf16 %v4161
      %v4187 = vunpack.c.l.bf16 %v4162
      %v4188 = vunpack.c.h.bf16 %v4162
      %v4189 = vunpack.c.l.bf16 %v4163
      %v4190 = vunpack.c.h.bf16 %v4163
      %v4191 = vunpack.c.l.bf16 %v4164
      %v4192 = vunpack.c.h.bf16 %v4164
      %v4193 = vunpack.c.l.bf16 %v4165
      %v4194 = vunpack.c.h.bf16 %v4165
      %v4195 = vunpack.c.l.bf16 %v4166
      %v4196 = vunpack.c.h.bf16 %v4166
      %v4197 = vunpack.c.l.bf16 %v4167
      %v4198 = vunpack.c.h.bf16 %v4167
      %v4199 = vunpack.c.l.bf16 %v4168
      %v4200 = vunpack.c.h.bf16 %v4168
      %v4201 = vunpack.c.l.bf16 %v4169
      %v4202 = vunpack.c.h.bf16 %v4169
      %v4203 = vunpack.c.l.bf16 %v4170
      %v4204 = vunpack.c.h.bf16 %v4170
      %v4205 = vunpack.c.l.bf16 %v4171
      %v4206 = vunpack.c.h.bf16 %v4171
      %v4207 = vunpack.c.l.bf16 %v4172
      %v4208 = vunpack.c.h.bf16 %v4172
      %4210 = vset.pattern.permute.xlu0 0
      %4211 = vperm.xlu0 %4210, %v4083
      %v4212 = vpop.permute.xlu0 %4211
      %4215 = vset.pattern.permute.xlu0 0
      %4216 = vperm.xlu0 %4215, %v4084
      %v4217 = vpop.permute.xlu0 %4216
      %4220 = vset.pattern.permute.xlu0 0
      %4221 = vperm.xlu0 %4220, %v4085
      %v4222 = vpop.permute.xlu0 %4221
      %4225 = vset.pattern.permute.xlu0 0
      %4226 = vperm.xlu0 %4225, %v4086
      %v4227 = vpop.permute.xlu0 %4226
      %4230 = vset.pattern.permute.xlu0 0
      %4231 = vperm.xlu0 %4230, %v4087
      %v4232 = vpop.permute.xlu0 %4231
      %4235 = vset.pattern.permute.xlu0 0
      %4236 = vperm.xlu0 %4235, %v4088
      %v4237 = vpop.permute.xlu0 %4236
      %4240 = vset.pattern.permute.xlu0 0
      %4241 = vperm.xlu0 %4240, %v4089
      %v4242 = vpop.permute.xlu0 %4241
      %4245 = vset.pattern.permute.xlu0 0
      %4246 = vperm.xlu0 %4245, %v4090
      %v4247 = vpop.permute.xlu0 %4246
      %4250 = vset.pattern.permute.xlu0 0
      %4251 = vperm.xlu0 %4250, %v4091
      %v4252 = vpop.permute.xlu0 %4251
      %4255 = vset.pattern.permute.xlu0 0
      %4256 = vperm.xlu0 %4255, %v4092
      %v4257 = vpop.permute.xlu0 %4256
      %4260 = vset.pattern.permute.xlu0 0
      %4261 = vperm.xlu0 %4260, %v4093
      %v4262 = vpop.permute.xlu0 %4261
      %4265 = vset.pattern.permute.xlu0 0
      %4266 = vperm.xlu0 %4265, %v4094
      %v4267 = vpop.permute.xlu0 %4266
      %4270 = vset.pattern.permute.xlu0 0
      %4271 = vperm.xlu0 %4270, %v4095
      %v4272 = vpop.permute.xlu0 %4271
      %4275 = vset.pattern.permute.xlu0 0
      %4276 = vperm.xlu0 %4275, %v4096
      %v4277 = vpop.permute.xlu0 %4276
      %4280 = vset.pattern.permute.xlu0 0
      %4281 = vperm.xlu0 %4280, %v4097
      %v4282 = vpop.permute.xlu0 %4281
      %4285 = vset.pattern.permute.xlu0 0
      %4286 = vperm.xlu0 %4285, %v4098
      %v4287 = vpop.permute.xlu0 %4286
      %4290 = vset.pattern.permute.xlu0 0
      %4291 = vperm.xlu0 %4290, %v4099
      %v4292 = vpop.permute.xlu0 %4291
      %4295 = vset.pattern.permute.xlu0 0
      %4296 = vperm.xlu0 %4295, %v4100
      %v4297 = vpop.permute.xlu0 %4296
      %v4299 = vmul.f32 %v3670, %v4212
      %v4300 = vmul.f32 %v3672, %v4212
      %v4301 = vmul.f32 %v3674, %v4217
      %v4302 = vmul.f32 %v3676, %v4217
      %v4303 = vmul.f32 %v3680, %v4222
      %v4304 = vmul.f32 %v3682, %v4222
      %v4305 = vmul.f32 %v3684, %v4227
      %v4306 = vmul.f32 %v3686, %v4227
      %v4307 = vmul.f32 %v3690, %v4232
      %v4308 = vmul.f32 %v3692, %v4232
      %v4309 = vmul.f32 %v3694, %v4237
      %v4310 = vmul.f32 %v3696, %v4237
      %v4311 = vmul.f32 %v3700, %v4242
      %v4312 = vmul.f32 %v3702, %v4242
      %v4313 = vmul.f32 %v3704, %v4247
      %v4314 = vmul.f32 %v3706, %v4247
      %v4315 = vmul.f32 %v3710, %v4252
      %v4316 = vmul.f32 %v3712, %v4252
      %v4317 = vmul.f32 %v3714, %v4257
      %v4318 = vmul.f32 %v3716, %v4257
      %v4319 = vmul.f32 %v3720, %v4262
      %v4320 = vmul.f32 %v3722, %v4262
      %v4321 = vmul.f32 %v3724, %v4267
      %v4322 = vmul.f32 %v3726, %v4267
      %v4323 = vmul.f32 %v3730, %v4272
      %v4324 = vmul.f32 %v3732, %v4272
      %v4325 = vmul.f32 %v3734, %v4277
      %v4326 = vmul.f32 %v3736, %v4277
      %v4327 = vmul.f32 %v3740, %v4282
      %v4328 = vmul.f32 %v3742, %v4282
      %v4329 = vmul.f32 %v3744, %v4287
      %v4330 = vmul.f32 %v3746, %v4287
      %v4331 = vmul.f32 %v3750, %v4292
      %v4332 = vmul.f32 %v3752, %v4292
      %v4333 = vmul.f32 %v3754, %v4297
      %v4334 = vmul.f32 %v3756, %v4297
      %v4335 = vadd.f32 %v4173, %v4299
      %v4336 = vadd.f32 %v4174, %v4300
      %v4337 = vadd.f32 %v4175, %v4301
      %v4338 = vadd.f32 %v4176, %v4302
      %v4339 = vadd.f32 %v4177, %v4303
      %v4340 = vadd.f32 %v4178, %v4304
      %v4341 = vadd.f32 %v4179, %v4305
      %v4342 = vadd.f32 %v4180, %v4306
      %v4343 = vadd.f32 %v4181, %v4307
      %v4344 = vadd.f32 %v4182, %v4308
      %v4345 = vadd.f32 %v4183, %v4309
      %v4346 = vadd.f32 %v4184, %v4310
      %v4347 = vadd.f32 %v4185, %v4311
      %v4348 = vadd.f32 %v4186, %v4312
      %v4349 = vadd.f32 %v4187, %v4313
      %v4350 = vadd.f32 %v4188, %v4314
      %v4351 = vadd.f32 %v4189, %v4315
      %v4352 = vadd.f32 %v4190, %v4316
      %v4353 = vadd.f32 %v4191, %v4317
      %v4354 = vadd.f32 %v4192, %v4318
      %v4355 = vadd.f32 %v4193, %v4319
      %v4356 = vadd.f32 %v4194, %v4320
      %v4357 = vadd.f32 %v4195, %v4321
      %v4358 = vadd.f32 %v4196, %v4322
      %v4359 = vadd.f32 %v4197, %v4323
      %v4360 = vadd.f32 %v4198, %v4324
      %v4361 = vadd.f32 %v4199, %v4325
      %v4362 = vadd.f32 %v4200, %v4326
      %v4363 = vadd.f32 %v4201, %v4327
      %v4364 = vadd.f32 %v4202, %v4328
      %v4365 = vadd.f32 %v4203, %v4329
      %v4366 = vadd.f32 %v4204, %v4330
      %v4367 = vadd.f32 %v4205, %v4331
      %v4368 = vadd.f32 %v4206, %v4332
      %v4369 = vadd.f32 %v4207, %v4333
      %v4370 = vadd.f32 %v4208, %v4334
      %4372 = vset.pattern.permute.xlu0 0
      %4373 = vperm.xlu0 %4372, %v4137
      %v4374 = vpop.permute.xlu0 %4373
      %4377 = vset.pattern.permute.xlu0 0
      %4378 = vperm.xlu0 %4377, %v4138
      %v4379 = vpop.permute.xlu0 %4378
      %4382 = vset.pattern.permute.xlu0 0
      %4383 = vperm.xlu0 %4382, %v4139
      %v4384 = vpop.permute.xlu0 %4383
      %4387 = vset.pattern.permute.xlu0 0
      %4388 = vperm.xlu0 %4387, %v4140
      %v4389 = vpop.permute.xlu0 %4388
      %4392 = vset.pattern.permute.xlu0 0
      %4393 = vperm.xlu0 %4392, %v4141
      %v4394 = vpop.permute.xlu0 %4393
      %4397 = vset.pattern.permute.xlu0 0
      %4398 = vperm.xlu0 %4397, %v4142
      %v4399 = vpop.permute.xlu0 %4398
      %4402 = vset.pattern.permute.xlu0 0
      %4403 = vperm.xlu0 %4402, %v4143
      %v4404 = vpop.permute.xlu0 %4403
      %4407 = vset.pattern.permute.xlu0 0
      %4408 = vperm.xlu0 %4407, %v4144
      %v4409 = vpop.permute.xlu0 %4408
      %4412 = vset.pattern.permute.xlu0 0
      %4413 = vperm.xlu0 %4412, %v4145
      %v4414 = vpop.permute.xlu0 %4413
      %4417 = vset.pattern.permute.xlu0 0
      %4418 = vperm.xlu0 %4417, %v4146
      %v4419 = vpop.permute.xlu0 %4418
      %4422 = vset.pattern.permute.xlu0 0
      %4423 = vperm.xlu0 %4422, %v4147
      %v4424 = vpop.permute.xlu0 %4423
      %4427 = vset.pattern.permute.xlu0 0
      %4428 = vperm.xlu0 %4427, %v4148
      %v4429 = vpop.permute.xlu0 %4428
      %4432 = vset.pattern.permute.xlu0 0
      %4433 = vperm.xlu0 %4432, %v4149
      %v4434 = vpop.permute.xlu0 %4433
      %4437 = vset.pattern.permute.xlu0 0
      %4438 = vperm.xlu0 %4437, %v4150
      %v4439 = vpop.permute.xlu0 %4438
      %4442 = vset.pattern.permute.xlu0 0
      %4443 = vperm.xlu0 %4442, %v4151
      %v4444 = vpop.permute.xlu0 %4443
      %4447 = vset.pattern.permute.xlu0 0
      %4448 = vperm.xlu0 %4447, %v4152
      %v4449 = vpop.permute.xlu0 %4448
      %4452 = vset.pattern.permute.xlu0 0
      %4453 = vperm.xlu0 %4452, %v4153
      %v4454 = vpop.permute.xlu0 %4453
      %4457 = vset.pattern.permute.xlu0 0
      %4458 = vperm.xlu0 %4457, %v4154
      %v4459 = vpop.permute.xlu0 %4458
      %v4461 = vadd.f32 %v4335, %v4374
      %v4462 = vadd.f32 %v4336, %v4374
      %v4463 = vadd.f32 %v4337, %v4379
      %v4464 = vadd.f32 %v4338, %v4379
      %v4465 = vadd.f32 %v4339, %v4384
      %v4466 = vadd.f32 %v4340, %v4384
      %v4467 = vadd.f32 %v4341, %v4389
      %v4468 = vadd.f32 %v4342, %v4389
      %v4469 = vadd.f32 %v4343, %v4394
      %v4470 = vadd.f32 %v4344, %v4394
      %v4471 = vadd.f32 %v4345, %v4399
      %v4472 = vadd.f32 %v4346, %v4399
      %v4473 = vadd.f32 %v4347, %v4404
      %v4474 = vadd.f32 %v4348, %v4404
      %v4475 = vadd.f32 %v4349, %v4409
      %v4476 = vadd.f32 %v4350, %v4409
      %v4477 = vadd.f32 %v4351, %v4414
      %v4478 = vadd.f32 %v4352, %v4414
      %v4479 = vadd.f32 %v4353, %v4419
      %v4480 = vadd.f32 %v4354, %v4419
      %v4481 = vadd.f32 %v4355, %v4424
      %v4482 = vadd.f32 %v4356, %v4424
      %v4483 = vadd.f32 %v4357, %v4429
      %v4484 = vadd.f32 %v4358, %v4429
      %v4485 = vadd.f32 %v4359, %v4434
      %v4486 = vadd.f32 %v4360, %v4434
      %v4487 = vadd.f32 %v4361, %v4439
      %v4488 = vadd.f32 %v4362, %v4439
      %v4489 = vadd.f32 %v4363, %v4444
      %v4490 = vadd.f32 %v4364, %v4444
      %v4491 = vadd.f32 %v4365, %v4449
      %v4492 = vadd.f32 %v4366, %v4449
      %v4493 = vadd.f32 %v4367, %v4454
      %v4494 = vadd.f32 %v4368, %v4454
      %v4495 = vadd.f32 %v4369, %v4459
      %v4496 = vadd.f32 %v4370, %v4459
      %v4497 = vpack.c.bf16 %v4463, %v4461
      %v4498 = vpack.c.bf16 %v4464, %v4462
      %v4499 = vpack.c.bf16 %v4467, %v4465
      %v4500 = vpack.c.bf16 %v4468, %v4466
      %v4501 = vpack.c.bf16 %v4471, %v4469
      %v4502 = vpack.c.bf16 %v4472, %v4470
      %v4503 = vpack.c.bf16 %v4475, %v4473
      %v4504 = vpack.c.bf16 %v4476, %v4474
      %v4505 = vpack.c.bf16 %v4479, %v4477
      %v4506 = vpack.c.bf16 %v4480, %v4478
      %v4507 = vpack.c.bf16 %v4483, %v4481
      %v4508 = vpack.c.bf16 %v4484, %v4482
      %v4509 = vpack.c.bf16 %v4487, %v4485
      %v4510 = vpack.c.bf16 %v4488, %v4486
      %v4511 = vpack.c.bf16 %v4491, %v4489
      %v4512 = vpack.c.bf16 %v4492, %v4490
      %v4513 = vpack.c.bf16 %v4495, %v4493
      %v4514 = vpack.c.bf16 %v4496, %v4494
      %v4533 = vunpack.c.l.b16 %v4497
      %v4534 = vunpack.c.l.b16 %v4498
      %v4535 = vunpack.c.h.b16 %v4497
      %v4536 = vunpack.c.h.b16 %v4498
      %v4537 = vunpack.c.l.b16 %v4499
      %v4538 = vunpack.c.l.b16 %v4500
      %v4539 = vunpack.c.h.b16 %v4499
      %v4540 = vunpack.c.h.b16 %v4500
      %v4541 = vunpack.c.l.b16 %v4501
      %v4542 = vunpack.c.l.b16 %v4502
      %v4543 = vunpack.c.h.b16 %v4501
      %v4544 = vunpack.c.h.b16 %v4502
      %v4545 = vunpack.c.l.b16 %v4503
      %v4546 = vunpack.c.l.b16 %v4504
      %v4547 = vunpack.c.h.b16 %v4503
      %v4548 = vunpack.c.h.b16 %v4504
      %v4549 = vunpack.c.l.b16 %v4505
      %v4550 = vunpack.c.l.b16 %v4506
      %v4551 = vunpack.c.h.b16 %v4505
      %v4552 = vunpack.c.h.b16 %v4506
      %v4553 = vunpack.c.l.b16 %v4507
      %v4554 = vunpack.c.l.b16 %v4508
      %v4555 = vunpack.c.h.b16 %v4507
      %v4556 = vunpack.c.h.b16 %v4508
      %v4557 = vunpack.c.l.b16 %v4509
      %v4558 = vunpack.c.l.b16 %v4510
      %v4559 = vunpack.c.h.b16 %v4509
      %v4560 = vunpack.c.h.b16 %v4510
      %v4561 = vunpack.c.l.b16 %v4511
      %v4562 = vunpack.c.l.b16 %v4512
      %v4563 = vunpack.c.h.b16 %v4511
      %v4564 = vunpack.c.h.b16 %v4512
      %v4565 = vunpack.c.l.b16 %v4513
      %v4566 = vunpack.c.l.b16 %v4514
      %v4567 = vunpack.c.h.b16 %v4513
      %v4568 = vunpack.c.h.b16 %v4514
      %v4569 = vpack.c.b16 %v4534, %v4533
      %v4570 = vpack.c.b16 %v4536, %v4535
      %v4571 = vpack.c.b16 %v4538, %v4537
      %v4572 = vpack.c.b16 %v4540, %v4539
      %v4573 = vpack.c.b16 %v4542, %v4541
      %v4574 = vpack.c.b16 %v4544, %v4543
      %v4575 = vpack.c.b16 %v4546, %v4545
      %v4576 = vpack.c.b16 %v4548, %v4547
      %v4577 = vpack.c.b16 %v4550, %v4549
      %v4578 = vpack.c.b16 %v4552, %v4551
      %v4579 = vpack.c.b16 %v4554, %v4553
      %v4580 = vpack.c.b16 %v4556, %v4555
      %v4581 = vpack.c.b16 %v4558, %v4557
      %v4582 = vpack.c.b16 %v4560, %v4559
      %v4583 = vpack.c.b16 %v4562, %v4561
      %v4584 = vpack.c.b16 %v4564, %v4563
      %v4585 = vpack.c.b16 %v4566, %v4565
      %v4586 = vpack.c.b16 %v4568, %v4567
      %vm4605 = vcmask 1043456
      %vm4606 = vcmask 556036
      %vm4607 = vmor %vm4606, %vm4605
      %4608 = vst.msk [vmem:[%s381] sm:$0xff] %vm4607, %v4569
      %4609 = vst.msk [vmem:[%s381 + $0x8] sm:$0xff] %vm4607, %v4570
      %4610 = vst.msk [vmem:[%s381 + $0x10] sm:$0xff] %vm4607, %v4571
      %4611 = vst.msk [vmem:[%s381 + $0x18] sm:$0xff] %vm4607, %v4572
      %4612 = vst.msk [vmem:[%s381 + $0x20] sm:$0xff] %vm4607, %v4573
      %4613 = vst.msk [vmem:[%s381 + $0x28] sm:$0xff] %vm4607, %v4574
      %4614 = vst.msk [vmem:[%s381 + $0x30] sm:$0xff] %vm4607, %v4575
      %4615 = vst.msk [vmem:[%s381 + $0x38] sm:$0xff] %vm4607, %v4576
      %4616 = vst.msk [vmem:[%s381 + $0x40] sm:$0xff] %vm4607, %v4577
      %4617 = vst.msk [vmem:[%s381 + $0x48] sm:$0xff] %vm4607, %v4578
      %4618 = vst.msk [vmem:[%s381 + $0x50] sm:$0xff] %vm4607, %v4579
      %4619 = vst.msk [vmem:[%s381 + $0x58] sm:$0xff] %vm4607, %v4580
      %4620 = vst.msk [vmem:[%s381 + $0x60] sm:$0xff] %vm4607, %v4581
      %4621 = vst.msk [vmem:[%s381 + $0x68] sm:$0xff] %vm4607, %v4582
      %4622 = vst.msk [vmem:[%s381 + $0x70] sm:$0xff] %vm4607, %v4583
      %4623 = vst.msk [vmem:[%s381 + $0x78] sm:$0xff] %vm4607, %v4584
      %4624 = vst.msk [vmem:[%s381 + $0x80] sm:$0xff] %vm4607, %v4585
      %4625 = vst.msk [vmem:[%s381 + $0x88] sm:$0xff] %vm4607, %v4586
      %s4626 = smul.u32 18, %s19
      %p4627 = scmp.lt.s32.totalorder %s4626, 71
      %s4628 = scalar_select %p4627, %s4626, 71
      %s4629 = smul.addr %s4628, 2
      %s4630 = smul.addr %s4629, 4
      %s4631 = scalar_lea.vmem %s8, %s4630
      // Predicated region
      $region53: #{tpu_custom_call.1} parent=51 // pred_check
        %p4632 = pneg %p225
      $region54: #{tpu_custom_call.1} parent=51 // pred_check_branch
        %4634 = sbr.rel (%p4632) target = $region56
      $region55: #{tpu_custom_call.1} parent=51 // pred_region
        %s4635 = smul.u32 18, %s19
      $region56: #{tpu_custom_call.1} parent=51 // pred_fallthru
        _
    $region52: #{tpu_custom_call.1} parent=5 // pred_fallthru
      _
    %p4636 = scmp.le.s32.totalorder 2, %s14
    // Predicated region
    $region57: #{tpu_custom_call.1} parent=5 // pred_check
      %p4637 = pneg %p4636
    $region58: #{tpu_custom_call.1} parent=5 // pred_check_branch
      %4639 = sbr.rel (%p4637) target = $region60
    $region59: #{tpu_custom_call.1} parent=5 // pred_region
      %s4640 = ssub.s32 %s14, 2
      // Predicated region
      $region61: #{tpu_custom_call.1} parent=59 // pred_check
        %p4641 = pneg %p231
      $region62: #{tpu_custom_call.1} parent=59 // pred_check_branch
        %4643 = sbr.rel (%p4641) target = $region64
      $region63: #{tpu_custom_call.1} parent=59 // pred_region
        %s4644 = smul.u32 18, %s20
        %p4645 = scmp.lt.s32.totalorder %s4644, 71
        %s4646 = scalar_select %p4645, %s4644, 71
        %s4647 = smul.addr %s4646, 2
        %s4648 = smul.addr %s4647, 4
        %s4649 = scalar_lea.vmem %s8, %s4648
      $region64: #{tpu_custom_call.1} parent=59 // pred_fallthru
        _
    $region60: #{tpu_custom_call.1} parent=5 // pred_fallthru
      _
  $region6: #{tpu_custom_call.1} parent=0 // loop_footer
    %s18 = sadd.s32 1, %s14
  $region7: #{tpu_custom_call.1} parent=0 // loop_footer_branch
    %13 = sbr.rel target = $region3
  $region8: #{tpu_custom_call.1} parent=0 // loop_exit
    _

</llo_original>
